<compile_context>
chip_gen: v7x
topology: tpu7x:2x2x1
jax: 0.10.0
libtpu: 0.0.40
codegen_flags: <defaults>
</compile_context>

<pallas_src>
import functools

import jax
import jax.numpy as jnp
from jax.experimental import pallas as pl
from jax.experimental.pallas import tpu as pltpu


def _select_th(h_out, w_out, c, k2, fixed_bytes, budget_bytes, mxu_rows=256):
    """Pick the H-tile so TH*W_out fills the MXU M dim, bounded by VMEM."""
    def ok_shape(d):
        # out block second-minor dim (TH*W_out) must be a multiple of 8 or full.
        return (d * w_out) % 8 == 0 or d == h_out

    def step_bytes(d):
        return (fixed_bytes
                + d * w_out * k2 * c * 4          # fused conv2 wgt scratch
                + 2 * d * w_out * c * 4)          # double-buffered output block

    divisors = [d for d in range(1, h_out + 1) if h_out % d == 0 and ok_shape(d)]
    fitting = [d for d in divisors if step_bytes(d) <= budget_bytes]
    if not fitting:
        return h_out if not divisors else min(divisors)
    full_mxu = [d for d in fitting if d * w_out >= mxu_rows]
    return min(full_mxu) if full_mxu else max(fitting)


def _involution_kernel(x_ref, w1_ref, t_ref, w2_ref, b2_ref, o_ref,
                       xpad_ref, wgt_ref, *, K, stride, TH, H, W, C, P, W_out):
    # x_ref   : (H, W, C)          unpadded input image (resident across H-tiles)
    # w1_ref  : (C, Cmid)          conv1 weight with BN scale folded in
    # t_ref   : (1, Cmid)          folded BatchNorm shift
    # w2_ref  : (Cmid, K^2*C)      conv2 weight, pre-expanded group->channel,
    #                              column index = k*C + c
    # b2_ref  : (1, K^2*C)         conv2 bias, same expansion
    # o_ref   : (TH*W_out, C)      output tile (spatially flattened)
    # xpad_ref: (H+2P, W+2P, C)    zero-halo padded image (VMEM scratch)
    # wgt_ref : (TH*W_out, K^2*C)  fused per-pixel kernel scratch
    ti = pl.program_id(1)
    row0 = pl.multiple_of(ti * TH, TH)           # first output row of this tile
    Hp = H + 2 * P
    Wp = W + 2 * P

    # Build the zero-halo padded image in VMEM once per batch element; only the
    # halo rows/cols are zeroed (the interior is written from x directly).
    @pl.when(ti == 0)
    def _():
        zrow = jnp.zeros((P, Wp, C), jnp.float32)
        zcol = jnp.zeros((H, P, C), jnp.float32)
        xpad_ref[pl.ds(0, P), :, :] = zrow
        xpad_ref[pl.ds(Hp - P, P), :, :] = zrow
        xpad_ref[pl.ds(P, H), pl.ds(0, P), :] = zcol
        xpad_ref[pl.ds(P, H), pl.ds(Wp - P, P), :] = zcol
        xpad_ref[pl.ds(P, H), pl.ds(P, W), :] = x_ref[...]

    # ---- stage 1: per-pixel kernel generation (1x1 convs, BN folded) --------
    if stride == 1:
        xw = x_ref[pl.ds(row0, TH), :, :].reshape(TH * W_out, C)
    else:
        # TODO(synk): stride > 1 path (in-kernel avgpool + strided tap reads)
        # is implemented but not exercised/verified by the demo below.
        xw = x_ref[pl.ds(row0 * stride, TH * stride), :, :]
        xw = xw.reshape(TH, stride, W // stride, stride, C).mean(axis=(1, 3))
        xw = xw.reshape(TH * W_out, C)

    hvec = jnp.dot(xw, w1_ref[...], preferred_element_type=jnp.float32)
    hvec = jnp.maximum(hvec + t_ref[...], 0.0)                # (TH*W_out, Cmid)

    # ONE wide MXU matmul for all K^2 taps and all channels; result lives in a
    # VMEM scratch that the tap loop slices lane-contiguously.
    wgt_ref[...] = (jnp.dot(hvec, w2_ref[...],
                            preferred_element_type=jnp.float32) + b2_ref[...])

    # ---- stage 2: K^2-tap aggregation (pure VPU), accumulate into o_ref -----
    # TODO(synk): for K >= 7 switch this static unroll to lax.fori_loop over k
    # (unroll=2-4) to bound code size; K=3 keeps the full unroll.
    for ki in range(K):
        for kj in range(K):
            k = ki * K + kj
            wk = wgt_ref[:, k * C:(k + 1) * C]                # (TH*W_out, C)
            if stride == 1:
                xs = xpad_ref[pl.ds(row0 + ki, TH), pl.ds(kj, W_out), :]
            else:
                xs = xpad_ref[pl.ds(row0 * stride + ki, TH, stride=stride),
                              pl.ds(kj, W_out, stride=stride), :]
            contrib = wk * xs.reshape(TH * W_out, C)
            if k == 0:
                o_ref[...] = contrib                          # init with tap 0
            else:
                o_ref[...] += contrib


def involution_forward(x_nchw, params, *, kernel_size, stride):
    K = kernel_size
    assert K % 2 == 1, "involution uses same-padding; odd kernel_size expected"
    K2 = K * K
    x = jnp.transpose(x_nchw, (0, 2, 3, 1)).astype(jnp.float32)      # NHWC
    B, H, W, C = x.shape
    GC = 4
    G = C // GC
    Cmid = C // 4

    P = (K - 1) // 2
    H_out = (H + 2 * P - K) // stride + 1
    W_out = (W + 2 * P - K) // stride + 1
    if stride > 1:
        assert H_out == H // stride and W_out == W // stride, \
            "avgpool / unfold spatial mismatch"

    # Fold BatchNorm into conv1: scale goes into the weight, shift stays.
    eps = 1e-5   # must match the PyTorch BN eps
    s = params["gamma"] / jnp.sqrt(params["var"] + eps)               # (Cmid,)
    w1f = params["w1"].astype(jnp.float32) * s[None, :]               # (C, Cmid)
    t = (params["beta"] - params["mean"] * s).reshape(1, Cmid).astype(jnp.float32)

    # Expand conv2's columns group->channel, k-major / channel-minor:
    #   w2e[:, k*C + c] = w2[:, g(c)*K^2 + k]
    # so every tap reads a contiguous, lane-dense (Cmid, C) weight slab.
    w2 = params["w2"].astype(jnp.float32)                             # (Cmid, K2*G)
    w2e = jnp.broadcast_to(
        w2.reshape(Cmid, G, K2).transpose(0, 2, 1)[..., None],
        (Cmid, K2, G, GC)).reshape(Cmid, K2 * C)
    b2 = params["b2"].astype(jnp.float32)                             # (K2*G,)
    b2e = jnp.broadcast_to(
        b2.reshape(G, K2).transpose(1, 0)[..., None],
        (K2, G, GC)).reshape(1, K2 * C)

    # H-tile sizing: fill the MXU M dim (TH*W_out >= 256) subject to a VMEM
    # budget that covers the image block (double-buffered), the padded-image
    # scratch, and the weights.
    fixed_bytes = (2 * H * W * C * 4
                   + (H + 2 * P) * (W + 2 * P) * C * 4
                   + 2 * (C * Cmid + Cmid + Cmid * K2 * C + K2 * C) * 4)
    budget_bytes = 24 * 1024 * 1024
    TH = _select_th(H_out, W_out, C, K2, fixed_bytes, budget_bytes)
    T = H_out // TH

    kern = functools.partial(
        _involution_kernel, K=K, stride=stride, TH=TH, H=H, W=W, C=C, P=P,
        W_out=W_out)

    out = pl.pallas_call(
        kern,
        out_shape=jax.ShapeDtypeStruct((B, H_out * W_out, C), jnp.float32),
        grid=(B, T),
        in_specs=[
            pl.BlockSpec((None, H, W, C), lambda b, i: (b, 0, 0, 0)),
            pl.BlockSpec((C, Cmid), lambda b, i: (0, 0)),
            pl.BlockSpec((1, Cmid), lambda b, i: (0, 0)),
            pl.BlockSpec((Cmid, K2 * C), lambda b, i: (0, 0)),
            pl.BlockSpec((1, K2 * C), lambda b, i: (0, 0)),
        ],
        out_specs=pl.BlockSpec((None, TH * W_out, C), lambda b, i: (b, i, 0)),
        scratch_shapes=[
            pltpu.VMEM((H + 2 * P, W + 2 * P, C), jnp.float32),   # padded image
            pltpu.VMEM((TH * W_out, K2 * C), jnp.float32),        # fused conv2 out
        ],
        compiler_params=pltpu.CompilerParams(
            # Batch axis may be split across TensorCores; the H-tile axis must
            # stay sequential (per-batch halo scratch is filled at tile 0).
            dimension_semantics=("parallel", "arbitrary"),
            vmem_limit_bytes=48 * 1024 * 1024),
    )(x, w1f, t, w2e, b2e)

    out = out.reshape(B, H_out, W_out, C)
    return jnp.transpose(out, (0, 3, 1, 2))                           # NCHW


def involution_reference(x_nchw, params, *, kernel_size, stride):
    # Pure-JAX reference mirroring the PyTorch forward (for verification).
    K = kernel_size
    K2 = K * K
    x = jnp.transpose(x_nchw, (0, 2, 3, 1)).astype(jnp.float32)
    B, H, W, C = x.shape
    GC = 4
    G = C // GC
    if stride > 1:
        xr = x.reshape(B, H // stride, stride, W // stride, stride, C).mean(axis=(2, 4))
    else:
        xr = x
    eps = 1e-5
    s = params["gamma"] / jnp.sqrt(params["var"] + eps)
    t = params["beta"] - params["mean"] * s
    h = jnp.maximum(xr @ params["w1"] * s + t, 0.0)
    wgt = h @ params["w2"] + params["b2"]                 # (B, Hh, Wh, K^2*G)
    pad = (K - 1) // 2
    H_out = (H + 2 * pad - K) // stride + 1
    W_out = (W + 2 * pad - K) // stride + 1
    xpad = jnp.pad(x, ((0, 0), (pad, pad), (pad, pad), (0, 0)))
    out = jnp.zeros((B, H_out, W_out, C), jnp.float32)
    for g in range(G):
        for ki in range(K):
            for kj in range(K):
                k = ki * K + kj
                xs = xpad[:, ki:ki + (H_out - 1) * stride + 1:stride,
                          kj:kj + (W_out - 1) * stride + 1:stride,
                          g * GC:(g + 1) * GC]
                w = wgt[:, :, :, g * K2 + k:g * K2 + k + 1]
                out = out.at[..., g * GC:(g + 1) * GC].add(w * xs)
    return jnp.transpose(out, (0, 3, 1, 2))


if __name__ == "__main__":
    key = jax.random.PRNGKey(0)
    B, C, H, W = 2, 16, 16, 16
    K, stride = 3, 1
    GC = 4
    G = C // GC
    Cmid = C // 4
    K2 = K * K

    ks = jax.random.split(key, 6)
    x = jax.random.normal(ks[0], (B, C, H, W), jnp.float32)
    params = {
        "w1": jax.random.normal(ks[1], (C, Cmid), jnp.float32) * 0.2,
        "gamma": jnp.abs(jax.random.normal(ks[2], (Cmid,), jnp.float32)) + 0.5,
        "beta": jax.random.normal(ks[3], (Cmid,), jnp.float32) * 0.1,
        "mean": jnp.zeros((Cmid,), jnp.float32),
        "var": jnp.ones((Cmid,), jnp.float32),
        "w2": jax.random.normal(ks[4], (Cmid, K2 * G), jnp.float32) * 0.2,
        "b2": jax.random.normal(ks[5], (K2 * G,), jnp.float32) * 0.1,
    }

    out = involution_forward(x, params, kernel_size=K, stride=stride)
    out = jax.block_until_ready(out)
    assert out.shape == (B, C, H, W)

    ref = involution_reference(x, params, kernel_size=K, stride=stride)
    err = float(jnp.max(jnp.abs(out - ref)))
    assert err < 1e-4, f"max abs err {err}"
    print("KERNEL_OK")
</pallas_src>

<mosaic_0001>
module attributes {stable_mosaic.version = 11 : i64} {
  func.func @_involution_kernel(%arg0: i32, %arg1: i32, %arg2: memref<1x16x16x16xf32, #tpu.memory_space<vmem>>, %arg3: memref<16x4xf32, #tpu.memory_space<vmem>>, %arg4: memref<1x4xf32, #tpu.memory_space<vmem>>, %arg5: memref<4x144xf32, #tpu.memory_space<vmem>>, %arg6: memref<1x144xf32, #tpu.memory_space<vmem>>, %arg7: memref<1x256x16xf32, #tpu.memory_space<vmem>>, %arg8: memref<18x18x16xf32, #tpu.memory_space<vmem>>, %arg9: memref<256x144xf32, #tpu.memory_space<vmem>>) attributes {dimension_semantics = [#tpu.dimension_semantics<parallel>, #tpu.dimension_semantics<arbitrary>], iteration_bounds = array<i64: 2, 1>, scalar_prefetch = 0 : i64, scratch_operands = 2 : i64, tpu.core_type = #tpu.core_type<tc>, window_params = [{transform_indices = @transform_0, window_bounds = array<i64: 1, 16, 16, 16>}, {pipeline_mode = #tpu.pipeline_mode<synchronous>, transform_indices = @transform_1, window_bounds = array<i64: 16, 4>}, {pipeline_mode = #tpu.pipeline_mode<synchronous>, transform_indices = @transform_2, window_bounds = array<i64: 1, 4>}, {pipeline_mode = #tpu.pipeline_mode<synchronous>, transform_indices = @transform_3, window_bounds = array<i64: 4, 144>}, {pipeline_mode = #tpu.pipeline_mode<synchronous>, transform_indices = @transform_4, window_bounds = array<i64: 1, 144>}, {transform_indices = @transform_5, window_bounds = array<i64: 1, 256, 16>}]} {
    %c16_i32 = arith.constant 16 : i32
    %0 = arith.muli %arg1, %c16_i32 : i32
    %1 = tpu.assume_multiple %0, 16 : i32
    %c0_i32 = arith.constant 0 : i32
    %2 = arith.cmpi eq, %arg1, %c0_i32 : i32
    %3 = arith.extui %2 : i1 to i32
    %c0_i32_0 = arith.constant 0 : i32
    %4 = arith.cmpi ne, %3, %c0_i32_0 : i32
    scf.if %4 {
      %cst_99 = arith.constant 0.000000e+00 : f32
      %127 = vector.broadcast %cst_99 : f32 to vector<1x18x16xf32>
      %cst_100 = arith.constant 0.000000e+00 : f32
      %128 = vector.broadcast %cst_100 : f32 to vector<16x1x16xf32>
      %c0_101 = arith.constant 0 : index
      %c0_102 = arith.constant 0 : index
      %c0_103 = arith.constant 0 : index
      %129 = vector.load %arg8[%c0_101, %c0_102, %c0_103] : memref<18x18x16xf32, #tpu.memory_space<vmem>>, vector<1x18x16xf32>
      tpu.vector_store %arg8[%c0_101, %c0_102, %c0_103], %127 {strides = array<i32>} : memref<18x18x16xf32, #tpu.memory_space<vmem>>, vector<1x18x16xf32>,
      %c17 = arith.constant 17 : index
      %c0_104 = arith.constant 0 : index
      %c0_105 = arith.constant 0 : index
      %130 = vector.load %arg8[%c17, %c0_104, %c0_105] : memref<18x18x16xf32, #tpu.memory_space<vmem>>, vector<1x18x16xf32>
      tpu.vector_store %arg8[%c17, %c0_104, %c0_105], %127 {strides = array<i32>} : memref<18x18x16xf32, #tpu.memory_space<vmem>>, vector<1x18x16xf32>,
      %c1_106 = arith.constant 1 : index
      %c0_107 = arith.constant 0 : index
      %c0_108 = arith.constant 0 : index
      %131 = vector.load %arg8[%c1_106, %c0_107, %c0_108] : memref<18x18x16xf32, #tpu.memory_space<vmem>>, vector<16x1x16xf32>
      tpu.vector_store %arg8[%c1_106, %c0_107, %c0_108], %128 {strides = array<i32>} : memref<18x18x16xf32, #tpu.memory_space<vmem>>, vector<16x1x16xf32>,
      %c1_109 = arith.constant 1 : index
      %c17_110 = arith.constant 17 : index
      %c0_111 = arith.constant 0 : index
      %132 = vector.load %arg8[%c1_109, %c17_110, %c0_111] : memref<18x18x16xf32, #tpu.memory_space<vmem>>, vector<16x1x16xf32>
      tpu.vector_store %arg8[%c1_109, %c17_110, %c0_111], %128 {strides = array<i32>} : memref<18x18x16xf32, #tpu.memory_space<vmem>>, vector<16x1x16xf32>,
      %c0_112 = arith.constant 0 : index
      %c0_113 = arith.constant 0 : index
      %c0_114 = arith.constant 0 : index
      %c0_115 = arith.constant 0 : index
      %133 = vector.load %arg2[%c0_112, %c0_113, %c0_114, %c0_115] : memref<1x16x16x16xf32, #tpu.memory_space<vmem>>, vector<1x16x16x16xf32>
      %134 = vector.shape_cast %133 : vector<1x16x16x16xf32> to vector<16x16x16xf32>
      %c1_116 = arith.constant 1 : index
      %c1_117 = arith.constant 1 : index
      %c0_118 = arith.constant 0 : index
      %135 = vector.load %arg8[%c1_116, %c1_117, %c0_118] : memref<18x18x16xf32, #tpu.memory_space<vmem>>, vector<16x16x16xf32>
      tpu.vector_store %arg8[%c1_116, %c1_117, %c0_118], %134 {strides = array<i32>} : memref<18x18x16xf32, #tpu.memory_space<vmem>>, vector<16x16x16xf32>,
    } else {
    }
    %c0 = arith.constant 0 : index
    %5 = arith.index_cast %1 : i32 to index
    %c0_1 = arith.constant 0 : index
    %c0_2 = arith.constant 0 : index
    %6 = vector.load %arg2[%c0, %5, %c0_1, %c0_2] : memref<1x16x16x16xf32, #tpu.memory_space<vmem>>, vector<1x16x16x16xf32>
    %7 = vector.shape_cast %6 : vector<1x16x16x16xf32> to vector<16x16x16xf32>
    %8 = vector.shape_cast %7 : vector<16x16x16xf32> to vector<256x16xf32>
    %c0_3 = arith.constant 0 : index
    %c0_4 = arith.constant 0 : index
    %9 = vector.load %arg3[%c0_3, %c0_4] : memref<16x4xf32, #tpu.memory_space<vmem>>, vector<16x4xf32>
    %cst = arith.constant dense<0.000000e+00> : vector<256x4xf32>
    %10 = tpu.matmul %8, %9, %cst {dimension_numbers = #tpu.dot_dimension_numbers<[1], [0], [0], [1], [0, 0, 1, 1], [], []>} : vector<256x16xf32>, vector<16x4xf32>, vector<256x4xf32> -> vector<256x4xf32>
    %c0_5 = arith.constant 0 : index
    %c0_6 = arith.constant 0 : index
    %11 = vector.load %arg4[%c0_5, %c0_6] : memref<1x4xf32, #tpu.memory_space<vmem>>, vector<1x4xf32>
    %12 = vector.broadcast %11 : vector<1x4xf32> to vector<256x4xf32>
    %13 = arith.addf %10, %12 : vector<256x4xf32>
    %cst_7 = arith.constant 0.000000e+00 : f32
    %14 = vector.broadcast %cst_7 : f32 to vector<256x4xf32>
    %15 = arith.maximumf %13, %14 : vector<256x4xf32>
    %c0_8 = arith.constant 0 : index
    %c0_9 = arith.constant 0 : index
    %16 = vector.load %arg5[%c0_8, %c0_9] : memref<4x144xf32, #tpu.memory_space<vmem>>, vector<4x144xf32>
    %cst_10 = arith.constant dense<0.000000e+00> : vector<256x144xf32>
    %17 = tpu.matmul %15, %16, %cst_10 {dimension_numbers = #tpu.dot_dimension_numbers<[1], [0], [0], [1], [0, 0, 1, 1], [], []>} : vector<256x4xf32>, vector<4x144xf32>, vector<256x144xf32> -> vector<256x144xf32>
    %c0_11 = arith.constant 0 : index
    %c0_12 = arith.constant 0 : index
    %18 = vector.load %arg6[%c0_11, %c0_12] : memref<1x144xf32, #tpu.memory_space<vmem>>, vector<1x144xf32>
    %19 = vector.broadcast %18 : vector<1x144xf32> to vector<256x144xf32>
    %20 = arith.addf %17, %19 : vector<256x144xf32>
    %c0_13 = arith.constant 0 : index
    %c0_14 = arith.constant 0 : index
    %21 = vector.load %arg9[%c0_13, %c0_14] : memref<256x144xf32, #tpu.memory_space<vmem>>, vector<256x144xf32>
    tpu.vector_store %arg9[%c0_13, %c0_14], %20 {strides = array<i32>} : memref<256x144xf32, #tpu.memory_space<vmem>>, vector<256x144xf32>,
    %c0_15 = arith.constant 0 : index
    %c0_16 = arith.constant 0 : index
    %22 = vector.load %arg9[%c0_15, %c0_16] : memref<256x144xf32, #tpu.memory_space<vmem>>, vector<256x16xf32>
    %c0_i32_17 = arith.constant 0 : i32
    %23 = arith.addi %1, %c0_i32_17 : i32
    %24 = arith.index_cast %23 : i32 to index
    %c0_18 = arith.constant 0 : index
    %c0_19 = arith.constant 0 : index
    %25 = vector.load %arg8[%24, %c0_18, %c0_19] : memref<18x18x16xf32, #tpu.memory_space<vmem>>, vector<16x16x16xf32>
    %26 = vector.shape_cast %25 : vector<16x16x16xf32> to vector<256x16xf32>
    %27 = arith.mulf %22, %26 : vector<256x16xf32>
    %c0_20 = arith.constant 0 : index
    %c0_21 = arith.constant 0 : index
    %c0_22 = arith.constant 0 : index
    %28 = vector.load %arg7[%c0_20, %c0_21, %c0_22] : memref<1x256x16xf32, #tpu.memory_space<vmem>>, vector<1x256x16xf32>
    %29 = vector.shape_cast %28 : vector<1x256x16xf32> to vector<256x16xf32>
    %30 = vector.shape_cast %27 : vector<256x16xf32> to vector<1x256x16xf32>
    tpu.vector_store %arg7[%c0_20, %c0_21, %c0_22], %30 {strides = array<i32>} : memref<1x256x16xf32, #tpu.memory_space<vmem>>, vector<1x256x16xf32>,
    %c0_23 = arith.constant 0 : index
    %c16 = arith.constant 16 : index
    %31 = vector.load %arg9[%c0_23, %c16] : memref<256x144xf32, #tpu.memory_space<vmem>>, vector<256x16xf32>
    %c0_i32_24 = arith.constant 0 : i32
    %32 = arith.addi %1, %c0_i32_24 : i32
    %33 = arith.index_cast %32 : i32 to index
    %c1 = arith.constant 1 : index
    %c0_25 = arith.constant 0 : index
    %34 = vector.load %arg8[%33, %c1, %c0_25] : memref<18x18x16xf32, #tpu.memory_space<vmem>>, vector<16x16x16xf32>
    %35 = vector.shape_cast %34 : vector<16x16x16xf32> to vector<256x16xf32>
    %36 = arith.mulf %31, %35 : vector<256x16xf32>
    %c0_26 = arith.constant 0 : index
    %c0_27 = arith.constant 0 : index
    %c0_28 = arith.constant 0 : index
    %37 = vector.load %arg7[%c0_26, %c0_27, %c0_28] : memref<1x256x16xf32, #tpu.memory_space<vmem>>, vector<1x256x16xf32>
    %38 = vector.shape_cast %37 : vector<1x256x16xf32> to vector<256x16xf32>
    %39 = arith.addf %38, %36 : vector<256x16xf32>
    %c0_29 = arith.constant 0 : index
    %c0_30 = arith.constant 0 : index
    %c0_31 = arith.constant 0 : index
    %40 = vector.load %arg7[%c0_29, %c0_30, %c0_31] : memref<1x256x16xf32, #tpu.memory_space<vmem>>, vector<1x256x16xf32>
    %41 = vector.shape_cast %40 : vector<1x256x16xf32> to vector<256x16xf32>
    %42 = vector.shape_cast %39 : vector<256x16xf32> to vector<1x256x16xf32>
    tpu.vector_store %arg7[%c0_29, %c0_30, %c0_31], %42 {strides = array<i32>} : memref<1x256x16xf32, #tpu.memory_space<vmem>>, vector<1x256x16xf32>,
    %c0_32 = arith.constant 0 : index
    %c32 = arith.constant 32 : index
    %43 = vector.load %arg9[%c0_32, %c32] : memref<256x144xf32, #tpu.memory_space<vmem>>, vector<256x16xf32>
    %c0_i32_33 = arith.constant 0 : i32
    %44 = arith.addi %1, %c0_i32_33 : i32
    %45 = arith.index_cast %44 : i32 to index
    %c2 = arith.constant 2 : index
    %c0_34 = arith.constant 0 : index
    %46 = vector.load %arg8[%45, %c2, %c0_34] : memref<18x18x16xf32, #tpu.memory_space<vmem>>, vector<16x16x16xf32>
    %47 = vector.shape_cast %46 : vector<16x16x16xf32> to vector<256x16xf32>
    %48 = arith.mulf %43, %47 : vector<256x16xf32>
    %c0_35 = arith.constant 0 : index
    %c0_36 = arith.constant 0 : index
    %c0_37 = arith.constant 0 : index
    %49 = vector.load %arg7[%c0_35, %c0_36, %c0_37] : memref<1x256x16xf32, #tpu.memory_space<vmem>>, vector<1x256x16xf32>
    %50 = vector.shape_cast %49 : vector<1x256x16xf32> to vector<256x16xf32>
    %51 = arith.addf %50, %48 : vector<256x16xf32>
    %c0_38 = arith.constant 0 : index
    %c0_39 = arith.constant 0 : index
    %c0_40 = arith.constant 0 : index
    %52 = vector.load %arg7[%c0_38, %c0_39, %c0_40] : memref<1x256x16xf32, #tpu.memory_space<vmem>>, vector<1x256x16xf32>
    %53 = vector.shape_cast %52 : vector<1x256x16xf32> to vector<256x16xf32>
    %54 = vector.shape_cast %51 : vector<256x16xf32> to vector<1x256x16xf32>
    tpu.vector_store %arg7[%c0_38, %c0_39, %c0_40], %54 {strides = array<i32>} : memref<1x256x16xf32, #tpu.memory_space<vmem>>, vector<1x256x16xf32>,
    %c0_41 = arith.constant 0 : index
    %c48 = arith.constant 48 : index
    %55 = vector.load %arg9[%c0_41, %c48] : memref<256x144xf32, #tpu.memory_space<vmem>>, vector<256x16xf32>
    %c1_i32 = arith.constant 1 : i32
    %56 = arith.addi %1, %c1_i32 : i32
    %57 = arith.index_cast %56 : i32 to index
    %c0_42 = arith.constant 0 : index
    %c0_43 = arith.constant 0 : index
    %58 = vector.load %arg8[%57, %c0_42, %c0_43] : memref<18x18x16xf32, #tpu.memory_space<vmem>>, vector<16x16x16xf32>
    %59 = vector.shape_cast %58 : vector<16x16x16xf32> to vector<256x16xf32>
    %60 = arith.mulf %55, %59 : vector<256x16xf32>
    %c0_44 = arith.constant 0 : index
    %c0_45 = arith.constant 0 : index
    %c0_46 = arith.constant 0 : index
    %61 = vector.load %arg7[%c0_44, %c0_45, %c0_46] : memref<1x256x16xf32, #tpu.memory_space<vmem>>, vector<1x256x16xf32>
    %62 = vector.shape_cast %61 : vector<1x256x16xf32> to vector<256x16xf32>
    %63 = arith.addf %62, %60 : vector<256x16xf32>
    %c0_47 = arith.constant 0 : index
    %c0_48 = arith.constant 0 : index
    %c0_49 = arith.constant 0 : index
    %64 = vector.load %arg7[%c0_47, %c0_48, %c0_49] : memref<1x256x16xf32, #tpu.memory_space<vmem>>, vector<1x256x16xf32>
    %65 = vector.shape_cast %64 : vector<1x256x16xf32> to vector<256x16xf32>
    %66 = vector.shape_cast %63 : vector<256x16xf32> to vector<1x256x16xf32>
    tpu.vector_store %arg7[%c0_47, %c0_48, %c0_49], %66 {strides = array<i32>} : memref<1x256x16xf32, #tpu.memory_space<vmem>>, vector<1x256x16xf32>,
    %c0_50 = arith.constant 0 : index
    %c64 = arith.constant 64 : index
    %67 = vector.load %arg9[%c0_50, %c64] : memref<256x144xf32, #tpu.memory_space<vmem>>, vector<256x16xf32>
    %c1_i32_51 = arith.constant 1 : i32
    %68 = arith.addi %1, %c1_i32_51 : i32
    %69 = arith.index_cast %68 : i32 to index
    %c1_52 = arith.constant 1 : index
    %c0_53 = arith.constant 0 : index
    %70 = vector.load %arg8[%69, %c1_52, %c0_53] : memref<18x18x16xf32, #tpu.memory_space<vmem>>, vector<16x16x16xf32>
    %71 = vector.shape_cast %70 : vector<16x16x16xf32> to vector<256x16xf32>
    %72 = arith.mulf %67, %71 : vector<256x16xf32>
    %c0_54 = arith.constant 0 : index
    %c0_55 = arith.constant 0 : index
    %c0_56 = arith.constant 0 : index
    %73 = vector.load %arg7[%c0_54, %c0_55, %c0_56] : memref<1x256x16xf32, #tpu.memory_space<vmem>>, vector<1x256x16xf32>
    %74 = vector.shape_cast %73 : vector<1x256x16xf32> to vector<256x16xf32>
    %75 = arith.addf %74, %72 : vector<256x16xf32>
    %c0_57 = arith.constant 0 : index
    %c0_58 = arith.constant 0 : index
    %c0_59 = arith.constant 0 : index
    %76 = vector.load %arg7[%c0_57, %c0_58, %c0_59] : memref<1x256x16xf32, #tpu.memory_space<vmem>>, vector<1x256x16xf32>
    %77 = vector.shape_cast %76 : vector<1x256x16xf32> to vector<256x16xf32>
    %78 = vector.shape_cast %75 : vector<256x16xf32> to vector<1x256x16xf32>
    tpu.vector_store %arg7[%c0_57, %c0_58, %c0_59], %78 {strides = array<i32>} : memref<1x256x16xf32, #tpu.memory_space<vmem>>, vector<1x256x16xf32>,
    %c0_60 = arith.constant 0 : index
    %c80 = arith.constant 80 : index
    %79 = vector.load %arg9[%c0_60, %c80] : memref<256x144xf32, #tpu.memory_space<vmem>>, vector<256x16xf32>
    %c1_i32_61 = arith.constant 1 : i32
    %80 = arith.addi %1, %c1_i32_61 : i32
    %81 = arith.index_cast %80 : i32 to index
    %c2_62 = arith.constant 2 : index
    %c0_63 = arith.constant 0 : index
    %82 = vector.load %arg8[%81, %c2_62, %c0_63] : memref<18x18x16xf32, #tpu.memory_space<vmem>>, vector<16x16x16xf32>
    %83 = vector.shape_cast %82 : vector<16x16x16xf32> to vector<256x16xf32>
    %84 = arith.mulf %79, %83 : vector<256x16xf32>
    %c0_64 = arith.constant 0 : index
    %c0_65 = arith.constant 0 : index
    %c0_66 = arith.constant 0 : index
    %85 = vector.load %arg7[%c0_64, %c0_65, %c0_66] : memref<1x256x16xf32, #tpu.memory_space<vmem>>, vector<1x256x16xf32>
    %86 = vector.shape_cast %85 : vector<1x256x16xf32> to vector<256x16xf32>
    %87 = arith.addf %86, %84 : vector<256x16xf32>
    %c0_67 = arith.constant 0 : index
    %c0_68 = arith.constant 0 : index
    %c0_69 = arith.constant 0 : index
    %88 = vector.load %arg7[%c0_67, %c0_68, %c0_69] : memref<1x256x16xf32, #tpu.memory_space<vmem>>, vector<1x256x16xf32>
    %89 = vector.shape_cast %88 : vector<1x256x16xf32> to vector<256x16xf32>
    %90 = vector.shape_cast %87 : vector<256x16xf32> to vector<1x256x16xf32>
    tpu.vector_store %arg7[%c0_67, %c0_68, %c0_69], %90 {strides = array<i32>} : memref<1x256x16xf32, #tpu.memory_space<vmem>>, vector<1x256x16xf32>,
    %c0_70 = arith.constant 0 : index
    %c96 = arith.constant 96 : index
    %91 = vector.load %arg9[%c0_70, %c96] : memref<256x144xf32, #tpu.memory_space<vmem>>, vector<256x16xf32>
    %c2_i32 = arith.constant 2 : i32
    %92 = arith.addi %1, %c2_i32 : i32
    %93 = arith.index_cast %92 : i32 to index
    %c0_71 = arith.constant 0 : index
    %c0_72 = arith.constant 0 : index
    %94 = vector.load %arg8[%93, %c0_71, %c0_72] : memref<18x18x16xf32, #tpu.memory_space<vmem>>, vector<16x16x16xf32>
    %95 = vector.shape_cast %94 : vector<16x16x16xf32> to vector<256x16xf32>
    %96 = arith.mulf %91, %95 : vector<256x16xf32>
    %c0_73 = arith.constant 0 : index
    %c0_74 = arith.constant 0 : index
    %c0_75 = arith.constant 0 : index
    %97 = vector.load %arg7[%c0_73, %c0_74, %c0_75] : memref<1x256x16xf32, #tpu.memory_space<vmem>>, vector<1x256x16xf32>
    %98 = vector.shape_cast %97 : vector<1x256x16xf32> to vector<256x16xf32>
    %99 = arith.addf %98, %96 : vector<256x16xf32>
    %c0_76 = arith.constant 0 : index
    %c0_77 = arith.constant 0 : index
    %c0_78 = arith.constant 0 : index
    %100 = vector.load %arg7[%c0_76, %c0_77, %c0_78] : memref<1x256x16xf32, #tpu.memory_space<vmem>>, vector<1x256x16xf32>
    %101 = vector.shape_cast %100 : vector<1x256x16xf32> to vector<256x16xf32>
    %102 = vector.shape_cast %99 : vector<256x16xf32> to vector<1x256x16xf32>
    tpu.vector_store %arg7[%c0_76, %c0_77, %c0_78], %102 {strides = array<i32>} : memref<1x256x16xf32, #tpu.memory_space<vmem>>, vector<1x256x16xf32>,
    %c0_79 = arith.constant 0 : index
    %c112 = arith.constant 112 : index
    %103 = vector.load %arg9[%c0_79, %c112] : memref<256x144xf32, #tpu.memory_space<vmem>>, vector<256x16xf32>
    %c2_i32_80 = arith.constant 2 : i32
    %104 = arith.addi %1, %c2_i32_80 : i32
    %105 = arith.index_cast %104 : i32 to index
    %c1_81 = arith.constant 1 : index
    %c0_82 = arith.constant 0 : index
    %106 = vector.load %arg8[%105, %c1_81, %c0_82] : memref<18x18x16xf32, #tpu.memory_space<vmem>>, vector<16x16x16xf32>
    %107 = vector.shape_cast %106 : vector<16x16x16xf32> to vector<256x16xf32>
    %108 = arith.mulf %103, %107 : vector<256x16xf32>
    %c0_83 = arith.constant 0 : index
    %c0_84 = arith.constant 0 : index
    %c0_85 = arith.constant 0 : index
    %109 = vector.load %arg7[%c0_83, %c0_84, %c0_85] : memref<1x256x16xf32, #tpu.memory_space<vmem>>, vector<1x256x16xf32>
    %110 = vector.shape_cast %109 : vector<1x256x16xf32> to vector<256x16xf32>
    %111 = arith.addf %110, %108 : vector<256x16xf32>
    %c0_86 = arith.constant 0 : index
    %c0_87 = arith.constant 0 : index
    %c0_88 = arith.constant 0 : index
    %112 = vector.load %arg7[%c0_86, %c0_87, %c0_88] : memref<1x256x16xf32, #tpu.memory_space<vmem>>, vector<1x256x16xf32>
    %113 = vector.shape_cast %112 : vector<1x256x16xf32> to vector<256x16xf32>
    %114 = vector.shape_cast %111 : vector<256x16xf32> to vector<1x256x16xf32>
    tpu.vector_store %arg7[%c0_86, %c0_87, %c0_88], %114 {strides = array<i32>} : memref<1x256x16xf32, #tpu.memory_space<vmem>>, vector<1x256x16xf32>,
    %c0_89 = arith.constant 0 : index
    %c128 = arith.constant 128 : index
    %115 = vector.load %arg9[%c0_89, %c128] : memref<256x144xf32, #tpu.memory_space<vmem>>, vector<256x16xf32>
    %c2_i32_90 = arith.constant 2 : i32
    %116 = arith.addi %1, %c2_i32_90 : i32
    %117 = arith.index_cast %116 : i32 to index
    %c2_91 = arith.constant 2 : index
    %c0_92 = arith.constant 0 : index
    %118 = vector.load %arg8[%117, %c2_91, %c0_92] : memref<18x18x16xf32, #tpu.memory_space<vmem>>, vector<16x16x16xf32>
    %119 = vector.shape_cast %118 : vector<16x16x16xf32> to vector<256x16xf32>
    %120 = arith.mulf %115, %119 : vector<256x16xf32>
    %c0_93 = arith.constant 0 : index
    %c0_94 = arith.constant 0 : index
    %c0_95 = arith.constant 0 : index
    %121 = vector.load %arg7[%c0_93, %c0_94, %c0_95] : memref<1x256x16xf32, #tpu.memory_space<vmem>>, vector<1x256x16xf32>
    %122 = vector.shape_cast %121 : vector<1x256x16xf32> to vector<256x16xf32>
    %123 = arith.addf %122, %120 : vector<256x16xf32>
    %c0_96 = arith.constant 0 : index
    %c0_97 = arith.constant 0 : index
    %c0_98 = arith.constant 0 : index
    %124 = vector.load %arg7[%c0_96, %c0_97, %c0_98] : memref<1x256x16xf32, #tpu.memory_space<vmem>>, vector<1x256x16xf32>
    %125 = vector.shape_cast %124 : vector<1x256x16xf32> to vector<256x16xf32>
    %126 = vector.shape_cast %123 : vector<256x16xf32> to vector<1x256x16xf32>
    tpu.vector_store %arg7[%c0_96, %c0_97, %c0_98], %126 {strides = array<i32>} : memref<1x256x16xf32, #tpu.memory_space<vmem>>, vector<1x256x16xf32>,
    return
  }
  func.func @transform_0(%arg0: i32, %arg1: i32) -> (i32, i32, i32, i32) {
    %c0_i32 = arith.constant 0 : i32
    %c0_i32_0 = arith.constant 0 : i32
    %c0_i32_1 = arith.constant 0 : i32
    %c0_i32_2 = arith.constant 0 : i32
    return %arg0, %c0_i32, %c0_i32_0, %c0_i32_1 : i32, i32, i32, i32
  }
  func.func @transform_1(%arg0: i32, %arg1: i32) -> (i32, i32) {
    %c0_i32 = arith.constant 0 : i32
    %c0_i32_0 = arith.constant 0 : i32
    %c0_i32_1 = arith.constant 0 : i32
    return %c0_i32, %c0_i32_0 : i32, i32
  }
  func.func @transform_2(%arg0: i32, %arg1: i32) -> (i32, i32) {
    %c0_i32 = arith.constant 0 : i32
    %c0_i32_0 = arith.constant 0 : i32
    %c0_i32_1 = arith.constant 0 : i32
    return %c0_i32, %c0_i32_0 : i32, i32
  }
  func.func @transform_3(%arg0: i32, %arg1: i32) -> (i32, i32) {
    %c0_i32 = arith.constant 0 : i32
    %c0_i32_0 = arith.constant 0 : i32
    %c0_i32_1 = arith.constant 0 : i32
    return %c0_i32, %c0_i32_0 : i32, i32
  }
  func.func @transform_4(%arg0: i32, %arg1: i32) -> (i32, i32) {
    %c0_i32 = arith.constant 0 : i32
    %c0_i32_0 = arith.constant 0 : i32
    %c0_i32_1 = arith.constant 0 : i32
    return %c0_i32, %c0_i32_0 : i32, i32
  }
  func.func @transform_5(%arg0: i32, %arg1: i32) -> (i32, i32, i32) {
    %c0_i32 = arith.constant 0 : i32
    %c0_i32_0 = arith.constant 0 : i32
    return %arg0, %arg1, %c0_i32 : i32, i32, i32
  }
}

</mosaic_0001>

<llo_original>
// kernel: tpu_custom_call.1
$region0: #{tpu_custom_call.1}
  #allocation0 [shape = 'u32[]', space=smem, size = 0x4, offset = 0x4, fixed_abs, tag = 'smem constant byte address 0x4 - core index']
  #allocation1 [shape = 'u32[144,128]{1,0:T(1,128)}', space=vmem, size = 0x12000, scoped, tag = 'internal scratch']
  #allocation2 [shape = 'f32[18,18,16]{2,1,0:T(8,128)}', space=vmem, size = 0x36000, scoped, tag = 'scratch operand']
  #allocation3 [shape = 'f32[256,144]{1,0:T(8,128)}', space=vmem, size = 0x40000, scoped, tag = 'scratch operand']
  %s0 = inlined_call_operand.hbm [shape: f32[2,16,16,16], index: 0, kind: input, shape index: {}]
  %s1 = inlined_call_operand.vmem [shape: f32[16,4], index: 1, kind: input, shape index: {}]
  %s2 = inlined_call_operand.vmem [shape: f32[1,4], index: 2, kind: input, shape index: {}]
  %s3 = inlined_call_operand.vmem [shape: f32[4,144], index: 3, kind: input, shape index: {}]
  %s4 = inlined_call_operand.vmem [shape: f32[1,144], index: 4, kind: input, shape index: {}]
  %s5 = inlined_call_operand.vmem [shape: f32[2,256,16], index: 5, kind: output, shape index: {}]
  %s6 = sld [smem:[#allocation0]]
  $region61: #{tpu_custom_call.1} parent=0
    _
  %s8 = ssub.s32 1, %s6
  %s9 = scalar_select 0, %s8, %s6
  $region1: #{tpu_custom_call.1} parent=0
    #allocation4 [shape = 'u8[262144]{0}', space=vmem, size = 0x40000, scoped, tag = 'input window, operand 0']
    #allocation5 [shape = 's32[2]{0}', space=sflag, size = 0x8, scoped, tag = 'scoped memory for tpu_custom_call.1']
    %10 = vsyncpa [#allocation5], 0
    %s11 = scalar_lea.sflag [#allocation5], 1
    %12 = vsyncpa %s11, 0
    loop: start=0, step=1, limit=4
    $region2: #{tpu_custom_call.1} parent=1 // loop_pre_header
      _
    $region3: #{tpu_custom_call.1} parent=1 // loop_header
      %s14 = sphi 0, %s18
      %p15 = scmp.ge.s32.totalorder %s14, 4
      %s21 = sphi 0, %s33
      %s22 = sphi 0, %s29
      %s23 = sphi 0, %s21
      %s24 = sphi 0, %s22
      %s25 = sphi 0, %s23
      %s26 = sphi 0, %s24
      %s36 = sphi 0, %s38
      %s39 = sphi 0, %s36
      %s40 = sphi 0, %s39
      %s56 = sphi 0, %s40
      %s60 = sphi 0, %s60
      %s62 = sphi 0, %s60
      %s63 = sphi 0, %s62
      %s77 = sphi 0, %s63
      %s81 = sphi 0, %s81
      %s83 = sphi 0, %s81
      %s84 = sphi 0, %s83
      %s98 = sphi 0, %s84
      %s102 = sphi 0, %s102
      %s104 = sphi 0, %s102
      %s105 = sphi 0, %s104
      %s119 = sphi 0, %s105
      %s123 = sphi 0, %s123
      %s125 = sphi 0, %s123
      %s126 = sphi 0, %s125
      %s140 = sphi 0, %s126
      %s148 = sphi 0, %s150
      %s151 = sphi 0, %s148
      %s152 = sphi 0, %s151
      %s168 = sphi 0, %s152
    $region4: #{tpu_custom_call.1} parent=1 // loop_header_branch
      %17 = sbr.rel (%p15) target = $region8
    $region5: #{tpu_custom_call.1} parent=1 // loop_body
      %s19 = ssub.s32 %s14, 1
      %s20 = ssub.s32 %s14, 2
      %s27 = sadd.s32 1, %s22
      %p28 = scmp.ge.s32.totalorder %s27, 1
      %s29 = scalar_select %p28, 0, %s27
      %s30 = sadd.s32 1, %s21
      %s31 = scalar_select %p28, %s30, %s21
      %p32 = scmp.ge.s32.totalorder %s31, 2
      %s33 = scalar_select %p32, 0, %s31
      %s34 = ssub.s32 %s21, %s33
      %p35 = scmp.eq.s32.totalorder %s34, 0
      %s37 = sadd.s32 %s36, 1
      %s38 = scalar_select %p35, %s36, %s37
      %p41 = pneg %p35
      %p42 = scmp.eq.s32.totalorder %s14, 1
      %p43 = por %p41, %p42
      %p44 = scmp.ne.s32.totalorder %s36, %s39
      %p45 = scmp.eq.s32.totalorder %s14, 0
      %p46 = por %p44, %p45
      %p47 = scmp.ne.s32.totalorder %s36, %s39
      %p48 = scmp.eq.s32.totalorder %s19, 1
      %p49 = por %p47, %p48
      %p50 = scmp.ne.s32.totalorder %s39, %s40
      %p51 = scmp.eq.s32.totalorder %s19, 0
      %p52 = por %p50, %p51
      %p53 = scmp.ne.s32.totalorder %s39, %s40
      %p54 = scmp.eq.s32.totalorder %s20, 1
      %p55 = por %p53, %p54
      %p57 = scmp.ne.s32.totalorder %s40, %s56
      %p58 = scmp.eq.s32.totalorder %s20, 0
      %p59 = por %p57, %p58
      %s61 = sadd.s32 %s60, 1
      %p64 = scmp.eq.s32.totalorder %s14, 1
      %p65 = scmp.ne.s32.totalorder %s60, %s62
      %p66 = scmp.eq.s32.totalorder %s14, 0
      %p67 = por %p65, %p66
      %p68 = scmp.ne.s32.totalorder %s60, %s62
      %p69 = scmp.eq.s32.totalorder %s19, 1
      %p70 = por %p68, %p69
      %p71 = scmp.ne.s32.totalorder %s62, %s63
      %p72 = scmp.eq.s32.totalorder %s19, 0
      %p73 = por %p71, %p72
      %p74 = scmp.ne.s32.totalorder %s62, %s63
      %p75 = scmp.eq.s32.totalorder %s20, 1
      %p76 = por %p74, %p75
      %p78 = scmp.ne.s32.totalorder %s63, %s77
      %p79 = scmp.eq.s32.totalorder %s20, 0
      %p80 = por %p78, %p79
      %s82 = sadd.s32 %s81, 1
      %p85 = scmp.eq.s32.totalorder %s14, 1
      %p86 = scmp.ne.s32.totalorder %s81, %s83
      %p87 = scmp.eq.s32.totalorder %s14, 0
      %p88 = por %p86, %p87
      %p89 = scmp.ne.s32.totalorder %s81, %s83
      %p90 = scmp.eq.s32.totalorder %s19, 1
      %p91 = por %p89, %p90
      %p92 = scmp.ne.s32.totalorder %s83, %s84
      %p93 = scmp.eq.s32.totalorder %s19, 0
      %p94 = por %p92, %p93
      %p95 = scmp.ne.s32.totalorder %s83, %s84
      %p96 = scmp.eq.s32.totalorder %s20, 1
      %p97 = por %p95, %p96
      %p99 = scmp.ne.s32.totalorder %s84, %s98
      %p100 = scmp.eq.s32.totalorder %s20, 0
      %p101 = por %p99, %p100
      %s103 = sadd.s32 %s102, 1
      %p106 = scmp.eq.s32.totalorder %s14, 1
      %p107 = scmp.ne.s32.totalorder %s102, %s104
      %p108 = scmp.eq.s32.totalorder %s14, 0
      %p109 = por %p107, %p108
      %p110 = scmp.ne.s32.totalorder %s102, %s104
      %p111 = scmp.eq.s32.totalorder %s19, 1
      %p112 = por %p110, %p111
      %p113 = scmp.ne.s32.totalorder %s104, %s105
      %p114 = scmp.eq.s32.totalorder %s19, 0
      %p115 = por %p113, %p114
      %p116 = scmp.ne.s32.totalorder %s104, %s105
      %p117 = scmp.eq.s32.totalorder %s20, 1
      %p118 = por %p116, %p117
      %p120 = scmp.ne.s32.totalorder %s105, %s119
      %p121 = scmp.eq.s32.totalorder %s20, 0
      %p122 = por %p120, %p121
      %s124 = sadd.s32 %s123, 1
      %p127 = scmp.eq.s32.totalorder %s14, 1
      %p128 = scmp.ne.s32.totalorder %s123, %s125
      %p129 = scmp.eq.s32.totalorder %s14, 0
      %p130 = por %p128, %p129
      %p131 = scmp.ne.s32.totalorder %s123, %s125
      %p132 = scmp.eq.s32.totalorder %s19, 1
      %p133 = por %p131, %p132
      %p134 = scmp.ne.s32.totalorder %s125, %s126
      %p135 = scmp.eq.s32.totalorder %s19, 0
      %p136 = por %p134, %p135
      %p137 = scmp.ne.s32.totalorder %s125, %s126
      %p138 = scmp.eq.s32.totalorder %s20, 1
      %p139 = por %p137, %p138
      %p141 = scmp.ne.s32.totalorder %s126, %s140
      %p142 = scmp.eq.s32.totalorder %s20, 0
      %p143 = por %p141, %p142
      %s144 = ssub.s32 %s21, %s33
      %s145 = ssub.s32 %s22, %s29
      %s146 = sor.u32 %s144, %s145
      %p147 = scmp.eq.s32.totalorder %s146, 0
      %s149 = sadd.s32 %s148, 1
      %s150 = scalar_select %p147, %s148, %s149
      %p153 = pneg %p147
      %p154 = scmp.eq.s32.totalorder %s14, 1
      %p155 = por %p153, %p154
      %p156 = scmp.ne.s32.totalorder %s148, %s151
      %p157 = scmp.eq.s32.totalorder %s14, 0
      %p158 = por %p156, %p157
      %p159 = scmp.ne.s32.totalorder %s148, %s151
      %p160 = scmp.eq.s32.totalorder %s19, 1
      %p161 = por %p159, %p160
      %p162 = scmp.ne.s32.totalorder %s151, %s152
      %p163 = scmp.eq.s32.totalorder %s19, 0
      %p164 = por %p162, %p163
      %p165 = scmp.ne.s32.totalorder %s151, %s152
      %p166 = scmp.eq.s32.totalorder %s20, 1
      %p167 = por %p165, %p166
      %p169 = scmp.ne.s32.totalorder %s152, %s168
      %p170 = scmp.eq.s32.totalorder %s20, 0
      %p171 = por %p169, %p170
      %p172 = scmp.le.s32.totalorder 1, %s14
      %p173 = scmp.lt.s32.totalorder %s14, 3
      %p174 = pnand %p172, %p173
      %p175 = pneg %p174
      // Predicated region
      $region9: #{tpu_custom_call.1} parent=5 // pred_check
        _
      $region10: #{tpu_custom_call.1} parent=5 // pred_check_branch
        %177 = sbr.rel (%p174) target = $region12
      $region11: #{tpu_custom_call.1} parent=5 // pred_region
        %s178 = ssub.s32 %s14, 1
        // Predicated region
        $region13: #{tpu_custom_call.1} parent=11 // pred_check
          %p179 = pneg %p73
        $region14: #{tpu_custom_call.1} parent=11 // pred_check_branch
          %181 = sbr.rel (%p179) target = $region16
        $region15: #{tpu_custom_call.1} parent=11 // pred_region
          _
        $region16: #{tpu_custom_call.1} parent=11 // pred_fallthru
          _
        // Predicated region
        $region17: #{tpu_custom_call.1} parent=11 // pred_check
          %p182 = pneg %p94
        $region18: #{tpu_custom_call.1} parent=11 // pred_check_branch
          %184 = sbr.rel (%p182) target = $region20
        $region19: #{tpu_custom_call.1} parent=11 // pred_region
          _
        $region20: #{tpu_custom_call.1} parent=11 // pred_fallthru
          _
        // Predicated region
        $region21: #{tpu_custom_call.1} parent=11 // pred_check
          %p185 = pneg %p115
        $region22: #{tpu_custom_call.1} parent=11 // pred_check_branch
          %187 = sbr.rel (%p185) target = $region24
        $region23: #{tpu_custom_call.1} parent=11 // pred_region
          _
        $region24: #{tpu_custom_call.1} parent=11 // pred_fallthru
          _
        // Predicated region
        $region25: #{tpu_custom_call.1} parent=11 // pred_check
          %p188 = pneg %p136
        $region26: #{tpu_custom_call.1} parent=11 // pred_check_branch
          %190 = sbr.rel (%p188) target = $region28
        $region27: #{tpu_custom_call.1} parent=11 // pred_region
          _
        $region28: #{tpu_custom_call.1} parent=11 // pred_fallthru
          _
      $region12: #{tpu_custom_call.1} parent=5 // pred_fallthru
        _
      %p191 = scmp.lt.s32.totalorder %s14, 2
      // Predicated region
      $region29: #{tpu_custom_call.1} parent=5 // pred_check
        %p192 = pneg %p191
      $region30: #{tpu_custom_call.1} parent=5 // pred_check_branch
        %194 = sbr.rel (%p192) target = $region32
      $region31: #{tpu_custom_call.1} parent=5 // pred_region
        // Predicated region
        $region33: #{tpu_custom_call.1} parent=31 // pred_check
          %p195 = pneg %p46
        $region34: #{tpu_custom_call.1} parent=31 // pred_check_branch
          %197 = sbr.rel (%p195) target = $region36
        $region35: #{tpu_custom_call.1} parent=31 // pred_region
          %s198 = sand.u32 %s36, 1
          %s199 = scalar_lea.sflag [#allocation5], %s198
          %s200 = sand.u32 %s36, 1
          %s201 = smul.addr %s200, 256
          %s202 = scalar_lea.vmem [#allocation4], %s201
          %s204 = ssub.s32 4096, 4096
          %205 = vsyncadd %s199, %s204
          %s206 = smul.addr %s21, 32
          %s207 = smul.addr %s206, 128
          %s208 = scalar_lea.hbm %s0, %s207
          %s209 = sshll.u32 %s202, 4
          %s210 = int_to_ptr.vmem [resolvable:$true] %s209
          %215 = dma.hbm_to_vmem [thread:$0]  %s208, 4096, %s210, %s199, 128, 128, 8
        $region36: #{tpu_custom_call.1} parent=31 // pred_fallthru
          _
      $region32: #{tpu_custom_call.1} parent=5 // pred_fallthru
        _
      %p216 = scmp.le.s32.totalorder 1, %s14
      %p217 = scmp.lt.s32.totalorder %s14, 3
      %p218 = pnand %p216, %p217
      %p219 = pneg %p218
      // Predicated region
      $region37: #{tpu_custom_call.1} parent=5 // pred_check
        _
      $region38: #{tpu_custom_call.1} parent=5 // pred_check_branch
        %221 = sbr.rel (%p218) target = $region40
      $region39: #{tpu_custom_call.1} parent=5 // pred_region
        %s222 = ssub.s32 %s14, 1
        %s223 = sand.u32 %s39, 1
        %s224 = scalar_lea.sflag [#allocation5], %s223
        %s225 = sand.u32 %s39, 1
        %s226 = smul.addr %s225, 256
        %s227 = scalar_lea.vmem [#allocation4], %s226
        // Predicated region
        $region41: #{tpu_custom_call.1} parent=39 // pred_check
          %p228 = pneg %p52
        $region42: #{tpu_custom_call.1} parent=39 // pred_check_branch
          %230 = sbr.rel (%p228) target = $region44
        $region43: #{tpu_custom_call.1} parent=39 // pred_region
          %231 = dma.done %s224, 4096
        $region44: #{tpu_custom_call.1} parent=39 // pred_fallthru
          _
        %s232 = sand.u32 %s39, 1
        %s233 = scalar_lea.sflag [#allocation5], %s232
        %s234 = sand.u32 %s39, 1
        %s235 = smul.addr %s234, 256
        %s236 = scalar_lea.vmem [#allocation4], %s235
        %p237 = pneg %p52
        %p238 = pneg %p49
        %p239 = pneg %p73
        %p240 = pneg %p70
        %p241 = pneg %p94
        %p242 = pneg %p91
        %p243 = pneg %p115
        %p244 = pneg %p112
        %p245 = pneg %p136
        %p246 = pneg %p133
        %p247 = pneg %p164
        %p248 = pneg %p161
        %s249 = smul.u32 32, %s24
        %p250 = scmp.lt.s32.totalorder %s23, 1
        %s251 = scalar_select %p250, %s23, 1
        %p252 = scmp.lt.s32.totalorder %s249, 31
        %s253 = scalar_select %p252, %s249, 31
        %s254 = smul.addr %s251, 32
        %s255 = sadd.s32 %s253, %s254
        %s256 = smul.addr %s255, 8
        %s257 = scalar_lea.vmem %s5, %s256
        %s258 = smul.u32 32, %s24
        %p259 = scmp.lt.s32.totalorder %s23, 1
        %s260 = scalar_select %p259, %s23, 1
        %p261 = scmp.lt.s32.totalorder %s258, 31
        %s262 = scalar_select %p261, %s258, 31
        %s263 = smul.addr %s260, 32
        %s264 = sadd.s32 %s262, %s263
        %s265 = smul.addr %s264, 8
        %s266 = scalar_lea.vmem %s5, %s265
        %s267 = smul.u32 32, %s24
        %s268 = smul.u32 %s24, 16
        %p269 = scmp.eq.s32.totalorder %s24, 0
        // Predicated region
        $region45: #{tpu_custom_call.1} parent=39 // pred_check
          %p270 = pneg %p269
        $region46: #{tpu_custom_call.1} parent=39 // pred_check_branch
          %272 = sbr.rel (%p270) target = $region48
        $region47: #{tpu_custom_call.1} parent=39 // pred_region
          %vm273 = vcmask 130048
          %274 = vst.msk [vmem:[#allocation2] sm:$0xff] %vm273, 0.0
          %275 = vst.msk [vmem:[#allocation2 + $0x8] sm:$0xff] %vm273, 0.0
          %vm276 = vcmask 123904
          %277 = vst.msk [vmem:[#allocation2 + $0x10] sm:$0x3] %vm276, 0.0
          %s278 = scalar_lea.vmem [#allocation2], 408
          %279 = vst.msk [vmem:[%s278] sm:$0xff] %vm273, 0.0
          %280 = vst.msk [vmem:[%s278 + $0x8] sm:$0xff] %vm273, 0.0
          %281 = vst.msk [vmem:[%s278 + $0x10] sm:$0x3] %vm276, 0.0
          %s282 = scalar_lea.vmem [#allocation2], 24
          %vm283 = vcmask 122880
          %284 = vst.msk [vmem:[%s282] sm:$0x1] %vm283, 0.0
          %285 = vst.msk [vmem:[%s282 + $0x18] sm:$0x1] %vm283, 0.0
          %286 = vst.msk [vmem:[%s282 + $0x30] sm:$0x1] %vm283, 0.0
          %287 = vst.msk [vmem:[%s282 + $0x48] sm:$0x1] %vm283, 0.0
          %288 = vst.msk [vmem:[%s282 + $0x60] sm:$0x1] %vm283, 0.0
          %289 = vst.msk [vmem:[%s282 + $0x78] sm:$0x1] %vm283, 0.0
          %290 = vst.msk [vmem:[%s282 + $0x90] sm:$0x1] %vm283, 0.0
          %291 = vst.msk [vmem:[%s282 + $0xa8] sm:$0x1] %vm283, 0.0
          %292 = vst.msk [vmem:[%s282 + $0xc0] sm:$0x1] %vm283, 0.0
          %293 = vst.msk [vmem:[%s282 + $0xd8] sm:$0x1] %vm283, 0.0
          %294 = vst.msk [vmem:[%s282 + $0xf0] sm:$0x1] %vm283, 0.0
          %295 = vst.msk [vmem:[%s282 + $0x108] sm:$0x1] %vm283, 0.0
          %296 = vst.msk [vmem:[%s282 + $0x120] sm:$0x1] %vm283, 0.0
          %297 = vst.msk [vmem:[%s282 + $0x138] sm:$0x1] %vm283, 0.0
          %298 = vst.msk [vmem:[%s282 + $0x150] sm:$0x1] %vm283, 0.0
          %299 = vst.msk [vmem:[%s282 + $0x168] sm:$0x1] %vm283, 0.0
          %300 = vst.msk [vmem:[%s282 + $0x11] sm:$0x1] %vm283, 0.0
          %301 = vst.msk [vmem:[%s282 + $0x29] sm:$0x1] %vm283, 0.0
          %302 = vst.msk [vmem:[%s282 + $0x41] sm:$0x1] %vm283, 0.0
          %303 = vst.msk [vmem:[%s282 + $0x59] sm:$0x1] %vm283, 0.0
          %304 = vst.msk [vmem:[%s282 + $0x71] sm:$0x1] %vm283, 0.0
          %305 = vst.msk [vmem:[%s282 + $0x89] sm:$0x1] %vm283, 0.0
          %306 = vst.msk [vmem:[%s282 + $0xa1] sm:$0x1] %vm283, 0.0
          %307 = vst.msk [vmem:[%s282 + $0xb9] sm:$0x1] %vm283, 0.0
          %308 = vst.msk [vmem:[%s282 + $0xd1] sm:$0x1] %vm283, 0.0
          %309 = vst.msk [vmem:[%s282 + $0xe9] sm:$0x1] %vm283, 0.0
          %310 = vst.msk [vmem:[%s282 + $0x101] sm:$0x1] %vm283, 0.0
          %311 = vst.msk [vmem:[%s282 + $0x119] sm:$0x1] %vm283, 0.0
          %312 = vst.msk [vmem:[%s282 + $0x131] sm:$0x1] %vm283, 0.0
          %313 = vst.msk [vmem:[%s282 + $0x149] sm:$0x1] %vm283, 0.0
          %314 = vst.msk [vmem:[%s282 + $0x161] sm:$0x1] %vm283, 0.0
          %315 = vst.msk [vmem:[%s282 + $0x179] sm:$0x1] %vm283, 0.0
          %v316 = vld [vmem:[%s227] sm:$0xff]
          %v317 = vld [vmem:[%s227 + $0x8] sm:$0xff]
          %v318 = vld [vmem:[%s227 + $0x10] sm:$0xff]
          %v319 = vld [vmem:[%s227 + $0x18] sm:$0xff]
          %v320 = vld [vmem:[%s227 + $0x20] sm:$0xff]
          %v321 = vld [vmem:[%s227 + $0x28] sm:$0xff]
          %v322 = vld [vmem:[%s227 + $0x30] sm:$0xff]
          %v323 = vld [vmem:[%s227 + $0x38] sm:$0xff]
          %v324 = vld [vmem:[%s227 + $0x40] sm:$0xff]
          %v325 = vld [vmem:[%s227 + $0x48] sm:$0xff]
          %v326 = vld [vmem:[%s227 + $0x50] sm:$0xff]
          %v327 = vld [vmem:[%s227 + $0x58] sm:$0xff]
          %v328 = vld [vmem:[%s227 + $0x60] sm:$0xff]
          %v329 = vld [vmem:[%s227 + $0x68] sm:$0xff]
          %v330 = vld [vmem:[%s227 + $0x70] sm:$0xff]
          %v331 = vld [vmem:[%s227 + $0x78] sm:$0xff]
          %v332 = vld [vmem:[%s227 + $0x80] sm:$0xff]
          %v333 = vld [vmem:[%s227 + $0x88] sm:$0xff]
          %v334 = vld [vmem:[%s227 + $0x90] sm:$0xff]
          %v335 = vld [vmem:[%s227 + $0x98] sm:$0xff]
          %v336 = vld [vmem:[%s227 + $0xa0] sm:$0xff]
          %v337 = vld [vmem:[%s227 + $0xa8] sm:$0xff]
          %v338 = vld [vmem:[%s227 + $0xb0] sm:$0xff]
          %v339 = vld [vmem:[%s227 + $0xb8] sm:$0xff]
          %v340 = vld [vmem:[%s227 + $0xc0] sm:$0xff]
          %v341 = vld [vmem:[%s227 + $0xc8] sm:$0xff]
          %v342 = vld [vmem:[%s227 + $0xd0] sm:$0xff]
          %v343 = vld [vmem:[%s227 + $0xd8] sm:$0xff]
          %v344 = vld [vmem:[%s227 + $0xe0] sm:$0xff]
          %v345 = vld [vmem:[%s227 + $0xe8] sm:$0xff]
          %v346 = vld [vmem:[%s227 + $0xf0] sm:$0xff]
          %v347 = vld [vmem:[%s227 + $0xf8] sm:$0xff]
          %348 = vst.msk [vmem:[%s282 + $0x1] sm:$0xff] %vm273, %v316
          %349 = vst.msk [vmem:[%s282 + $0x9] sm:$0xff] %vm273, %v317
          %350 = vst.msk [vmem:[%s282 + $0x19] sm:$0xff] %vm273, %v318
          %351 = vst.msk [vmem:[%s282 + $0x21] sm:$0xff] %vm273, %v319
          %352 = vst.msk [vmem:[%s282 + $0x31] sm:$0xff] %vm273, %v320
          %353 = vst.msk [vmem:[%s282 + $0x39] sm:$0xff] %vm273, %v321
          %354 = vst.msk [vmem:[%s282 + $0x49] sm:$0xff] %vm273, %v322
          %355 = vst.msk [vmem:[%s282 + $0x51] sm:$0xff] %vm273, %v323
          %356 = vst.msk [vmem:[%s282 + $0x61] sm:$0xff] %vm273, %v324
          %357 = vst.msk [vmem:[%s282 + $0x69] sm:$0xff] %vm273, %v325
          %358 = vst.msk [vmem:[%s282 + $0x79] sm:$0xff] %vm273, %v326
          %359 = vst.msk [vmem:[%s282 + $0x81] sm:$0xff] %vm273, %v327
          %360 = vst.msk [vmem:[%s282 + $0x91] sm:$0xff] %vm273, %v328
          %361 = vst.msk [vmem:[%s282 + $0x99] sm:$0xff] %vm273, %v329
          %362 = vst.msk [vmem:[%s282 + $0xa9] sm:$0xff] %vm273, %v330
          %363 = vst.msk [vmem:[%s282 + $0xb1] sm:$0xff] %vm273, %v331
          %364 = vst.msk [vmem:[%s282 + $0xc1] sm:$0xff] %vm273, %v332
          %365 = vst.msk [vmem:[%s282 + $0xc9] sm:$0xff] %vm273, %v333
          %366 = vst.msk [vmem:[%s282 + $0xd9] sm:$0xff] %vm273, %v334
          %367 = vst.msk [vmem:[%s282 + $0xe1] sm:$0xff] %vm273, %v335
          %368 = vst.msk [vmem:[%s282 + $0xf1] sm:$0xff] %vm273, %v336
          %369 = vst.msk [vmem:[%s282 + $0xf9] sm:$0xff] %vm273, %v337
          %370 = vst.msk [vmem:[%s282 + $0x109] sm:$0xff] %vm273, %v338
          %371 = vst.msk [vmem:[%s282 + $0x111] sm:$0xff] %vm273, %v339
          %372 = vst.msk [vmem:[%s282 + $0x121] sm:$0xff] %vm273, %v340
          %373 = vst.msk [vmem:[%s282 + $0x129] sm:$0xff] %vm273, %v341
          %374 = vst.msk [vmem:[%s282 + $0x139] sm:$0xff] %vm273, %v342
          %375 = vst.msk [vmem:[%s282 + $0x141] sm:$0xff] %vm273, %v343
          %376 = vst.msk [vmem:[%s282 + $0x151] sm:$0xff] %vm273, %v344
          %377 = vst.msk [vmem:[%s282 + $0x159] sm:$0xff] %vm273, %v345
          %378 = vst.msk [vmem:[%s282 + $0x169] sm:$0xff] %vm273, %v346
          %379 = vst.msk [vmem:[%s282 + $0x171] sm:$0xff] %vm273, %v347
        $region48: #{tpu_custom_call.1} parent=39 // pred_fallthru
          _
        %s380 = smul.u32 %s268, 16
        %s381 = scalar_lea.vmem %s227, %s380 [#allocation4]
        %v382 = vld [vmem:[%s381] sm:$0xff]
        %v383 = vld [vmem:[%s381 + $0x8] sm:$0xff]
        %v384 = vld [vmem:[%s381 + $0x10] sm:$0xff]
        %v385 = vld [vmem:[%s381 + $0x18] sm:$0xff]
        %v386 = vld [vmem:[%s381 + $0x20] sm:$0xff]
        %v387 = vld [vmem:[%s381 + $0x28] sm:$0xff]
        %v388 = vld [vmem:[%s381 + $0x30] sm:$0xff]
        %v389 = vld [vmem:[%s381 + $0x38] sm:$0xff]
        %v390 = vld [vmem:[%s381 + $0x40] sm:$0xff]
        %v391 = vld [vmem:[%s381 + $0x48] sm:$0xff]
        %v392 = vld [vmem:[%s381 + $0x50] sm:$0xff]
        %v393 = vld [vmem:[%s381 + $0x58] sm:$0xff]
        %v394 = vld [vmem:[%s381 + $0x60] sm:$0xff]
        %v395 = vld [vmem:[%s381 + $0x68] sm:$0xff]
        %v396 = vld [vmem:[%s381 + $0x70] sm:$0xff]
        %v397 = vld [vmem:[%s381 + $0x78] sm:$0xff]
        %v398 = vld [vmem:[%s381 + $0x80] sm:$0xff]
        %v399 = vld [vmem:[%s381 + $0x88] sm:$0xff]
        %v400 = vld [vmem:[%s381 + $0x90] sm:$0xff]
        %v401 = vld [vmem:[%s381 + $0x98] sm:$0xff]
        %v402 = vld [vmem:[%s381 + $0xa0] sm:$0xff]
        %v403 = vld [vmem:[%s381 + $0xa8] sm:$0xff]
        %v404 = vld [vmem:[%s381 + $0xb0] sm:$0xff]
        %v405 = vld [vmem:[%s381 + $0xb8] sm:$0xff]
        %v406 = vld [vmem:[%s381 + $0xc0] sm:$0xff]
        %v407 = vld [vmem:[%s381 + $0xc8] sm:$0xff]
        %v408 = vld [vmem:[%s381 + $0xd0] sm:$0xff]
        %v409 = vld [vmem:[%s381 + $0xd8] sm:$0xff]
        %v410 = vld [vmem:[%s381 + $0xe0] sm:$0xff]
        %v411 = vld [vmem:[%s381 + $0xe8] sm:$0xff]
        %v412 = vld [vmem:[%s381 + $0xf0] sm:$0xff]
        %v413 = vld [vmem:[%s381 + $0xf8] sm:$0xff]
        %v414 = vld [vmem:[%s1] sm:$0xff]
        %v415 = vld [vmem:[%s1 + $0x8] sm:$0xff]
        %v416 = vld [vmem:[%s2] sm:$0x1]
        %v418 = vlaneseq
        %v419 = vshrl.u32 %v418, 7
        %v420 = vsub.s32 0, %v419
        %v421 = vrot.slane %v416, %v420
        %vm423 = vcmask 130048
        %v425 = vsel %vm423, %v382, 0
        %v428 = vsel %vm423, %v383, 0
        %v431 = vsel %vm423, %v384, 0
        %v434 = vsel %vm423, %v385, 0
        %v437 = vsel %vm423, %v386, 0
        %v440 = vsel %vm423, %v387, 0
        %v443 = vsel %vm423, %v388, 0
        %v446 = vsel %vm423, %v389, 0
        %v449 = vsel %vm423, %v390, 0
        %v452 = vsel %vm423, %v391, 0
        %v455 = vsel %vm423, %v392, 0
        %v458 = vsel %vm423, %v393, 0
        %v461 = vsel %vm423, %v394, 0
        %v464 = vsel %vm423, %v395, 0
        %v467 = vsel %vm423, %v396, 0
        %v470 = vsel %vm423, %v397, 0
        %v473 = vsel %vm423, %v398, 0
        %v476 = vsel %vm423, %v399, 0
        %v479 = vsel %vm423, %v400, 0
        %v482 = vsel %vm423, %v401, 0
        %v485 = vsel %vm423, %v402, 0
        %v488 = vsel %vm423, %v403, 0
        %v491 = vsel %vm423, %v404, 0
        %v494 = vsel %vm423, %v405, 0
        %v497 = vsel %vm423, %v406, 0
        %v500 = vsel %vm423, %v407, 0
        %v503 = vsel %vm423, %v408, 0
        %v506 = vsel %vm423, %v409, 0
        %v509 = vsel %vm423, %v410, 0
        %v512 = vsel %vm423, %v411, 0
        %v515 = vsel %vm423, %v412, 0
        %v518 = vsel %vm423, %v413, 0
        %520 = vmatprep.subr.mxu0 0.0
        %521 = vmatpush1.msra.mxu0 %v414
        %522 = vmatprep.subr.mxu0 0.0
        %523 = vmatpush1.msra.mxu0 %v415
        %524 = vmatprep.subr.mxu0 0.0
        %525 = vmatpush1.msra.mxu0 0.0
        %526 = vmatprep.subr.mxu0 0.0
        %527 = vmatpush1.msra.mxu0 0.0
        %528 = vmatprep.subr.mxu0 0.0
        %529 = vmatpush1.msra.mxu0 0.0
        %530 = vmatprep.subr.mxu0 0.0
        %531 = vmatpush1.msra.mxu0 0.0
        %532 = vmatprep.subr.mxu0 0.0
        %533 = vmatpush1.msra.mxu0 0.0
        %534 = vmatprep.subr.mxu0 0.0
        %535 = vmatpush1.msra.mxu0 0.0
        %536 = vmatprep.subr.mxu0 0.0
        %537 = vmatpush1.msra.mxu0 0.0
        %538 = vmatprep.subr.mxu0 0.0
        %539 = vmatpush1.msra.mxu0 0.0
        %540 = vmatprep.subr.mxu0 0.0
        %541 = vmatpush1.msra.mxu0 0.0
        %542 = vmatprep.subr.mxu0 0.0
        %543 = vmatpush1.msra.mxu0 0.0
        %544 = vmatprep.subr.mxu0 0.0
        %545 = vmatpush1.msra.mxu0 0.0
        %546 = vmatprep.subr.mxu0 0.0
        %547 = vmatpush1.msra.mxu0 0.0
        %548 = vmatprep.subr.mxu0 0.0
        %549 = vmatpush1.msra.mxu0 0.0
        %550 = vmatprep.subr.mxu0 0.0
        %551 = vmatpush1.msra.mxu0 0.0
        %552 = vmatprep.subr.mxu0 0.0
        %553 = vmatpush1.msra.mxu0 0.0
        %554 = vmatprep.subr.mxu0 0.0
        %555 = vmatpush1.msra.mxu0 0.0
        %556 = vmatprep.subr.mxu0 0.0
        %557 = vmatpush1.msra.mxu0 0.0
        %558 = vmatprep.subr.mxu0 0.0
        %559 = vmatpush1.msra.mxu0 0.0
        %560 = vmatprep.subr.mxu0 0.0
        %561 = vmatpush1.msra.mxu0 0.0
        %562 = vmatprep.subr.mxu0 0.0
        %563 = vmatpush1.msra.mxu0 0.0
        %564 = vmatprep.subr.mxu0 0.0
        %565 = vmatpush1.msra.mxu0 0.0
        %566 = vmatprep.subr.mxu0 0.0
        %567 = vmatpush1.msra.mxu0 0.0
        %568 = vmatprep.subr.mxu0 0.0
        %569 = vmatpush1.msra.mxu0 0.0
        %570 = vmatprep.subr.mxu0 0.0
        %571 = vmatpush1.msra.mxu0 0.0
        %572 = vmatprep.subr.mxu0 0.0
        %573 = vmatpush1.msra.mxu0 0.0
        %574 = vmatprep.subr.mxu0 0.0
        %575 = vmatpush1.msra.mxu0 0.0
        %576 = vmatprep.subr.mxu0 0.0
        %577 = vmatpush1.msra.mxu0 0.0
        %578 = vmatprep.subr.mxu0 0.0
        %579 = vmatpush1.msra.mxu0 0.0
        %580 = vmatprep.subr.mxu0 0.0
        %581 = vmatpush1.msra.mxu0 0.0
        %582 = vmatprep.subr.mxu0 0.0
        %583 = vmatpush1.msra.mxu0 0.0
        %584 = vmatprep.mubr.f32.mxu0 0.0
        %585 = vmatmul.mubr.f32.gmra.mrb[0].mxu0 %v425
        %v586 = vpop.f32.mrb[0].mxu0
        %v587 = vadd.f32 %v421, %v586
        %v588 = vpop.f32.mrb[0].mxu0
        %589 = vmatprep.mubr.f32.mxu0 0.0
        %590 = vmatmul.mubr.f32.gmra.mrb[0].mxu0 %v428
        %v591 = vpop.f32.mrb[0].mxu0
        %v592 = vadd.f32 %v421, %v591
        %v593 = vpop.f32.mrb[0].mxu0
        %594 = vmatprep.mubr.f32.mxu0 0.0
        %595 = vmatmul.mubr.f32.gmra.mrb[0].mxu0 %v431
        %v596 = vpop.f32.mrb[0].mxu0
        %v597 = vadd.f32 %v421, %v596
        %v598 = vpop.f32.mrb[0].mxu0
        %599 = vmatprep.mubr.f32.mxu0 0.0
        %600 = vmatmul.mubr.f32.gmra.mrb[0].mxu0 %v434
        %v601 = vpop.f32.mrb[0].mxu0
        %v602 = vadd.f32 %v421, %v601
        %v603 = vpop.f32.mrb[0].mxu0
        %604 = vmatprep.mubr.f32.mxu0 0.0
        %605 = vmatmul.mubr.f32.gmra.mrb[0].mxu0 %v437
        %v606 = vpop.f32.mrb[0].mxu0
        %v607 = vadd.f32 %v421, %v606
        %v608 = vpop.f32.mrb[0].mxu0
        %609 = vmatprep.mubr.f32.mxu0 0.0
        %610 = vmatmul.mubr.f32.gmra.mrb[0].mxu0 %v440
        %v611 = vpop.f32.mrb[0].mxu0
        %v612 = vadd.f32 %v421, %v611
        %v613 = vpop.f32.mrb[0].mxu0
        %614 = vmatprep.mubr.f32.mxu0 0.0
        %615 = vmatmul.mubr.f32.gmra.mrb[0].mxu0 %v443
        %v616 = vpop.f32.mrb[0].mxu0
        %v617 = vadd.f32 %v421, %v616
        %v618 = vpop.f32.mrb[0].mxu0
        %619 = vmatprep.mubr.f32.mxu0 0.0
        %620 = vmatmul.mubr.f32.gmra.mrb[0].mxu0 %v446
        %v621 = vpop.f32.mrb[0].mxu0
        %v622 = vadd.f32 %v421, %v621
        %v623 = vpop.f32.mrb[0].mxu0
        %624 = vmatprep.mubr.f32.mxu0 0.0
        %625 = vmatmul.mubr.f32.gmra.mrb[0].mxu0 %v449
        %v626 = vpop.f32.mrb[0].mxu0
        %v627 = vadd.f32 %v421, %v626
        %v628 = vpop.f32.mrb[0].mxu0
        %629 = vmatprep.mubr.f32.mxu0 0.0
        %630 = vmatmul.mubr.f32.gmra.mrb[0].mxu0 %v452
        %v631 = vpop.f32.mrb[0].mxu0
        %v632 = vadd.f32 %v421, %v631
        %v633 = vpop.f32.mrb[0].mxu0
        %634 = vmatprep.mubr.f32.mxu0 0.0
        %635 = vmatmul.mubr.f32.gmra.mrb[0].mxu0 %v455
        %v636 = vpop.f32.mrb[0].mxu0
        %v637 = vadd.f32 %v421, %v636
        %v638 = vpop.f32.mrb[0].mxu0
        %639 = vmatprep.mubr.f32.mxu0 0.0
        %640 = vmatmul.mubr.f32.gmra.mrb[0].mxu0 %v458
        %v641 = vpop.f32.mrb[0].mxu0
        %v642 = vadd.f32 %v421, %v641
        %v643 = vpop.f32.mrb[0].mxu0
        %644 = vmatprep.mubr.f32.mxu0 0.0
        %645 = vmatmul.mubr.f32.gmra.mrb[0].mxu0 %v461
        %v646 = vpop.f32.mrb[0].mxu0
        %v647 = vadd.f32 %v421, %v646
        %v648 = vpop.f32.mrb[0].mxu0
        %649 = vmatprep.mubr.f32.mxu0 0.0
        %650 = vmatmul.mubr.f32.gmra.mrb[0].mxu0 %v464
        %v651 = vpop.f32.mrb[0].mxu0
        %v652 = vadd.f32 %v421, %v651
        %v653 = vpop.f32.mrb[0].mxu0
        %654 = vmatprep.mubr.f32.mxu0 0.0
        %655 = vmatmul.mubr.f32.gmra.mrb[0].mxu0 %v467
        %v656 = vpop.f32.mrb[0].mxu0
        %v657 = vadd.f32 %v421, %v656
        %v658 = vpop.f32.mrb[0].mxu0
        %659 = vmatprep.mubr.f32.mxu0 0.0
        %660 = vmatmul.mubr.f32.gmra.mrb[0].mxu0 %v470
        %v661 = vpop.f32.mrb[0].mxu0
        %v662 = vadd.f32 %v421, %v661
        %v663 = vpop.f32.mrb[0].mxu0
        %664 = vmatprep.mubr.f32.mxu0 0.0
        %665 = vmatmul.mubr.f32.gmra.mrb[0].mxu0 %v473
        %v666 = vpop.f32.mrb[0].mxu0
        %v667 = vadd.f32 %v421, %v666
        %v668 = vpop.f32.mrb[0].mxu0
        %669 = vmatprep.mubr.f32.mxu0 0.0
        %670 = vmatmul.mubr.f32.gmra.mrb[0].mxu0 %v476
        %v671 = vpop.f32.mrb[0].mxu0
        %v672 = vadd.f32 %v421, %v671
        %v673 = vpop.f32.mrb[0].mxu0
        %674 = vmatprep.mubr.f32.mxu0 0.0
        %675 = vmatmul.mubr.f32.gmra.mrb[0].mxu0 %v479
        %v676 = vpop.f32.mrb[0].mxu0
        %v677 = vadd.f32 %v421, %v676
        %v678 = vpop.f32.mrb[0].mxu0
        %679 = vmatprep.mubr.f32.mxu0 0.0
        %680 = vmatmul.mubr.f32.gmra.mrb[0].mxu0 %v482
        %v681 = vpop.f32.mrb[0].mxu0
        %v682 = vadd.f32 %v421, %v681
        %v683 = vpop.f32.mrb[0].mxu0
        %684 = vmatprep.mubr.f32.mxu0 0.0
        %685 = vmatmul.mubr.f32.gmra.mrb[0].mxu0 %v485
        %v686 = vpop.f32.mrb[0].mxu0
        %v687 = vadd.f32 %v421, %v686
        %v688 = vpop.f32.mrb[0].mxu0
        %689 = vmatprep.mubr.f32.mxu0 0.0
        %690 = vmatmul.mubr.f32.gmra.mrb[0].mxu0 %v488
        %v691 = vpop.f32.mrb[0].mxu0
        %v692 = vadd.f32 %v421, %v691
        %v693 = vpop.f32.mrb[0].mxu0
        %694 = vmatprep.mubr.f32.mxu0 0.0
        %695 = vmatmul.mubr.f32.gmra.mrb[0].mxu0 %v491
        %v696 = vpop.f32.mrb[0].mxu0
        %v697 = vadd.f32 %v421, %v696
        %v698 = vpop.f32.mrb[0].mxu0
        %699 = vmatprep.mubr.f32.mxu0 0.0
        %700 = vmatmul.mubr.f32.gmra.mrb[0].mxu0 %v494
        %v701 = vpop.f32.mrb[0].mxu0
        %v702 = vadd.f32 %v421, %v701
        %v703 = vpop.f32.mrb[0].mxu0
        %704 = vmatprep.mubr.f32.mxu0 0.0
        %705 = vmatmul.mubr.f32.gmra.mrb[0].mxu0 %v497
        %v706 = vpop.f32.mrb[0].mxu0
        %v707 = vadd.f32 %v421, %v706
        %v708 = vpop.f32.mrb[0].mxu0
        %709 = vmatprep.mubr.f32.mxu0 0.0
        %710 = vmatmul.mubr.f32.gmra.mrb[0].mxu0 %v500
        %v711 = vpop.f32.mrb[0].mxu0
        %v712 = vadd.f32 %v421, %v711
        %v713 = vpop.f32.mrb[0].mxu0
        %714 = vmatprep.mubr.f32.mxu0 0.0
        %715 = vmatmul.mubr.f32.gmra.mrb[0].mxu0 %v503
        %v716 = vpop.f32.mrb[0].mxu0
        %v717 = vadd.f32 %v421, %v716
        %v718 = vpop.f32.mrb[0].mxu0
        %719 = vmatprep.mubr.f32.mxu0 0.0
        %720 = vmatmul.mubr.f32.gmra.mrb[0].mxu0 %v506
        %v721 = vpop.f32.mrb[0].mxu0
        %v722 = vadd.f32 %v421, %v721
        %v723 = vpop.f32.mrb[0].mxu0
        %724 = vmatprep.mubr.f32.mxu0 0.0
        %725 = vmatmul.mubr.f32.gmra.mrb[0].mxu0 %v509
        %v726 = vpop.f32.mrb[0].mxu0
        %v727 = vadd.f32 %v421, %v726
        %v728 = vpop.f32.mrb[0].mxu0
        %729 = vmatprep.mubr.f32.mxu0 0.0
        %730 = vmatmul.mubr.f32.gmra.mrb[0].mxu0 %v512
        %v731 = vpop.f32.mrb[0].mxu0
        %v732 = vadd.f32 %v421, %v731
        %v733 = vpop.f32.mrb[0].mxu0
        %734 = vmatprep.mubr.f32.mxu0 0.0
        %735 = vmatmul.mubr.f32.gmra.mrb[0].mxu0 %v515
        %v736 = vpop.f32.mrb[0].mxu0
        %v737 = vadd.f32 %v421, %v736
        %v738 = vpop.f32.mrb[0].mxu0
        %739 = vmatprep.mubr.f32.mxu0 0.0
        %740 = vmatmul.mubr.f32.gmra.mrb[0].mxu0 %v518
        %v741 = vpop.f32.mrb[0].mxu0
        %v742 = vadd.f32 %v421, %v741
        %v743 = vpop.f32.mrb[0].mxu0
        %744 = vdwg.mxu0
        %v745 = vmax.f32 %v587, 0.0
        %v746 = vmax.f32 %v592, 0.0
        %v747 = vmax.f32 %v597, 0.0
        %v748 = vmax.f32 %v602, 0.0
        %v749 = vmax.f32 %v607, 0.0
        %v750 = vmax.f32 %v612, 0.0
        %v751 = vmax.f32 %v617, 0.0
        %v752 = vmax.f32 %v622, 0.0
        %v753 = vmax.f32 %v627, 0.0
        %v754 = vmax.f32 %v632, 0.0
        %v755 = vmax.f32 %v637, 0.0
        %v756 = vmax.f32 %v642, 0.0
        %v757 = vmax.f32 %v647, 0.0
        %v758 = vmax.f32 %v652, 0.0
        %v759 = vmax.f32 %v657, 0.0
        %v760 = vmax.f32 %v662, 0.0
        %v761 = vmax.f32 %v667, 0.0
        %v762 = vmax.f32 %v672, 0.0
        %v763 = vmax.f32 %v677, 0.0
        %v764 = vmax.f32 %v682, 0.0
        %v765 = vmax.f32 %v687, 0.0
        %v766 = vmax.f32 %v692, 0.0
        %v767 = vmax.f32 %v697, 0.0
        %v768 = vmax.f32 %v702, 0.0
        %v769 = vmax.f32 %v707, 0.0
        %v770 = vmax.f32 %v712, 0.0
        %v771 = vmax.f32 %v717, 0.0
        %v772 = vmax.f32 %v722, 0.0
        %v773 = vmax.f32 %v727, 0.0
        %v774 = vmax.f32 %v732, 0.0
        %v775 = vmax.f32 %v737, 0.0
        %v776 = vmax.f32 %v742, 0.0
        %v777 = vld [vmem:[%s3] sm:$0xff]
        %v778 = vld [vmem:[%s4] sm:$0x3]
        %v780 = vlaneseq
        %v781 = vshrl.u32 %v780, 7
        %v782 = vsub.s32 0, %v781
        %v783 = vrot.slane %v778, %v782
        %v784 = vlaneseq
        %v785 = vshrl.u32 %v784, 7
        %v786 = vsub.s32 1, %v785
        %v787 = vrot.slane %v778, %v786
        %v791 = vcombine.high %v777, %v777
        %vm792 = vcmask 31744
        %v794 = vsel %vm792, %v745, 0
        %v797 = vsel %vm792, %v746, 0
        %v800 = vsel %vm792, %v747, 0
        %v803 = vsel %vm792, %v748, 0
        %v806 = vsel %vm792, %v749, 0
        %v809 = vsel %vm792, %v750, 0
        %v812 = vsel %vm792, %v751, 0
        %v815 = vsel %vm792, %v752, 0
        %v818 = vsel %vm792, %v753, 0
        %v821 = vsel %vm792, %v754, 0
        %v824 = vsel %vm792, %v755, 0
        %v827 = vsel %vm792, %v756, 0
        %v830 = vsel %vm792, %v757, 0
        %v833 = vsel %vm792, %v758, 0
        %v836 = vsel %vm792, %v759, 0
        %v839 = vsel %vm792, %v760, 0
        %v842 = vsel %vm792, %v761, 0
        %v845 = vsel %vm792, %v762, 0
        %v848 = vsel %vm792, %v763, 0
        %v851 = vsel %vm792, %v764, 0
        %v854 = vsel %vm792, %v765, 0
        %v857 = vsel %vm792, %v766, 0
        %v860 = vsel %vm792, %v767, 0
        %v863 = vsel %vm792, %v768, 0
        %v866 = vsel %vm792, %v769, 0
        %v869 = vsel %vm792, %v770, 0
        %v872 = vsel %vm792, %v771, 0
        %v875 = vsel %vm792, %v772, 0
        %v878 = vsel %vm792, %v773, 0
        %v881 = vsel %vm792, %v774, 0
        %v884 = vsel %vm792, %v775, 0
        %v887 = vsel %vm792, %v776, 0
        %vm889 = vcmask 1043456
        %v890 = vsel %vm889, %v777, 0
        %v892 = vsel %vm889, %v791, 0
        %894 = vmatprep.subr.mxu0 %v892
        %895 = vmatpush1.msra.mxu0 %v890
        %896 = vmatprep.subr.mxu0 0.0
        %897 = vmatpush1.msra.mxu0 0.0
        %898 = vmatprep.subr.mxu0 0.0
        %899 = vmatpush1.msra.mxu0 0.0
        %900 = vmatprep.subr.mxu0 0.0
        %901 = vmatpush1.msra.mxu0 0.0
        %902 = vmatprep.subr.mxu0 0.0
        %903 = vmatpush1.msra.mxu0 0.0
        %904 = vmatprep.subr.mxu0 0.0
        %905 = vmatpush1.msra.mxu0 0.0
        %906 = vmatprep.subr.mxu0 0.0
        %907 = vmatpush1.msra.mxu0 0.0
        %908 = vmatprep.subr.mxu0 0.0
        %909 = vmatpush1.msra.mxu0 0.0
        %910 = vmatprep.subr.mxu0 0.0
        %911 = vmatpush1.msra.mxu0 0.0
        %912 = vmatprep.subr.mxu0 0.0
        %913 = vmatpush1.msra.mxu0 0.0
        %914 = vmatprep.subr.mxu0 0.0
        %915 = vmatpush1.msra.mxu0 0.0
        %916 = vmatprep.subr.mxu0 0.0
        %917 = vmatpush1.msra.mxu0 0.0
        %918 = vmatprep.subr.mxu0 0.0
        %919 = vmatpush1.msra.mxu0 0.0
        %920 = vmatprep.subr.mxu0 0.0
        %921 = vmatpush1.msra.mxu0 0.0
        %922 = vmatprep.subr.mxu0 0.0
        %923 = vmatpush1.msra.mxu0 0.0
        %924 = vmatprep.subr.mxu0 0.0
        %925 = vmatpush1.msra.mxu0 0.0
        %926 = vmatprep.subr.mxu0 0.0
        %927 = vmatpush1.msra.mxu0 0.0
        %928 = vmatprep.subr.mxu0 0.0
        %929 = vmatpush1.msra.mxu0 0.0
        %930 = vmatprep.subr.mxu0 0.0
        %931 = vmatpush1.msra.mxu0 0.0
        %932 = vmatprep.subr.mxu0 0.0
        %933 = vmatpush1.msra.mxu0 0.0
        %934 = vmatprep.subr.mxu0 0.0
        %935 = vmatpush1.msra.mxu0 0.0
        %936 = vmatprep.subr.mxu0 0.0
        %937 = vmatpush1.msra.mxu0 0.0
        %938 = vmatprep.subr.mxu0 0.0
        %939 = vmatpush1.msra.mxu0 0.0
        %940 = vmatprep.subr.mxu0 0.0
        %941 = vmatpush1.msra.mxu0 0.0
        %942 = vmatprep.subr.mxu0 0.0
        %943 = vmatpush1.msra.mxu0 0.0
        %944 = vmatprep.subr.mxu0 0.0
        %945 = vmatpush1.msra.mxu0 0.0
        %946 = vmatprep.subr.mxu0 0.0
        %947 = vmatpush1.msra.mxu0 0.0
        %948 = vmatprep.subr.mxu0 0.0
        %949 = vmatpush1.msra.mxu0 0.0
        %950 = vmatprep.subr.mxu0 0.0
        %951 = vmatpush1.msra.mxu0 0.0
        %952 = vmatprep.subr.mxu0 0.0
        %953 = vmatpush1.msra.mxu0 0.0
        %954 = vmatprep.subr.mxu0 0.0
        %955 = vmatpush1.msra.mxu0 0.0
        %956 = vmatprep.subr.mxu0 0.0
        %957 = vmatpush1.msra.mxu0 0.0
        %958 = vmatprep.mubr.f32.mxu0 0.0
        %959 = vmatmul.mubr.f32.gmra.mrb[0].mxu0 %v794
        %v960 = vpop.f32.mrb[0].mxu0
        %v961 = vadd.f32 %v783, %v960
        %v962 = vpop.f32.mrb[0].mxu0
        %v963 = vadd.f32 %v787, %v962
        %964 = vmatprep.mubr.f32.mxu0 0.0
        %965 = vmatmul.mubr.f32.gmra.mrb[0].mxu0 %v797
        %v966 = vpop.f32.mrb[0].mxu0
        %v967 = vadd.f32 %v783, %v966
        %v968 = vpop.f32.mrb[0].mxu0
        %v969 = vadd.f32 %v787, %v968
        %970 = vmatprep.mubr.f32.mxu0 0.0
        %971 = vmatmul.mubr.f32.gmra.mrb[0].mxu0 %v800
        %v972 = vpop.f32.mrb[0].mxu0
        %v973 = vadd.f32 %v783, %v972
        %v974 = vpop.f32.mrb[0].mxu0
        %v975 = vadd.f32 %v787, %v974
        %976 = vmatprep.mubr.f32.mxu0 0.0
        %977 = vmatmul.mubr.f32.gmra.mrb[0].mxu0 %v803
        %v978 = vpop.f32.mrb[0].mxu0
        %v979 = vadd.f32 %v783, %v978
        %v980 = vpop.f32.mrb[0].mxu0
        %v981 = vadd.f32 %v787, %v980
        %982 = vmatprep.mubr.f32.mxu0 0.0
        %983 = vmatmul.mubr.f32.gmra.mrb[0].mxu0 %v806
        %v984 = vpop.f32.mrb[0].mxu0
        %v985 = vadd.f32 %v783, %v984
        %v986 = vpop.f32.mrb[0].mxu0
        %v987 = vadd.f32 %v787, %v986
        %988 = vmatprep.mubr.f32.mxu0 0.0
        %989 = vmatmul.mubr.f32.gmra.mrb[0].mxu0 %v809
        %v990 = vpop.f32.mrb[0].mxu0
        %v991 = vadd.f32 %v783, %v990
        %v992 = vpop.f32.mrb[0].mxu0
        %v993 = vadd.f32 %v787, %v992
        %994 = vmatprep.mubr.f32.mxu0 0.0
        %995 = vmatmul.mubr.f32.gmra.mrb[0].mxu0 %v812
        %v996 = vpop.f32.mrb[0].mxu0
        %v997 = vadd.f32 %v783, %v996
        %v998 = vpop.f32.mrb[0].mxu0
        %v999 = vadd.f32 %v787, %v998
        %1000 = vmatprep.mubr.f32.mxu0 0.0
        %1001 = vmatmul.mubr.f32.gmra.mrb[0].mxu0 %v815
        %v1002 = vpop.f32.mrb[0].mxu0
        %v1003 = vadd.f32 %v783, %v1002
        %v1004 = vpop.f32.mrb[0].mxu0
        %v1005 = vadd.f32 %v787, %v1004
        %1006 = vmatprep.mubr.f32.mxu0 0.0
        %1007 = vmatmul.mubr.f32.gmra.mrb[0].mxu0 %v818
        %v1008 = vpop.f32.mrb[0].mxu0
        %v1009 = vadd.f32 %v783, %v1008
        %v1010 = vpop.f32.mrb[0].mxu0
        %v1011 = vadd.f32 %v787, %v1010
        %1012 = vmatprep.mubr.f32.mxu0 0.0
        %1013 = vmatmul.mubr.f32.gmra.mrb[0].mxu0 %v821
        %v1014 = vpop.f32.mrb[0].mxu0
        %v1015 = vadd.f32 %v783, %v1014
        %v1016 = vpop.f32.mrb[0].mxu0
        %v1017 = vadd.f32 %v787, %v1016
        %1018 = vmatprep.mubr.f32.mxu0 0.0
        %1019 = vmatmul.mubr.f32.gmra.mrb[0].mxu0 %v824
        %v1020 = vpop.f32.mrb[0].mxu0
        %v1021 = vadd.f32 %v783, %v1020
        %v1022 = vpop.f32.mrb[0].mxu0
        %v1023 = vadd.f32 %v787, %v1022
        %1024 = vmatprep.mubr.f32.mxu0 0.0
        %1025 = vmatmul.mubr.f32.gmra.mrb[0].mxu0 %v827
        %v1026 = vpop.f32.mrb[0].mxu0
        %v1027 = vadd.f32 %v783, %v1026
        %v1028 = vpop.f32.mrb[0].mxu0
        %v1029 = vadd.f32 %v787, %v1028
        %1030 = vmatprep.mubr.f32.mxu0 0.0
        %1031 = vmatmul.mubr.f32.gmra.mrb[0].mxu0 %v830
        %v1032 = vpop.f32.mrb[0].mxu0
        %v1033 = vadd.f32 %v783, %v1032
        %v1034 = vpop.f32.mrb[0].mxu0
        %v1035 = vadd.f32 %v787, %v1034
        %1036 = vmatprep.mubr.f32.mxu0 0.0
        %1037 = vmatmul.mubr.f32.gmra.mrb[0].mxu0 %v833
        %v1038 = vpop.f32.mrb[0].mxu0
        %v1039 = vadd.f32 %v783, %v1038
        %v1040 = vpop.f32.mrb[0].mxu0
        %v1041 = vadd.f32 %v787, %v1040
        %1042 = vmatprep.mubr.f32.mxu0 0.0
        %1043 = vmatmul.mubr.f32.gmra.mrb[0].mxu0 %v836
        %v1044 = vpop.f32.mrb[0].mxu0
        %v1045 = vadd.f32 %v783, %v1044
        %v1046 = vpop.f32.mrb[0].mxu0
        %v1047 = vadd.f32 %v787, %v1046
        %1048 = vmatprep.mubr.f32.mxu0 0.0
        %1049 = vmatmul.mubr.f32.gmra.mrb[0].mxu0 %v839
        %v1050 = vpop.f32.mrb[0].mxu0
        %v1051 = vadd.f32 %v783, %v1050
        %v1052 = vpop.f32.mrb[0].mxu0
        %v1053 = vadd.f32 %v787, %v1052
        %1054 = vmatprep.mubr.f32.mxu0 0.0
        %1055 = vmatmul.mubr.f32.gmra.mrb[0].mxu0 %v842
        %v1056 = vpop.f32.mrb[0].mxu0
        %v1057 = vadd.f32 %v783, %v1056
        %v1058 = vpop.f32.mrb[0].mxu0
        %v1059 = vadd.f32 %v787, %v1058
        %1060 = vmatprep.mubr.f32.mxu0 0.0
        %1061 = vmatmul.mubr.f32.gmra.mrb[0].mxu0 %v845
        %v1062 = vpop.f32.mrb[0].mxu0
        %v1063 = vadd.f32 %v783, %v1062
        %v1064 = vpop.f32.mrb[0].mxu0
        %v1065 = vadd.f32 %v787, %v1064
        %1066 = vmatprep.mubr.f32.mxu0 0.0
        %1067 = vmatmul.mubr.f32.gmra.mrb[0].mxu0 %v848
        %v1068 = vpop.f32.mrb[0].mxu0
        %v1069 = vadd.f32 %v783, %v1068
        %v1070 = vpop.f32.mrb[0].mxu0
        %v1071 = vadd.f32 %v787, %v1070
        %1072 = vmatprep.mubr.f32.mxu0 0.0
        %1073 = vmatmul.mubr.f32.gmra.mrb[0].mxu0 %v851
        %v1074 = vpop.f32.mrb[0].mxu0
        %v1075 = vadd.f32 %v783, %v1074
        %v1076 = vpop.f32.mrb[0].mxu0
        %v1077 = vadd.f32 %v787, %v1076
        %1078 = vmatprep.mubr.f32.mxu0 0.0
        %1079 = vmatmul.mubr.f32.gmra.mrb[0].mxu0 %v854
        %v1080 = vpop.f32.mrb[0].mxu0
        %v1081 = vadd.f32 %v783, %v1080
        %v1082 = vpop.f32.mrb[0].mxu0
        %v1083 = vadd.f32 %v787, %v1082
        %1084 = vmatprep.mubr.f32.mxu0 0.0
        %1085 = vmatmul.mubr.f32.gmra.mrb[0].mxu0 %v857
        %v1086 = vpop.f32.mrb[0].mxu0
        %v1087 = vadd.f32 %v783, %v1086
        %v1088 = vpop.f32.mrb[0].mxu0
        %v1089 = vadd.f32 %v787, %v1088
        %1090 = vmatprep.mubr.f32.mxu0 0.0
        %1091 = vmatmul.mubr.f32.gmra.mrb[0].mxu0 %v860
        %v1092 = vpop.f32.mrb[0].mxu0
        %v1093 = vadd.f32 %v783, %v1092
        %v1094 = vpop.f32.mrb[0].mxu0
        %v1095 = vadd.f32 %v787, %v1094
        %1096 = vmatprep.mubr.f32.mxu0 0.0
        %1097 = vmatmul.mubr.f32.gmra.mrb[0].mxu0 %v863
        %v1098 = vpop.f32.mrb[0].mxu0
        %v1099 = vadd.f32 %v783, %v1098
        %v1100 = vpop.f32.mrb[0].mxu0
        %v1101 = vadd.f32 %v787, %v1100
        %1102 = vmatprep.mubr.f32.mxu0 0.0
        %1103 = vmatmul.mubr.f32.gmra.mrb[0].mxu0 %v866
        %v1104 = vpop.f32.mrb[0].mxu0
        %v1105 = vadd.f32 %v783, %v1104
        %v1106 = vpop.f32.mrb[0].mxu0
        %v1107 = vadd.f32 %v787, %v1106
        %1108 = vmatprep.mubr.f32.mxu0 0.0
        %1109 = vmatmul.mubr.f32.gmra.mrb[0].mxu0 %v869
        %v1110 = vpop.f32.mrb[0].mxu0
        %v1111 = vadd.f32 %v783, %v1110
        %v1112 = vpop.f32.mrb[0].mxu0
        %v1113 = vadd.f32 %v787, %v1112
        %1114 = vmatprep.mubr.f32.mxu0 0.0
        %1115 = vmatmul.mubr.f32.gmra.mrb[0].mxu0 %v872
        %v1116 = vpop.f32.mrb[0].mxu0
        %v1117 = vadd.f32 %v783, %v1116
        %v1118 = vpop.f32.mrb[0].mxu0
        %v1119 = vadd.f32 %v787, %v1118
        %1120 = vmatprep.mubr.f32.mxu0 0.0
        %1121 = vmatmul.mubr.f32.gmra.mrb[0].mxu0 %v875
        %v1122 = vpop.f32.mrb[0].mxu0
        %v1123 = vadd.f32 %v783, %v1122
        %v1124 = vpop.f32.mrb[0].mxu0
        %v1125 = vadd.f32 %v787, %v1124
        %1126 = vmatprep.mubr.f32.mxu0 0.0
        %1127 = vmatmul.mubr.f32.gmra.mrb[0].mxu0 %v878
        %v1128 = vpop.f32.mrb[0].mxu0
        %v1129 = vadd.f32 %v783, %v1128
        %v1130 = vpop.f32.mrb[0].mxu0
        %v1131 = vadd.f32 %v787, %v1130
        %1132 = vmatprep.mubr.f32.mxu0 0.0
        %1133 = vmatmul.mubr.f32.gmra.mrb[0].mxu0 %v881
        %v1134 = vpop.f32.mrb[0].mxu0
        %v1135 = vadd.f32 %v783, %v1134
        %v1136 = vpop.f32.mrb[0].mxu0
        %v1137 = vadd.f32 %v787, %v1136
        %1138 = vmatprep.mubr.f32.mxu0 0.0
        %1139 = vmatmul.mubr.f32.gmra.mrb[0].mxu0 %v884
        %v1140 = vpop.f32.mrb[0].mxu0
        %v1141 = vadd.f32 %v783, %v1140
        %v1142 = vpop.f32.mrb[0].mxu0
        %v1143 = vadd.f32 %v787, %v1142
        %1144 = vmatprep.mubr.f32.mxu0 0.0
        %1145 = vmatmul.mubr.f32.gmra.mrb[0].mxu0 %v887
        %v1146 = vpop.f32.mrb[0].mxu0
        %v1147 = vadd.f32 %v783, %v1146
        %v1148 = vpop.f32.mrb[0].mxu0
        %v1149 = vadd.f32 %v787, %v1148
        %1150 = vdwg.mxu0
        %1151 = vst [vmem:[#allocation3] sm:$0xff] %v961
        %1152 = vst.msk [vmem:[#allocation3 + $0x8] sm:$0xff] %vm423, %v963
        %1153 = vst [vmem:[#allocation3 + $0x10] sm:$0xff] %v967
        %1154 = vst.msk [vmem:[#allocation3 + $0x18] sm:$0xff] %vm423, %v969
        %1155 = vst [vmem:[#allocation3 + $0x20] sm:$0xff] %v973
        %1156 = vst.msk [vmem:[#allocation3 + $0x28] sm:$0xff] %vm423, %v975
        %1157 = vst [vmem:[#allocation3 + $0x30] sm:$0xff] %v979
        %1158 = vst.msk [vmem:[#allocation3 + $0x38] sm:$0xff] %vm423, %v981
        %1159 = vst [vmem:[#allocation3 + $0x40] sm:$0xff] %v985
        %1160 = vst.msk [vmem:[#allocation3 + $0x48] sm:$0xff] %vm423, %v987
        %1161 = vst [vmem:[#allocation3 + $0x50] sm:$0xff] %v991
        %1162 = vst.msk [vmem:[#allocation3 + $0x58] sm:$0xff] %vm423, %v993
        %1163 = vst [vmem:[#allocation3 + $0x60] sm:$0xff] %v997
        %1164 = vst.msk [vmem:[#allocation3 + $0x68] sm:$0xff] %vm423, %v999
        %1165 = vst [vmem:[#allocation3 + $0x70] sm:$0xff] %v1003
        %1166 = vst.msk [vmem:[#allocation3 + $0x78] sm:$0xff] %vm423, %v1005
        %1167 = vst [vmem:[#allocation3 + $0x80] sm:$0xff] %v1009
        %1168 = vst.msk [vmem:[#allocation3 + $0x88] sm:$0xff] %vm423, %v1011
        %1169 = vst [vmem:[#allocation3 + $0x90] sm:$0xff] %v1015
        %1170 = vst.msk [vmem:[#allocation3 + $0x98] sm:$0xff] %vm423, %v1017
        %1171 = vst [vmem:[#allocation3 + $0xa0] sm:$0xff] %v1021
        %1172 = vst.msk [vmem:[#allocation3 + $0xa8] sm:$0xff] %vm423, %v1023
        %1173 = vst [vmem:[#allocation3 + $0xb0] sm:$0xff] %v1027
        %1174 = vst.msk [vmem:[#allocation3 + $0xb8] sm:$0xff] %vm423, %v1029
        %1175 = vst [vmem:[#allocation3 + $0xc0] sm:$0xff] %v1033
        %1176 = vst.msk [vmem:[#allocation3 + $0xc8] sm:$0xff] %vm423, %v1035
        %1177 = vst [vmem:[#allocation3 + $0xd0] sm:$0xff] %v1039
        %1178 = vst.msk [vmem:[#allocation3 + $0xd8] sm:$0xff] %vm423, %v1041
        %1179 = vst [vmem:[#allocation3 + $0xe0] sm:$0xff] %v1045
        %1180 = vst.msk [vmem:[#allocation3 + $0xe8] sm:$0xff] %vm423, %v1047
        %1181 = vst [vmem:[#allocation3 + $0xf0] sm:$0xff] %v1051
        %1182 = vst.msk [vmem:[#allocation3 + $0xf8] sm:$0xff] %vm423, %v1053
        %1183 = vst [vmem:[#allocation3 + $0x100] sm:$0xff] %v1057
        %1184 = vst.msk [vmem:[#allocation3 + $0x108] sm:$0xff] %vm423, %v1059
        %1185 = vst [vmem:[#allocation3 + $0x110] sm:$0xff] %v1063
        %1186 = vst.msk [vmem:[#allocation3 + $0x118] sm:$0xff] %vm423, %v1065
        %1187 = vst [vmem:[#allocation3 + $0x120] sm:$0xff] %v1069
        %1188 = vst.msk [vmem:[#allocation3 + $0x128] sm:$0xff] %vm423, %v1071
        %1189 = vst [vmem:[#allocation3 + $0x130] sm:$0xff] %v1075
        %1190 = vst.msk [vmem:[#allocation3 + $0x138] sm:$0xff] %vm423, %v1077
        %1191 = vst [vmem:[#allocation3 + $0x140] sm:$0xff] %v1081
        %1192 = vst.msk [vmem:[#allocation3 + $0x148] sm:$0xff] %vm423, %v1083
        %1193 = vst [vmem:[#allocation3 + $0x150] sm:$0xff] %v1087
        %1194 = vst.msk [vmem:[#allocation3 + $0x158] sm:$0xff] %vm423, %v1089
        %1195 = vst [vmem:[#allocation3 + $0x160] sm:$0xff] %v1093
        %1196 = vst.msk [vmem:[#allocation3 + $0x168] sm:$0xff] %vm423, %v1095
        %1197 = vst [vmem:[#allocation3 + $0x170] sm:$0xff] %v1099
        %1198 = vst.msk [vmem:[#allocation3 + $0x178] sm:$0xff] %vm423, %v1101
        %1199 = vst [vmem:[#allocation3 + $0x180] sm:$0xff] %v1105
        %1200 = vst.msk [vmem:[#allocation3 + $0x188] sm:$0xff] %vm423, %v1107
        %1201 = vst [vmem:[#allocation3 + $0x190] sm:$0xff] %v1111
        %1202 = vst.msk [vmem:[#allocation3 + $0x198] sm:$0xff] %vm423, %v1113
        %1203 = vst [vmem:[#allocation3 + $0x1a0] sm:$0xff] %v1117
        %1204 = vst.msk [vmem:[#allocation3 + $0x1a8] sm:$0xff] %vm423, %v1119
        %1205 = vst [vmem:[#allocation3 + $0x1b0] sm:$0xff] %v1123
        %1206 = vst.msk [vmem:[#allocation3 + $0x1b8] sm:$0xff] %vm423, %v1125
        %1207 = vst [vmem:[#allocation3 + $0x1c0] sm:$0xff] %v1129
        %1208 = vst.msk [vmem:[#allocation3 + $0x1c8] sm:$0xff] %vm423, %v1131
        %1209 = vst [vmem:[#allocation3 + $0x1d0] sm:$0xff] %v1135
        %1210 = vst.msk [vmem:[#allocation3 + $0x1d8] sm:$0xff] %vm423, %v1137
        %1211 = vst [vmem:[#allocation3 + $0x1e0] sm:$0xff] %v1141
        %1212 = vst.msk [vmem:[#allocation3 + $0x1e8] sm:$0xff] %vm423, %v1143
        %1213 = vst [vmem:[#allocation3 + $0x1f0] sm:$0xff] %v1147
        %1214 = vst.msk [vmem:[#allocation3 + $0x1f8] sm:$0xff] %vm423, %v1149
        %v1215 = vld [vmem:[#allocation3] sm:$0xff]
        %v1216 = vld [vmem:[#allocation3 + $0x10] sm:$0xff]
        %v1217 = vld [vmem:[#allocation3 + $0x20] sm:$0xff]
        %v1218 = vld [vmem:[#allocation3 + $0x30] sm:$0xff]
        %v1219 = vld [vmem:[#allocation3 + $0x40] sm:$0xff]
        %v1220 = vld [vmem:[#allocation3 + $0x50] sm:$0xff]
        %v1221 = vld [vmem:[#allocation3 + $0x60] sm:$0xff]
        %v1222 = vld [vmem:[#allocation3 + $0x70] sm:$0xff]
        %v1223 = vld [vmem:[#allocation3 + $0x80] sm:$0xff]
        %v1224 = vld [vmem:[#allocation3 + $0x90] sm:$0xff]
        %v1225 = vld [vmem:[#allocation3 + $0xa0] sm:$0xff]
        %v1226 = vld [vmem:[#allocation3 + $0xb0] sm:$0xff]
        %v1227 = vld [vmem:[#allocation3 + $0xc0] sm:$0xff]
        %v1228 = vld [vmem:[#allocation3 + $0xd0] sm:$0xff]
        %v1229 = vld [vmem:[#allocation3 + $0xe0] sm:$0xff]
        %v1230 = vld [vmem:[#allocation3 + $0xf0] sm:$0xff]
        %v1231 = vld [vmem:[#allocation3 + $0x100] sm:$0xff]
        %v1232 = vld [vmem:[#allocation3 + $0x110] sm:$0xff]
        %v1233 = vld [vmem:[#allocation3 + $0x120] sm:$0xff]
        %v1234 = vld [vmem:[#allocation3 + $0x130] sm:$0xff]
        %v1235 = vld [vmem:[#allocation3 + $0x140] sm:$0xff]
        %v1236 = vld [vmem:[#allocation3 + $0x150] sm:$0xff]
        %v1237 = vld [vmem:[#allocation3 + $0x160] sm:$0xff]
        %v1238 = vld [vmem:[#allocation3 + $0x170] sm:$0xff]
        %v1239 = vld [vmem:[#allocation3 + $0x180] sm:$0xff]
        %v1240 = vld [vmem:[#allocation3 + $0x190] sm:$0xff]
        %v1241 = vld [vmem:[#allocation3 + $0x1a0] sm:$0xff]
        %v1242 = vld [vmem:[#allocation3 + $0x1b0] sm:$0xff]
        %v1243 = vld [vmem:[#allocation3 + $0x1c0] sm:$0xff]
        %v1244 = vld [vmem:[#allocation3 + $0x1d0] sm:$0xff]
        %v1245 = vld [vmem:[#allocation3 + $0x1e0] sm:$0xff]
        %v1246 = vld [vmem:[#allocation3 + $0x1f0] sm:$0xff]
        %s1247 = smul.u32 %s268, 24
        %s1248 = scalar_lea.vmem [#allocation2], %s1247
        %v1249 = vld [vmem:[%s1248] sm:$0xff]
        %v1250 = vld [vmem:[%s1248 + $0x8] sm:$0xff]
        %v1251 = vld [vmem:[%s1248 + $0x18] sm:$0xff]
        %v1252 = vld [vmem:[%s1248 + $0x20] sm:$0xff]
        %v1253 = vld [vmem:[%s1248 + $0x30] sm:$0xff]
        %v1254 = vld [vmem:[%s1248 + $0x38] sm:$0xff]
        %v1255 = vld [vmem:[%s1248 + $0x48] sm:$0xff]
        %v1256 = vld [vmem:[%s1248 + $0x50] sm:$0xff]
        %v1257 = vld [vmem:[%s1248 + $0x60] sm:$0xff]
        %v1258 = vld [vmem:[%s1248 + $0x68] sm:$0xff]
        %v1259 = vld [vmem:[%s1248 + $0x78] sm:$0xff]
        %v1260 = vld [vmem:[%s1248 + $0x80] sm:$0xff]
        %v1261 = vld [vmem:[%s1248 + $0x90] sm:$0xff]
        %v1262 = vld [vmem:[%s1248 + $0x98] sm:$0xff]
        %v1263 = vld [vmem:[%s1248 + $0xa8] sm:$0xff]
        %v1264 = vld [vmem:[%s1248 + $0xb0] sm:$0xff]
        %v1265 = vld [vmem:[%s1248 + $0xc0] sm:$0xff]
        %v1266 = vld [vmem:[%s1248 + $0xc8] sm:$0xff]
        %v1267 = vld [vmem:[%s1248 + $0xd8] sm:$0xff]
        %v1268 = vld [vmem:[%s1248 + $0xe0] sm:$0xff]
        %v1269 = vld [vmem:[%s1248 + $0xf0] sm:$0xff]
        %v1270 = vld [vmem:[%s1248 + $0xf8] sm:$0xff]
        %v1271 = vld [vmem:[%s1248 + $0x108] sm:$0xff]
        %v1272 = vld [vmem:[%s1248 + $0x110] sm:$0xff]
        %v1273 = vld [vmem:[%s1248 + $0x120] sm:$0xff]
        %v1274 = vld [vmem:[%s1248 + $0x128] sm:$0xff]
        %v1275 = vld [vmem:[%s1248 + $0x138] sm:$0xff]
        %v1276 = vld [vmem:[%s1248 + $0x140] sm:$0xff]
        %v1277 = vld [vmem:[%s1248 + $0x150] sm:$0xff]
        %v1278 = vld [vmem:[%s1248 + $0x158] sm:$0xff]
        %v1279 = vld [vmem:[%s1248 + $0x168] sm:$0xff]
        %v1280 = vld [vmem:[%s1248 + $0x170] sm:$0xff]
        %v1281 = vmul.f32 %v1215, %v1249
        %v1282 = vmul.f32 %v1216, %v1250
        %v1283 = vmul.f32 %v1217, %v1251
        %v1284 = vmul.f32 %v1218, %v1252
        %v1285 = vmul.f32 %v1219, %v1253
        %v1286 = vmul.f32 %v1220, %v1254
        %v1287 = vmul.f32 %v1221, %v1255
        %v1288 = vmul.f32 %v1222, %v1256
        %v1289 = vmul.f32 %v1223, %v1257
        %v1290 = vmul.f32 %v1224, %v1258
        %v1291 = vmul.f32 %v1225, %v1259
        %v1292 = vmul.f32 %v1226, %v1260
        %v1293 = vmul.f32 %v1227, %v1261
        %v1294 = vmul.f32 %v1228, %v1262
        %v1295 = vmul.f32 %v1229, %v1263
        %v1296 = vmul.f32 %v1230, %v1264
        %v1297 = vmul.f32 %v1231, %v1265
        %v1298 = vmul.f32 %v1232, %v1266
        %v1299 = vmul.f32 %v1233, %v1267
        %v1300 = vmul.f32 %v1234, %v1268
        %v1301 = vmul.f32 %v1235, %v1269
        %v1302 = vmul.f32 %v1236, %v1270
        %v1303 = vmul.f32 %v1237, %v1271
        %v1304 = vmul.f32 %v1238, %v1272
        %v1305 = vmul.f32 %v1239, %v1273
        %v1306 = vmul.f32 %v1240, %v1274
        %v1307 = vmul.f32 %v1241, %v1275
        %v1308 = vmul.f32 %v1242, %v1276
        %v1309 = vmul.f32 %v1243, %v1277
        %v1310 = vmul.f32 %v1244, %v1278
        %v1311 = vmul.f32 %v1245, %v1279
        %v1312 = vmul.f32 %v1246, %v1280
        %1313 = vst.msk [vmem:[%s266] sm:$0xff] %vm423, %v1281
        %1314 = vst.msk [vmem:[%s266 + $0x8] sm:$0xff] %vm423, %v1282
        %1315 = vst.msk [vmem:[%s266 + $0x10] sm:$0xff] %vm423, %v1283
        %1316 = vst.msk [vmem:[%s266 + $0x18] sm:$0xff] %vm423, %v1284
        %1317 = vst.msk [vmem:[%s266 + $0x20] sm:$0xff] %vm423, %v1285
        %1318 = vst.msk [vmem:[%s266 + $0x28] sm:$0xff] %vm423, %v1286
        %1319 = vst.msk [vmem:[%s266 + $0x30] sm:$0xff] %vm423, %v1287
        %1320 = vst.msk [vmem:[%s266 + $0x38] sm:$0xff] %vm423, %v1288
        %1321 = vst.msk [vmem:[%s266 + $0x40] sm:$0xff] %vm423, %v1289
        %1322 = vst.msk [vmem:[%s266 + $0x48] sm:$0xff] %vm423, %v1290
        %1323 = vst.msk [vmem:[%s266 + $0x50] sm:$0xff] %vm423, %v1291
        %1324 = vst.msk [vmem:[%s266 + $0x58] sm:$0xff] %vm423, %v1292
        %1325 = vst.msk [vmem:[%s266 + $0x60] sm:$0xff] %vm423, %v1293
        %1326 = vst.msk [vmem:[%s266 + $0x68] sm:$0xff] %vm423, %v1294
        %1327 = vst.msk [vmem:[%s266 + $0x70] sm:$0xff] %vm423, %v1295
        %1328 = vst.msk [vmem:[%s266 + $0x78] sm:$0xff] %vm423, %v1296
        %1329 = vst.msk [vmem:[%s266 + $0x80] sm:$0xff] %vm423, %v1297
        %1330 = vst.msk [vmem:[%s266 + $0x88] sm:$0xff] %vm423, %v1298
        %1331 = vst.msk [vmem:[%s266 + $0x90] sm:$0xff] %vm423, %v1299
        %1332 = vst.msk [vmem:[%s266 + $0x98] sm:$0xff] %vm423, %v1300
        %1333 = vst.msk [vmem:[%s266 + $0xa0] sm:$0xff] %vm423, %v1301
        %1334 = vst.msk [vmem:[%s266 + $0xa8] sm:$0xff] %vm423, %v1302
        %1335 = vst.msk [vmem:[%s266 + $0xb0] sm:$0xff] %vm423, %v1303
        %1336 = vst.msk [vmem:[%s266 + $0xb8] sm:$0xff] %vm423, %v1304
        %1337 = vst.msk [vmem:[%s266 + $0xc0] sm:$0xff] %vm423, %v1305
        %1338 = vst.msk [vmem:[%s266 + $0xc8] sm:$0xff] %vm423, %v1306
        %1339 = vst.msk [vmem:[%s266 + $0xd0] sm:$0xff] %vm423, %v1307
        %1340 = vst.msk [vmem:[%s266 + $0xd8] sm:$0xff] %vm423, %v1308
        %1341 = vst.msk [vmem:[%s266 + $0xe0] sm:$0xff] %vm423, %v1309
        %1342 = vst.msk [vmem:[%s266 + $0xe8] sm:$0xff] %vm423, %v1310
        %1343 = vst.msk [vmem:[%s266 + $0xf0] sm:$0xff] %vm423, %v1311
        %1344 = vst.msk [vmem:[%s266 + $0xf8] sm:$0xff] %vm423, %v1312
        %v1345 = vld [vmem:[#allocation3] sm:$0xff]
        %v1346 = vld [vmem:[#allocation3 + $0x10] sm:$0xff]
        %v1347 = vld [vmem:[#allocation3 + $0x20] sm:$0xff]
        %v1348 = vld [vmem:[#allocation3 + $0x30] sm:$0xff]
        %v1349 = vld [vmem:[#allocation3 + $0x40] sm:$0xff]
        %v1350 = vld [vmem:[#allocation3 + $0x50] sm:$0xff]
        %v1351 = vld [vmem:[#allocation3 + $0x60] sm:$0xff]
        %v1352 = vld [vmem:[#allocation3 + $0x70] sm:$0xff]
        %v1353 = vld [vmem:[#allocation3 + $0x80] sm:$0xff]
        %v1354 = vld [vmem:[#allocation3 + $0x90] sm:$0xff]
        %v1355 = vld [vmem:[#allocation3 + $0xa0] sm:$0xff]
        %v1356 = vld [vmem:[#allocation3 + $0xb0] sm:$0xff]
        %v1357 = vld [vmem:[#allocation3 + $0xc0] sm:$0xff]
        %v1358 = vld [vmem:[#allocation3 + $0xd0] sm:$0xff]
        %v1359 = vld [vmem:[#allocation3 + $0xe0] sm:$0xff]
        %v1360 = vld [vmem:[#allocation3 + $0xf0] sm:$0xff]
        %v1361 = vld [vmem:[#allocation3 + $0x100] sm:$0xff]
        %v1362 = vld [vmem:[#allocation3 + $0x110] sm:$0xff]
        %v1363 = vld [vmem:[#allocation3 + $0x120] sm:$0xff]
        %v1364 = vld [vmem:[#allocation3 + $0x130] sm:$0xff]
        %v1365 = vld [vmem:[#allocation3 + $0x140] sm:$0xff]
        %v1366 = vld [vmem:[#allocation3 + $0x150] sm:$0xff]
        %v1367 = vld [vmem:[#allocation3 + $0x160] sm:$0xff]
        %v1368 = vld [vmem:[#allocation3 + $0x170] sm:$0xff]
        %v1369 = vld [vmem:[#allocation3 + $0x180] sm:$0xff]
        %v1370 = vld [vmem:[#allocation3 + $0x190] sm:$0xff]
        %v1371 = vld [vmem:[#allocation3 + $0x1a0] sm:$0xff]
        %v1372 = vld [vmem:[#allocation3 + $0x1b0] sm:$0xff]
        %v1373 = vld [vmem:[#allocation3 + $0x1c0] sm:$0xff]
        %v1374 = vld [vmem:[#allocation3 + $0x1d0] sm:$0xff]
        %v1375 = vld [vmem:[#allocation3 + $0x1e0] sm:$0xff]
        %v1376 = vld [vmem:[#allocation3 + $0x1f0] sm:$0xff]
        %v1377 = vld [vmem:[%s1248 + $0x1] sm:$0xff]
        %v1378 = vld [vmem:[%s1248 + $0x9] sm:$0xff]
        %v1379 = vld [vmem:[%s1248 + $0x19] sm:$0xff]
        %v1380 = vld [vmem:[%s1248 + $0x21] sm:$0xff]
        %v1381 = vld [vmem:[%s1248 + $0x31] sm:$0xff]
        %v1382 = vld [vmem:[%s1248 + $0x39] sm:$0xff]
        %v1383 = vld [vmem:[%s1248 + $0x49] sm:$0xff]
        %v1384 = vld [vmem:[%s1248 + $0x51] sm:$0xff]
        %v1385 = vld [vmem:[%s1248 + $0x61] sm:$0xff]
        %v1386 = vld [vmem:[%s1248 + $0x69] sm:$0xff]
        %v1387 = vld [vmem:[%s1248 + $0x79] sm:$0xff]
        %v1388 = vld [vmem:[%s1248 + $0x81] sm:$0xff]
        %v1389 = vld [vmem:[%s1248 + $0x91] sm:$0xff]
        %v1390 = vld [vmem:[%s1248 + $0x99] sm:$0xff]
        %v1391 = vld [vmem:[%s1248 + $0xa9] sm:$0xff]
        %v1392 = vld [vmem:[%s1248 + $0xb1] sm:$0xff]
        %v1393 = vld [vmem:[%s1248 + $0xc1] sm:$0xff]
        %v1394 = vld [vmem:[%s1248 + $0xc9] sm:$0xff]
        %v1395 = vld [vmem:[%s1248 + $0xd9] sm:$0xff]
        %v1396 = vld [vmem:[%s1248 + $0xe1] sm:$0xff]
        %v1397 = vld [vmem:[%s1248 + $0xf1] sm:$0xff]
        %v1398 = vld [vmem:[%s1248 + $0xf9] sm:$0xff]
        %v1399 = vld [vmem:[%s1248 + $0x109] sm:$0xff]
        %v1400 = vld [vmem:[%s1248 + $0x111] sm:$0xff]
        %v1401 = vld [vmem:[%s1248 + $0x121] sm:$0xff]
        %v1402 = vld [vmem:[%s1248 + $0x129] sm:$0xff]
        %v1403 = vld [vmem:[%s1248 + $0x139] sm:$0xff]
        %v1404 = vld [vmem:[%s1248 + $0x141] sm:$0xff]
        %v1405 = vld [vmem:[%s1248 + $0x151] sm:$0xff]
        %v1406 = vld [vmem:[%s1248 + $0x159] sm:$0xff]
        %v1407 = vld [vmem:[%s1248 + $0x169] sm:$0xff]
        %v1408 = vld [vmem:[%s1248 + $0x171] sm:$0xff]
        %1441 = vrot.lane.b32.xlu0 %v1377, 16
        %v1442 = vpop.permute.xlu0 %1441
        %1443 = vrot.lane.b32.xlu0 %v1378, 16
        %v1444 = vpop.permute.xlu0 %1443
        %1445 = vrot.lane.b32.xlu0 %v1379, 16
        %v1446 = vpop.permute.xlu0 %1445
        %1447 = vrot.lane.b32.xlu0 %v1380, 16
        %v1448 = vpop.permute.xlu0 %1447
        %1449 = vrot.lane.b32.xlu0 %v1381, 16
        %v1450 = vpop.permute.xlu0 %1449
        %1451 = vrot.lane.b32.xlu0 %v1382, 16
        %v1452 = vpop.permute.xlu0 %1451
        %1453 = vrot.lane.b32.xlu0 %v1383, 16
        %v1454 = vpop.permute.xlu0 %1453
        %1455 = vrot.lane.b32.xlu0 %v1384, 16
        %v1456 = vpop.permute.xlu0 %1455
        %1457 = vrot.lane.b32.xlu0 %v1385, 16
        %v1458 = vpop.permute.xlu0 %1457
        %1459 = vrot.lane.b32.xlu0 %v1386, 16
        %v1460 = vpop.permute.xlu0 %1459
        %1461 = vrot.lane.b32.xlu0 %v1387, 16
        %v1462 = vpop.permute.xlu0 %1461
        %1463 = vrot.lane.b32.xlu0 %v1388, 16
        %v1464 = vpop.permute.xlu0 %1463
        %1465 = vrot.lane.b32.xlu0 %v1389, 16
        %v1466 = vpop.permute.xlu0 %1465
        %1467 = vrot.lane.b32.xlu0 %v1390, 16
        %v1468 = vpop.permute.xlu0 %1467
        %1469 = vrot.lane.b32.xlu0 %v1391, 16
        %v1470 = vpop.permute.xlu0 %1469
        %1471 = vrot.lane.b32.xlu0 %v1392, 16
        %v1472 = vpop.permute.xlu0 %1471
        %1473 = vrot.lane.b32.xlu0 %v1393, 16
        %v1474 = vpop.permute.xlu0 %1473
        %1475 = vrot.lane.b32.xlu0 %v1394, 16
        %v1476 = vpop.permute.xlu0 %1475
        %1477 = vrot.lane.b32.xlu0 %v1395, 16
        %v1478 = vpop.permute.xlu0 %1477
        %1479 = vrot.lane.b32.xlu0 %v1396, 16
        %v1480 = vpop.permute.xlu0 %1479
        %1481 = vrot.lane.b32.xlu0 %v1397, 16
        %v1482 = vpop.permute.xlu0 %1481
        %1483 = vrot.lane.b32.xlu0 %v1398, 16
        %v1484 = vpop.permute.xlu0 %1483
        %1485 = vrot.lane.b32.xlu0 %v1399, 16
        %v1486 = vpop.permute.xlu0 %1485
        %1487 = vrot.lane.b32.xlu0 %v1400, 16
        %v1488 = vpop.permute.xlu0 %1487
        %1489 = vrot.lane.b32.xlu0 %v1401, 16
        %v1490 = vpop.permute.xlu0 %1489
        %1491 = vrot.lane.b32.xlu0 %v1402, 16
        %v1492 = vpop.permute.xlu0 %1491
        %1493 = vrot.lane.b32.xlu0 %v1403, 16
        %v1494 = vpop.permute.xlu0 %1493
        %1495 = vrot.lane.b32.xlu0 %v1404, 16
        %v1496 = vpop.permute.xlu0 %1495
        %1497 = vrot.lane.b32.xlu0 %v1405, 16
        %v1498 = vpop.permute.xlu0 %1497
        %1499 = vrot.lane.b32.xlu0 %v1406, 16
        %v1500 = vpop.permute.xlu0 %1499
        %1501 = vrot.lane.b32.xlu0 %v1407, 16
        %v1502 = vpop.permute.xlu0 %1501
        %1503 = vrot.lane.b32.xlu0 %v1408, 16
        %v1504 = vpop.permute.xlu0 %1503
        %v1537 = vmul.f32 %v1345, %v1442
        %v1538 = vmul.f32 %v1346, %v1444
        %v1539 = vmul.f32 %v1347, %v1446
        %v1540 = vmul.f32 %v1348, %v1448
        %v1541 = vmul.f32 %v1349, %v1450
        %v1542 = vmul.f32 %v1350, %v1452
        %v1543 = vmul.f32 %v1351, %v1454
        %v1544 = vmul.f32 %v1352, %v1456
        %v1545 = vmul.f32 %v1353, %v1458
        %v1546 = vmul.f32 %v1354, %v1460
        %v1547 = vmul.f32 %v1355, %v1462
        %v1548 = vmul.f32 %v1356, %v1464
        %v1549 = vmul.f32 %v1357, %v1466
        %v1550 = vmul.f32 %v1358, %v1468
        %v1551 = vmul.f32 %v1359, %v1470
        %v1552 = vmul.f32 %v1360, %v1472
        %v1553 = vmul.f32 %v1361, %v1474
        %v1554 = vmul.f32 %v1362, %v1476
        %v1555 = vmul.f32 %v1363, %v1478
        %v1556 = vmul.f32 %v1364, %v1480
        %v1557 = vmul.f32 %v1365, %v1482
        %v1558 = vmul.f32 %v1366, %v1484
        %v1559 = vmul.f32 %v1367, %v1486
        %v1560 = vmul.f32 %v1368, %v1488
        %v1561 = vmul.f32 %v1369, %v1490
        %v1562 = vmul.f32 %v1370, %v1492
        %v1563 = vmul.f32 %v1371, %v1494
        %v1564 = vmul.f32 %v1372, %v1496
        %v1565 = vmul.f32 %v1373, %v1498
        %v1566 = vmul.f32 %v1374, %v1500
        %v1567 = vmul.f32 %v1375, %v1502
        %v1568 = vmul.f32 %v1376, %v1504
        %v1569 = vld [vmem:[%s266] sm:$0xff]
        %v1570 = vld [vmem:[%s266 + $0x8] sm:$0xff]
        %v1571 = vld [vmem:[%s266 + $0x10] sm:$0xff]
        %v1572 = vld [vmem:[%s266 + $0x18] sm:$0xff]
        %v1573 = vld [vmem:[%s266 + $0x20] sm:$0xff]
        %v1574 = vld [vmem:[%s266 + $0x28] sm:$0xff]
        %v1575 = vld [vmem:[%s266 + $0x30] sm:$0xff]
        %v1576 = vld [vmem:[%s266 + $0x38] sm:$0xff]
        %v1577 = vld [vmem:[%s266 + $0x40] sm:$0xff]
        %v1578 = vld [vmem:[%s266 + $0x48] sm:$0xff]
        %v1579 = vld [vmem:[%s266 + $0x50] sm:$0xff]
        %v1580 = vld [vmem:[%s266 + $0x58] sm:$0xff]
        %v1581 = vld [vmem:[%s266 + $0x60] sm:$0xff]
        %v1582 = vld [vmem:[%s266 + $0x68] sm:$0xff]
        %v1583 = vld [vmem:[%s266 + $0x70] sm:$0xff]
        %v1584 = vld [vmem:[%s266 + $0x78] sm:$0xff]
        %v1585 = vld [vmem:[%s266 + $0x80] sm:$0xff]
        %v1586 = vld [vmem:[%s266 + $0x88] sm:$0xff]
        %v1587 = vld [vmem:[%s266 + $0x90] sm:$0xff]
        %v1588 = vld [vmem:[%s266 + $0x98] sm:$0xff]
        %v1589 = vld [vmem:[%s266 + $0xa0] sm:$0xff]
        %v1590 = vld [vmem:[%s266 + $0xa8] sm:$0xff]
        %v1591 = vld [vmem:[%s266 + $0xb0] sm:$0xff]
        %v1592 = vld [vmem:[%s266 + $0xb8] sm:$0xff]
        %v1593 = vld [vmem:[%s266 + $0xc0] sm:$0xff]
        %v1594 = vld [vmem:[%s266 + $0xc8] sm:$0xff]
        %v1595 = vld [vmem:[%s266 + $0xd0] sm:$0xff]
        %v1596 = vld [vmem:[%s266 + $0xd8] sm:$0xff]
        %v1597 = vld [vmem:[%s266 + $0xe0] sm:$0xff]
        %v1598 = vld [vmem:[%s266 + $0xe8] sm:$0xff]
        %v1599 = vld [vmem:[%s266 + $0xf0] sm:$0xff]
        %v1600 = vld [vmem:[%s266 + $0xf8] sm:$0xff]
        %1633 = vrot.lane.b32.xlu0 %v1537, 112
        %v1634 = vpop.permute.xlu0 %1633
        %1635 = vrot.lane.b32.xlu0 %v1538, 112
        %v1636 = vpop.permute.xlu0 %1635
        %1637 = vrot.lane.b32.xlu0 %v1539, 112
        %v1638 = vpop.permute.xlu0 %1637
        %1639 = vrot.lane.b32.xlu0 %v1540, 112
        %v1640 = vpop.permute.xlu0 %1639
        %1641 = vrot.lane.b32.xlu0 %v1541, 112
        %v1642 = vpop.permute.xlu0 %1641
        %1643 = vrot.lane.b32.xlu0 %v1542, 112
        %v1644 = vpop.permute.xlu0 %1643
        %1645 = vrot.lane.b32.xlu0 %v1543, 112
        %v1646 = vpop.permute.xlu0 %1645
        %1647 = vrot.lane.b32.xlu0 %v1544, 112
        %v1648 = vpop.permute.xlu0 %1647
        %1649 = vrot.lane.b32.xlu0 %v1545, 112
        %v1650 = vpop.permute.xlu0 %1649
        %1651 = vrot.lane.b32.xlu0 %v1546, 112
        %v1652 = vpop.permute.xlu0 %1651
        %1653 = vrot.lane.b32.xlu0 %v1547, 112
        %v1654 = vpop.permute.xlu0 %1653
        %1655 = vrot.lane.b32.xlu0 %v1548, 112
        %v1656 = vpop.permute.xlu0 %1655
        %1657 = vrot.lane.b32.xlu0 %v1549, 112
        %v1658 = vpop.permute.xlu0 %1657
        %1659 = vrot.lane.b32.xlu0 %v1550, 112
        %v1660 = vpop.permute.xlu0 %1659
        %1661 = vrot.lane.b32.xlu0 %v1551, 112
        %v1662 = vpop.permute.xlu0 %1661
        %1663 = vrot.lane.b32.xlu0 %v1552, 112
        %v1664 = vpop.permute.xlu0 %1663
        %1665 = vrot.lane.b32.xlu0 %v1553, 112
        %v1666 = vpop.permute.xlu0 %1665
        %1667 = vrot.lane.b32.xlu0 %v1554, 112
        %v1668 = vpop.permute.xlu0 %1667
        %1669 = vrot.lane.b32.xlu0 %v1555, 112
        %v1670 = vpop.permute.xlu0 %1669
        %1671 = vrot.lane.b32.xlu0 %v1556, 112
        %v1672 = vpop.permute.xlu0 %1671
        %1673 = vrot.lane.b32.xlu0 %v1557, 112
        %v1674 = vpop.permute.xlu0 %1673
        %1675 = vrot.lane.b32.xlu0 %v1558, 112
        %v1676 = vpop.permute.xlu0 %1675
        %1677 = vrot.lane.b32.xlu0 %v1559, 112
        %v1678 = vpop.permute.xlu0 %1677
        %1679 = vrot.lane.b32.xlu0 %v1560, 112
        %v1680 = vpop.permute.xlu0 %1679
        %1681 = vrot.lane.b32.xlu0 %v1561, 112
        %v1682 = vpop.permute.xlu0 %1681
        %1683 = vrot.lane.b32.xlu0 %v1562, 112
        %v1684 = vpop.permute.xlu0 %1683
        %1685 = vrot.lane.b32.xlu0 %v1563, 112
        %v1686 = vpop.permute.xlu0 %1685
        %1687 = vrot.lane.b32.xlu0 %v1564, 112
        %v1688 = vpop.permute.xlu0 %1687
        %1689 = vrot.lane.b32.xlu0 %v1565, 112
        %v1690 = vpop.permute.xlu0 %1689
        %1691 = vrot.lane.b32.xlu0 %v1566, 112
        %v1692 = vpop.permute.xlu0 %1691
        %1693 = vrot.lane.b32.xlu0 %v1567, 112
        %v1694 = vpop.permute.xlu0 %1693
        %1695 = vrot.lane.b32.xlu0 %v1568, 112
        %v1696 = vpop.permute.xlu0 %1695
        %v1729 = vadd.f32 %v1569, %v1634
        %v1730 = vadd.f32 %v1570, %v1636
        %v1731 = vadd.f32 %v1571, %v1638
        %v1732 = vadd.f32 %v1572, %v1640
        %v1733 = vadd.f32 %v1573, %v1642
        %v1734 = vadd.f32 %v1574, %v1644
        %v1735 = vadd.f32 %v1575, %v1646
        %v1736 = vadd.f32 %v1576, %v1648
        %v1737 = vadd.f32 %v1577, %v1650
        %v1738 = vadd.f32 %v1578, %v1652
        %v1739 = vadd.f32 %v1579, %v1654
        %v1740 = vadd.f32 %v1580, %v1656
        %v1741 = vadd.f32 %v1581, %v1658
        %v1742 = vadd.f32 %v1582, %v1660
        %v1743 = vadd.f32 %v1583, %v1662
        %v1744 = vadd.f32 %v1584, %v1664
        %v1745 = vadd.f32 %v1585, %v1666
        %v1746 = vadd.f32 %v1586, %v1668
        %v1747 = vadd.f32 %v1587, %v1670
        %v1748 = vadd.f32 %v1588, %v1672
        %v1749 = vadd.f32 %v1589, %v1674
        %v1750 = vadd.f32 %v1590, %v1676
        %v1751 = vadd.f32 %v1591, %v1678
        %v1752 = vadd.f32 %v1592, %v1680
        %v1753 = vadd.f32 %v1593, %v1682
        %v1754 = vadd.f32 %v1594, %v1684
        %v1755 = vadd.f32 %v1595, %v1686
        %v1756 = vadd.f32 %v1596, %v1688
        %v1757 = vadd.f32 %v1597, %v1690
        %v1758 = vadd.f32 %v1598, %v1692
        %v1759 = vadd.f32 %v1599, %v1694
        %v1760 = vadd.f32 %v1600, %v1696
        %1761 = vst.msk [vmem:[%s266] sm:$0xff] %vm423, %v1729
        %1762 = vst.msk [vmem:[%s266 + $0x8] sm:$0xff] %vm423, %v1730
        %1763 = vst.msk [vmem:[%s266 + $0x10] sm:$0xff] %vm423, %v1731
        %1764 = vst.msk [vmem:[%s266 + $0x18] sm:$0xff] %vm423, %v1732
        %1765 = vst.msk [vmem:[%s266 + $0x20] sm:$0xff] %vm423, %v1733
        %1766 = vst.msk [vmem:[%s266 + $0x28] sm:$0xff] %vm423, %v1734
        %1767 = vst.msk [vmem:[%s266 + $0x30] sm:$0xff] %vm423, %v1735
        %1768 = vst.msk [vmem:[%s266 + $0x38] sm:$0xff] %vm423, %v1736
        %1769 = vst.msk [vmem:[%s266 + $0x40] sm:$0xff] %vm423, %v1737
        %1770 = vst.msk [vmem:[%s266 + $0x48] sm:$0xff] %vm423, %v1738
        %1771 = vst.msk [vmem:[%s266 + $0x50] sm:$0xff] %vm423, %v1739
        %1772 = vst.msk [vmem:[%s266 + $0x58] sm:$0xff] %vm423, %v1740
        %1773 = vst.msk [vmem:[%s266 + $0x60] sm:$0xff] %vm423, %v1741
        %1774 = vst.msk [vmem:[%s266 + $0x68] sm:$0xff] %vm423, %v1742
        %1775 = vst.msk [vmem:[%s266 + $0x70] sm:$0xff] %vm423, %v1743
        %1776 = vst.msk [vmem:[%s266 + $0x78] sm:$0xff] %vm423, %v1744
        %1777 = vst.msk [vmem:[%s266 + $0x80] sm:$0xff] %vm423, %v1745
        %1778 = vst.msk [vmem:[%s266 + $0x88] sm:$0xff] %vm423, %v1746
        %1779 = vst.msk [vmem:[%s266 + $0x90] sm:$0xff] %vm423, %v1747
        %1780 = vst.msk [vmem:[%s266 + $0x98] sm:$0xff] %vm423, %v1748
        %1781 = vst.msk [vmem:[%s266 + $0xa0] sm:$0xff] %vm423, %v1749
        %1782 = vst.msk [vmem:[%s266 + $0xa8] sm:$0xff] %vm423, %v1750
        %1783 = vst.msk [vmem:[%s266 + $0xb0] sm:$0xff] %vm423, %v1751
        %1784 = vst.msk [vmem:[%s266 + $0xb8] sm:$0xff] %vm423, %v1752
        %1785 = vst.msk [vmem:[%s266 + $0xc0] sm:$0xff] %vm423, %v1753
        %1786 = vst.msk [vmem:[%s266 + $0xc8] sm:$0xff] %vm423, %v1754
        %1787 = vst.msk [vmem:[%s266 + $0xd0] sm:$0xff] %vm423, %v1755
        %1788 = vst.msk [vmem:[%s266 + $0xd8] sm:$0xff] %vm423, %v1756
        %1789 = vst.msk [vmem:[%s266 + $0xe0] sm:$0xff] %vm423, %v1757
        %1790 = vst.msk [vmem:[%s266 + $0xe8] sm:$0xff] %vm423, %v1758
        %1791 = vst.msk [vmem:[%s266 + $0xf0] sm:$0xff] %vm423, %v1759
        %1792 = vst.msk [vmem:[%s266 + $0xf8] sm:$0xff] %vm423, %v1760
        %v1793 = vld [vmem:[#allocation3] sm:$0xff]
        %v1794 = vld [vmem:[#allocation3 + $0x10] sm:$0xff]
        %v1795 = vld [vmem:[#allocation3 + $0x20] sm:$0xff]
        %v1796 = vld [vmem:[#allocation3 + $0x30] sm:$0xff]
        %v1797 = vld [vmem:[#allocation3 + $0x40] sm:$0xff]
        %v1798 = vld [vmem:[#allocation3 + $0x50] sm:$0xff]
        %v1799 = vld [vmem:[#allocation3 + $0x60] sm:$0xff]
        %v1800 = vld [vmem:[#allocation3 + $0x70] sm:$0xff]
        %v1801 = vld [vmem:[#allocation3 + $0x80] sm:$0xff]
        %v1802 = vld [vmem:[#allocation3 + $0x90] sm:$0xff]
        %v1803 = vld [vmem:[#allocation3 + $0xa0] sm:$0xff]
        %v1804 = vld [vmem:[#allocation3 + $0xb0] sm:$0xff]
        %v1805 = vld [vmem:[#allocation3 + $0xc0] sm:$0xff]
        %v1806 = vld [vmem:[#allocation3 + $0xd0] sm:$0xff]
        %v1807 = vld [vmem:[#allocation3 + $0xe0] sm:$0xff]
        %v1808 = vld [vmem:[#allocation3 + $0xf0] sm:$0xff]
        %v1809 = vld [vmem:[#allocation3 + $0x100] sm:$0xff]
        %v1810 = vld [vmem:[#allocation3 + $0x110] sm:$0xff]
        %v1811 = vld [vmem:[#allocation3 + $0x120] sm:$0xff]
        %v1812 = vld [vmem:[#allocation3 + $0x130] sm:$0xff]
        %v1813 = vld [vmem:[#allocation3 + $0x140] sm:$0xff]
        %v1814 = vld [vmem:[#allocation3 + $0x150] sm:$0xff]
        %v1815 = vld [vmem:[#allocation3 + $0x160] sm:$0xff]
        %v1816 = vld [vmem:[#allocation3 + $0x170] sm:$0xff]
        %v1817 = vld [vmem:[#allocation3 + $0x180] sm:$0xff]
        %v1818 = vld [vmem:[#allocation3 + $0x190] sm:$0xff]
        %v1819 = vld [vmem:[#allocation3 + $0x1a0] sm:$0xff]
        %v1820 = vld [vmem:[#allocation3 + $0x1b0] sm:$0xff]
        %v1821 = vld [vmem:[#allocation3 + $0x1c0] sm:$0xff]
        %v1822 = vld [vmem:[#allocation3 + $0x1d0] sm:$0xff]
        %v1823 = vld [vmem:[#allocation3 + $0x1e0] sm:$0xff]
        %v1824 = vld [vmem:[#allocation3 + $0x1f0] sm:$0xff]
        %v1825 = vld [vmem:[%s1248 + $0x2] sm:$0xff]
        %v1826 = vld [vmem:[%s1248 + $0xa] sm:$0xff]
        %v1827 = vld [vmem:[%s1248 + $0x1a] sm:$0xff]
        %v1828 = vld [vmem:[%s1248 + $0x22] sm:$0xff]
        %v1829 = vld [vmem:[%s1248 + $0x32] sm:$0xff]
        %v1830 = vld [vmem:[%s1248 + $0x3a] sm:$0xff]
        %v1831 = vld [vmem:[%s1248 + $0x4a] sm:$0xff]
        %v1832 = vld [vmem:[%s1248 + $0x52] sm:$0xff]
        %v1833 = vld [vmem:[%s1248 + $0x62] sm:$0xff]
        %v1834 = vld [vmem:[%s1248 + $0x6a] sm:$0xff]
        %v1835 = vld [vmem:[%s1248 + $0x7a] sm:$0xff]
        %v1836 = vld [vmem:[%s1248 + $0x82] sm:$0xff]
        %v1837 = vld [vmem:[%s1248 + $0x92] sm:$0xff]
        %v1838 = vld [vmem:[%s1248 + $0x9a] sm:$0xff]
        %v1839 = vld [vmem:[%s1248 + $0xaa] sm:$0xff]
        %v1840 = vld [vmem:[%s1248 + $0xb2] sm:$0xff]
        %v1841 = vld [vmem:[%s1248 + $0xc2] sm:$0xff]
        %v1842 = vld [vmem:[%s1248 + $0xca] sm:$0xff]
        %v1843 = vld [vmem:[%s1248 + $0xda] sm:$0xff]
        %v1844 = vld [vmem:[%s1248 + $0xe2] sm:$0xff]
        %v1845 = vld [vmem:[%s1248 + $0xf2] sm:$0xff]
        %v1846 = vld [vmem:[%s1248 + $0xfa] sm:$0xff]
        %v1847 = vld [vmem:[%s1248 + $0x10a] sm:$0xff]
        %v1848 = vld [vmem:[%s1248 + $0x112] sm:$0xff]
        %v1849 = vld [vmem:[%s1248 + $0x122] sm:$0xff]
        %v1850 = vld [vmem:[%s1248 + $0x12a] sm:$0xff]
        %v1851 = vld [vmem:[%s1248 + $0x13a] sm:$0xff]
        %v1852 = vld [vmem:[%s1248 + $0x142] sm:$0xff]
        %v1853 = vld [vmem:[%s1248 + $0x152] sm:$0xff]
        %v1854 = vld [vmem:[%s1248 + $0x15a] sm:$0xff]
        %v1855 = vld [vmem:[%s1248 + $0x16a] sm:$0xff]
        %v1856 = vld [vmem:[%s1248 + $0x172] sm:$0xff]
        %1889 = vrot.lane.b32.xlu0 %v1825, 32
        %v1890 = vpop.permute.xlu0 %1889
        %1891 = vrot.lane.b32.xlu0 %v1826, 32
        %v1892 = vpop.permute.xlu0 %1891
        %1893 = vrot.lane.b32.xlu0 %v1827, 32
        %v1894 = vpop.permute.xlu0 %1893
        %1895 = vrot.lane.b32.xlu0 %v1828, 32
        %v1896 = vpop.permute.xlu0 %1895
        %1897 = vrot.lane.b32.xlu0 %v1829, 32
        %v1898 = vpop.permute.xlu0 %1897
        %1899 = vrot.lane.b32.xlu0 %v1830, 32
        %v1900 = vpop.permute.xlu0 %1899
        %1901 = vrot.lane.b32.xlu0 %v1831, 32
        %v1902 = vpop.permute.xlu0 %1901
        %1903 = vrot.lane.b32.xlu0 %v1832, 32
        %v1904 = vpop.permute.xlu0 %1903
        %1905 = vrot.lane.b32.xlu0 %v1833, 32
        %v1906 = vpop.permute.xlu0 %1905
        %1907 = vrot.lane.b32.xlu0 %v1834, 32
        %v1908 = vpop.permute.xlu0 %1907
        %1909 = vrot.lane.b32.xlu0 %v1835, 32
        %v1910 = vpop.permute.xlu0 %1909
        %1911 = vrot.lane.b32.xlu0 %v1836, 32
        %v1912 = vpop.permute.xlu0 %1911
        %1913 = vrot.lane.b32.xlu0 %v1837, 32
        %v1914 = vpop.permute.xlu0 %1913
        %1915 = vrot.lane.b32.xlu0 %v1838, 32
        %v1916 = vpop.permute.xlu0 %1915
        %1917 = vrot.lane.b32.xlu0 %v1839, 32
        %v1918 = vpop.permute.xlu0 %1917
        %1919 = vrot.lane.b32.xlu0 %v1840, 32
        %v1920 = vpop.permute.xlu0 %1919
        %1921 = vrot.lane.b32.xlu0 %v1841, 32
        %v1922 = vpop.permute.xlu0 %1921
        %1923 = vrot.lane.b32.xlu0 %v1842, 32
        %v1924 = vpop.permute.xlu0 %1923
        %1925 = vrot.lane.b32.xlu0 %v1843, 32
        %v1926 = vpop.permute.xlu0 %1925
        %1927 = vrot.lane.b32.xlu0 %v1844, 32
        %v1928 = vpop.permute.xlu0 %1927
        %1929 = vrot.lane.b32.xlu0 %v1845, 32
        %v1930 = vpop.permute.xlu0 %1929
        %1931 = vrot.lane.b32.xlu0 %v1846, 32
        %v1932 = vpop.permute.xlu0 %1931
        %1933 = vrot.lane.b32.xlu0 %v1847, 32
        %v1934 = vpop.permute.xlu0 %1933
        %1935 = vrot.lane.b32.xlu0 %v1848, 32
        %v1936 = vpop.permute.xlu0 %1935
        %1937 = vrot.lane.b32.xlu0 %v1849, 32
        %v1938 = vpop.permute.xlu0 %1937
        %1939 = vrot.lane.b32.xlu0 %v1850, 32
        %v1940 = vpop.permute.xlu0 %1939
        %1941 = vrot.lane.b32.xlu0 %v1851, 32
        %v1942 = vpop.permute.xlu0 %1941
        %1943 = vrot.lane.b32.xlu0 %v1852, 32
        %v1944 = vpop.permute.xlu0 %1943
        %1945 = vrot.lane.b32.xlu0 %v1853, 32
        %v1946 = vpop.permute.xlu0 %1945
        %1947 = vrot.lane.b32.xlu0 %v1854, 32
        %v1948 = vpop.permute.xlu0 %1947
        %1949 = vrot.lane.b32.xlu0 %v1855, 32
        %v1950 = vpop.permute.xlu0 %1949
        %1951 = vrot.lane.b32.xlu0 %v1856, 32
        %v1952 = vpop.permute.xlu0 %1951
        %v1985 = vmul.f32 %v1793, %v1890
        %v1986 = vmul.f32 %v1794, %v1892
        %v1987 = vmul.f32 %v1795, %v1894
        %v1988 = vmul.f32 %v1796, %v1896
        %v1989 = vmul.f32 %v1797, %v1898
        %v1990 = vmul.f32 %v1798, %v1900
        %v1991 = vmul.f32 %v1799, %v1902
        %v1992 = vmul.f32 %v1800, %v1904
        %v1993 = vmul.f32 %v1801, %v1906
        %v1994 = vmul.f32 %v1802, %v1908
        %v1995 = vmul.f32 %v1803, %v1910
        %v1996 = vmul.f32 %v1804, %v1912
        %v1997 = vmul.f32 %v1805, %v1914
        %v1998 = vmul.f32 %v1806, %v1916
        %v1999 = vmul.f32 %v1807, %v1918
        %v2000 = vmul.f32 %v1808, %v1920
        %v2001 = vmul.f32 %v1809, %v1922
        %v2002 = vmul.f32 %v1810, %v1924
        %v2003 = vmul.f32 %v1811, %v1926
        %v2004 = vmul.f32 %v1812, %v1928
        %v2005 = vmul.f32 %v1813, %v1930
        %v2006 = vmul.f32 %v1814, %v1932
        %v2007 = vmul.f32 %v1815, %v1934
        %v2008 = vmul.f32 %v1816, %v1936
        %v2009 = vmul.f32 %v1817, %v1938
        %v2010 = vmul.f32 %v1818, %v1940
        %v2011 = vmul.f32 %v1819, %v1942
        %v2012 = vmul.f32 %v1820, %v1944
        %v2013 = vmul.f32 %v1821, %v1946
        %v2014 = vmul.f32 %v1822, %v1948
        %v2015 = vmul.f32 %v1823, %v1950
        %v2016 = vmul.f32 %v1824, %v1952
        %v2017 = vld [vmem:[%s266] sm:$0xff]
        %v2018 = vld [vmem:[%s266 + $0x8] sm:$0xff]
        %v2019 = vld [vmem:[%s266 + $0x10] sm:$0xff]
        %v2020 = vld [vmem:[%s266 + $0x18] sm:$0xff]
        %v2021 = vld [vmem:[%s266 + $0x20] sm:$0xff]
        %v2022 = vld [vmem:[%s266 + $0x28] sm:$0xff]
        %v2023 = vld [vmem:[%s266 + $0x30] sm:$0xff]
        %v2024 = vld [vmem:[%s266 + $0x38] sm:$0xff]
        %v2025 = vld [vmem:[%s266 + $0x40] sm:$0xff]
        %v2026 = vld [vmem:[%s266 + $0x48] sm:$0xff]
        %v2027 = vld [vmem:[%s266 + $0x50] sm:$0xff]
        %v2028 = vld [vmem:[%s266 + $0x58] sm:$0xff]
        %v2029 = vld [vmem:[%s266 + $0x60] sm:$0xff]
        %v2030 = vld [vmem:[%s266 + $0x68] sm:$0xff]
        %v2031 = vld [vmem:[%s266 + $0x70] sm:$0xff]
        %v2032 = vld [vmem:[%s266 + $0x78] sm:$0xff]
        %v2033 = vld [vmem:[%s266 + $0x80] sm:$0xff]
        %v2034 = vld [vmem:[%s266 + $0x88] sm:$0xff]
        %v2035 = vld [vmem:[%s266 + $0x90] sm:$0xff]
        %v2036 = vld [vmem:[%s266 + $0x98] sm:$0xff]
        %v2037 = vld [vmem:[%s266 + $0xa0] sm:$0xff]
        %v2038 = vld [vmem:[%s266 + $0xa8] sm:$0xff]
        %v2039 = vld [vmem:[%s266 + $0xb0] sm:$0xff]
        %v2040 = vld [vmem:[%s266 + $0xb8] sm:$0xff]
        %v2041 = vld [vmem:[%s266 + $0xc0] sm:$0xff]
        %v2042 = vld [vmem:[%s266 + $0xc8] sm:$0xff]
        %v2043 = vld [vmem:[%s266 + $0xd0] sm:$0xff]
        %v2044 = vld [vmem:[%s266 + $0xd8] sm:$0xff]
        %v2045 = vld [vmem:[%s266 + $0xe0] sm:$0xff]
        %v2046 = vld [vmem:[%s266 + $0xe8] sm:$0xff]
        %v2047 = vld [vmem:[%s266 + $0xf0] sm:$0xff]
        %v2048 = vld [vmem:[%s266 + $0xf8] sm:$0xff]
        %2081 = vrot.lane.b32.xlu0 %v1985, 96
        %v2082 = vpop.permute.xlu0 %2081
        %2083 = vrot.lane.b32.xlu0 %v1986, 96
        %v2084 = vpop.permute.xlu0 %2083
        %2085 = vrot.lane.b32.xlu0 %v1987, 96
        %v2086 = vpop.permute.xlu0 %2085
        %2087 = vrot.lane.b32.xlu0 %v1988, 96
        %v2088 = vpop.permute.xlu0 %2087
        %2089 = vrot.lane.b32.xlu0 %v1989, 96
        %v2090 = vpop.permute.xlu0 %2089
        %2091 = vrot.lane.b32.xlu0 %v1990, 96
        %v2092 = vpop.permute.xlu0 %2091
        %2093 = vrot.lane.b32.xlu0 %v1991, 96
        %v2094 = vpop.permute.xlu0 %2093
        %2095 = vrot.lane.b32.xlu0 %v1992, 96
        %v2096 = vpop.permute.xlu0 %2095
        %2097 = vrot.lane.b32.xlu0 %v1993, 96
        %v2098 = vpop.permute.xlu0 %2097
        %2099 = vrot.lane.b32.xlu0 %v1994, 96
        %v2100 = vpop.permute.xlu0 %2099
        %2101 = vrot.lane.b32.xlu0 %v1995, 96
        %v2102 = vpop.permute.xlu0 %2101
        %2103 = vrot.lane.b32.xlu0 %v1996, 96
        %v2104 = vpop.permute.xlu0 %2103
        %2105 = vrot.lane.b32.xlu0 %v1997, 96
        %v2106 = vpop.permute.xlu0 %2105
        %2107 = vrot.lane.b32.xlu0 %v1998, 96
        %v2108 = vpop.permute.xlu0 %2107
        %2109 = vrot.lane.b32.xlu0 %v1999, 96
        %v2110 = vpop.permute.xlu0 %2109
        %2111 = vrot.lane.b32.xlu0 %v2000, 96
        %v2112 = vpop.permute.xlu0 %2111
        %2113 = vrot.lane.b32.xlu0 %v2001, 96
        %v2114 = vpop.permute.xlu0 %2113
        %2115 = vrot.lane.b32.xlu0 %v2002, 96
        %v2116 = vpop.permute.xlu0 %2115
        %2117 = vrot.lane.b32.xlu0 %v2003, 96
        %v2118 = vpop.permute.xlu0 %2117
        %2119 = vrot.lane.b32.xlu0 %v2004, 96
        %v2120 = vpop.permute.xlu0 %2119
        %2121 = vrot.lane.b32.xlu0 %v2005, 96
        %v2122 = vpop.permute.xlu0 %2121
        %2123 = vrot.lane.b32.xlu0 %v2006, 96
        %v2124 = vpop.permute.xlu0 %2123
        %2125 = vrot.lane.b32.xlu0 %v2007, 96
        %v2126 = vpop.permute.xlu0 %2125
        %2127 = vrot.lane.b32.xlu0 %v2008, 96
        %v2128 = vpop.permute.xlu0 %2127
        %2129 = vrot.lane.b32.xlu0 %v2009, 96
        %v2130 = vpop.permute.xlu0 %2129
        %2131 = vrot.lane.b32.xlu0 %v2010, 96
        %v2132 = vpop.permute.xlu0 %2131
        %2133 = vrot.lane.b32.xlu0 %v2011, 96
        %v2134 = vpop.permute.xlu0 %2133
        %2135 = vrot.lane.b32.xlu0 %v2012, 96
        %v2136 = vpop.permute.xlu0 %2135
        %2137 = vrot.lane.b32.xlu0 %v2013, 96
        %v2138 = vpop.permute.xlu0 %2137
        %2139 = vrot.lane.b32.xlu0 %v2014, 96
        %v2140 = vpop.permute.xlu0 %2139
        %2141 = vrot.lane.b32.xlu0 %v2015, 96
        %v2142 = vpop.permute.xlu0 %2141
        %2143 = vrot.lane.b32.xlu0 %v2016, 96
        %v2144 = vpop.permute.xlu0 %2143
        %v2177 = vadd.f32 %v2017, %v2082
        %v2178 = vadd.f32 %v2018, %v2084
        %v2179 = vadd.f32 %v2019, %v2086
        %v2180 = vadd.f32 %v2020, %v2088
        %v2181 = vadd.f32 %v2021, %v2090
        %v2182 = vadd.f32 %v2022, %v2092
        %v2183 = vadd.f32 %v2023, %v2094
        %v2184 = vadd.f32 %v2024, %v2096
        %v2185 = vadd.f32 %v2025, %v2098
        %v2186 = vadd.f32 %v2026, %v2100
        %v2187 = vadd.f32 %v2027, %v2102
        %v2188 = vadd.f32 %v2028, %v2104
        %v2189 = vadd.f32 %v2029, %v2106
        %v2190 = vadd.f32 %v2030, %v2108
        %v2191 = vadd.f32 %v2031, %v2110
        %v2192 = vadd.f32 %v2032, %v2112
        %v2193 = vadd.f32 %v2033, %v2114
        %v2194 = vadd.f32 %v2034, %v2116
        %v2195 = vadd.f32 %v2035, %v2118
        %v2196 = vadd.f32 %v2036, %v2120
        %v2197 = vadd.f32 %v2037, %v2122
        %v2198 = vadd.f32 %v2038, %v2124
        %v2199 = vadd.f32 %v2039, %v2126
        %v2200 = vadd.f32 %v2040, %v2128
        %v2201 = vadd.f32 %v2041, %v2130
        %v2202 = vadd.f32 %v2042, %v2132
        %v2203 = vadd.f32 %v2043, %v2134
        %v2204 = vadd.f32 %v2044, %v2136
        %v2205 = vadd.f32 %v2045, %v2138
        %v2206 = vadd.f32 %v2046, %v2140
        %v2207 = vadd.f32 %v2047, %v2142
        %v2208 = vadd.f32 %v2048, %v2144
        %2209 = vst.msk [vmem:[%s266] sm:$0xff] %vm423, %v2177
        %2210 = vst.msk [vmem:[%s266 + $0x8] sm:$0xff] %vm423, %v2178
        %2211 = vst.msk [vmem:[%s266 + $0x10] sm:$0xff] %vm423, %v2179
        %2212 = vst.msk [vmem:[%s266 + $0x18] sm:$0xff] %vm423, %v2180
        %2213 = vst.msk [vmem:[%s266 + $0x20] sm:$0xff] %vm423, %v2181
        %2214 = vst.msk [vmem:[%s266 + $0x28] sm:$0xff] %vm423, %v2182
        %2215 = vst.msk [vmem:[%s266 + $0x30] sm:$0xff] %vm423, %v2183
        %2216 = vst.msk [vmem:[%s266 + $0x38] sm:$0xff] %vm423, %v2184
        %2217 = vst.msk [vmem:[%s266 + $0x40] sm:$0xff] %vm423, %v2185
        %2218 = vst.msk [vmem:[%s266 + $0x48] sm:$0xff] %vm423, %v2186
        %2219 = vst.msk [vmem:[%s266 + $0x50] sm:$0xff] %vm423, %v2187
        %2220 = vst.msk [vmem:[%s266 + $0x58] sm:$0xff] %vm423, %v2188
        %2221 = vst.msk [vmem:[%s266 + $0x60] sm:$0xff] %vm423, %v2189
        %2222 = vst.msk [vmem:[%s266 + $0x68] sm:$0xff] %vm423, %v2190
        %2223 = vst.msk [vmem:[%s266 + $0x70] sm:$0xff] %vm423, %v2191
        %2224 = vst.msk [vmem:[%s266 + $0x78] sm:$0xff] %vm423, %v2192
        %2225 = vst.msk [vmem:[%s266 + $0x80] sm:$0xff] %vm423, %v2193
        %2226 = vst.msk [vmem:[%s266 + $0x88] sm:$0xff] %vm423, %v2194
        %2227 = vst.msk [vmem:[%s266 + $0x90] sm:$0xff] %vm423, %v2195
        %2228 = vst.msk [vmem:[%s266 + $0x98] sm:$0xff] %vm423, %v2196
        %2229 = vst.msk [vmem:[%s266 + $0xa0] sm:$0xff] %vm423, %v2197
        %2230 = vst.msk [vmem:[%s266 + $0xa8] sm:$0xff] %vm423, %v2198
        %2231 = vst.msk [vmem:[%s266 + $0xb0] sm:$0xff] %vm423, %v2199
        %2232 = vst.msk [vmem:[%s266 + $0xb8] sm:$0xff] %vm423, %v2200
        %2233 = vst.msk [vmem:[%s266 + $0xc0] sm:$0xff] %vm423, %v2201
        %2234 = vst.msk [vmem:[%s266 + $0xc8] sm:$0xff] %vm423, %v2202
        %2235 = vst.msk [vmem:[%s266 + $0xd0] sm:$0xff] %vm423, %v2203
        %2236 = vst.msk [vmem:[%s266 + $0xd8] sm:$0xff] %vm423, %v2204
        %2237 = vst.msk [vmem:[%s266 + $0xe0] sm:$0xff] %vm423, %v2205
        %2238 = vst.msk [vmem:[%s266 + $0xe8] sm:$0xff] %vm423, %v2206
        %2239 = vst.msk [vmem:[%s266 + $0xf0] sm:$0xff] %vm423, %v2207
        %2240 = vst.msk [vmem:[%s266 + $0xf8] sm:$0xff] %vm423, %v2208
        %v2241 = vld [vmem:[#allocation3] sm:$0xff]
        %v2242 = vld [vmem:[#allocation3 + $0x10] sm:$0xff]
        %v2243 = vld [vmem:[#allocation3 + $0x20] sm:$0xff]
        %v2244 = vld [vmem:[#allocation3 + $0x30] sm:$0xff]
        %v2245 = vld [vmem:[#allocation3 + $0x40] sm:$0xff]
        %v2246 = vld [vmem:[#allocation3 + $0x50] sm:$0xff]
        %v2247 = vld [vmem:[#allocation3 + $0x60] sm:$0xff]
        %v2248 = vld [vmem:[#allocation3 + $0x70] sm:$0xff]
        %v2249 = vld [vmem:[#allocation3 + $0x80] sm:$0xff]
        %v2250 = vld [vmem:[#allocation3 + $0x90] sm:$0xff]
        %v2251 = vld [vmem:[#allocation3 + $0xa0] sm:$0xff]
        %v2252 = vld [vmem:[#allocation3 + $0xb0] sm:$0xff]
        %v2253 = vld [vmem:[#allocation3 + $0xc0] sm:$0xff]
        %v2254 = vld [vmem:[#allocation3 + $0xd0] sm:$0xff]
        %v2255 = vld [vmem:[#allocation3 + $0xe0] sm:$0xff]
        %v2256 = vld [vmem:[#allocation3 + $0xf0] sm:$0xff]
        %v2257 = vld [vmem:[#allocation3 + $0x100] sm:$0xff]
        %v2258 = vld [vmem:[#allocation3 + $0x110] sm:$0xff]
        %v2259 = vld [vmem:[#allocation3 + $0x120] sm:$0xff]
        %v2260 = vld [vmem:[#allocation3 + $0x130] sm:$0xff]
        %v2261 = vld [vmem:[#allocation3 + $0x140] sm:$0xff]
        %v2262 = vld [vmem:[#allocation3 + $0x150] sm:$0xff]
        %v2263 = vld [vmem:[#allocation3 + $0x160] sm:$0xff]
        %v2264 = vld [vmem:[#allocation3 + $0x170] sm:$0xff]
        %v2265 = vld [vmem:[#allocation3 + $0x180] sm:$0xff]
        %v2266 = vld [vmem:[#allocation3 + $0x190] sm:$0xff]
        %v2267 = vld [vmem:[#allocation3 + $0x1a0] sm:$0xff]
        %v2268 = vld [vmem:[#allocation3 + $0x1b0] sm:$0xff]
        %v2269 = vld [vmem:[#allocation3 + $0x1c0] sm:$0xff]
        %v2270 = vld [vmem:[#allocation3 + $0x1d0] sm:$0xff]
        %v2271 = vld [vmem:[#allocation3 + $0x1e0] sm:$0xff]
        %v2272 = vld [vmem:[#allocation3 + $0x1f0] sm:$0xff]
        %s2273 = sadd.s32 %s268, 1
        %s2274 = smul.u32 %s2273, 24
        %s2275 = scalar_lea.vmem [#allocation2], %s2274
        %v2276 = vld [vmem:[%s2275] sm:$0xff]
        %v2277 = vld [vmem:[%s2275 + $0x8] sm:$0xff]
        %v2278 = vld [vmem:[%s2275 + $0x18] sm:$0xff]
        %v2279 = vld [vmem:[%s2275 + $0x20] sm:$0xff]
        %v2280 = vld [vmem:[%s2275 + $0x30] sm:$0xff]
        %v2281 = vld [vmem:[%s2275 + $0x38] sm:$0xff]
        %v2282 = vld [vmem:[%s2275 + $0x48] sm:$0xff]
        %v2283 = vld [vmem:[%s2275 + $0x50] sm:$0xff]
        %v2284 = vld [vmem:[%s2275 + $0x60] sm:$0xff]
        %v2285 = vld [vmem:[%s2275 + $0x68] sm:$0xff]
        %v2286 = vld [vmem:[%s2275 + $0x78] sm:$0xff]
        %v2287 = vld [vmem:[%s2275 + $0x80] sm:$0xff]
        %v2288 = vld [vmem:[%s2275 + $0x90] sm:$0xff]
        %v2289 = vld [vmem:[%s2275 + $0x98] sm:$0xff]
        %v2290 = vld [vmem:[%s2275 + $0xa8] sm:$0xff]
        %v2291 = vld [vmem:[%s2275 + $0xb0] sm:$0xff]
        %v2292 = vld [vmem:[%s2275 + $0xc0] sm:$0xff]
        %v2293 = vld [vmem:[%s2275 + $0xc8] sm:$0xff]
        %v2294 = vld [vmem:[%s2275 + $0xd8] sm:$0xff]
        %v2295 = vld [vmem:[%s2275 + $0xe0] sm:$0xff]
        %v2296 = vld [vmem:[%s2275 + $0xf0] sm:$0xff]
        %v2297 = vld [vmem:[%s2275 + $0xf8] sm:$0xff]
        %v2298 = vld [vmem:[%s2275 + $0x108] sm:$0xff]
        %v2299 = vld [vmem:[%s2275 + $0x110] sm:$0xff]
        %v2300 = vld [vmem:[%s2275 + $0x120] sm:$0xff]
        %v2301 = vld [vmem:[%s2275 + $0x128] sm:$0xff]
        %v2302 = vld [vmem:[%s2275 + $0x138] sm:$0xff]
        %v2303 = vld [vmem:[%s2275 + $0x140] sm:$0xff]
        %v2304 = vld [vmem:[%s2275 + $0x150] sm:$0xff]
        %v2305 = vld [vmem:[%s2275 + $0x158] sm:$0xff]
        %v2306 = vld [vmem:[%s2275 + $0x168] sm:$0xff]
        %v2307 = vld [vmem:[%s2275 + $0x170] sm:$0xff]
        %2340 = vrot.lane.b32.xlu0 %v2276, 48
        %v2341 = vpop.permute.xlu0 %2340
        %2342 = vrot.lane.b32.xlu0 %v2277, 48
        %v2343 = vpop.permute.xlu0 %2342
        %2344 = vrot.lane.b32.xlu0 %v2278, 48
        %v2345 = vpop.permute.xlu0 %2344
        %2346 = vrot.lane.b32.xlu0 %v2279, 48
        %v2347 = vpop.permute.xlu0 %2346
        %2348 = vrot.lane.b32.xlu0 %v2280, 48
        %v2349 = vpop.permute.xlu0 %2348
        %2350 = vrot.lane.b32.xlu0 %v2281, 48
        %v2351 = vpop.permute.xlu0 %2350
        %2352 = vrot.lane.b32.xlu0 %v2282, 48
        %v2353 = vpop.permute.xlu0 %2352
        %2354 = vrot.lane.b32.xlu0 %v2283, 48
        %v2355 = vpop.permute.xlu0 %2354
        %2356 = vrot.lane.b32.xlu0 %v2284, 48
        %v2357 = vpop.permute.xlu0 %2356
        %2358 = vrot.lane.b32.xlu0 %v2285, 48
        %v2359 = vpop.permute.xlu0 %2358
        %2360 = vrot.lane.b32.xlu0 %v2286, 48
        %v2361 = vpop.permute.xlu0 %2360
        %2362 = vrot.lane.b32.xlu0 %v2287, 48
        %v2363 = vpop.permute.xlu0 %2362
        %2364 = vrot.lane.b32.xlu0 %v2288, 48
        %v2365 = vpop.permute.xlu0 %2364
        %2366 = vrot.lane.b32.xlu0 %v2289, 48
        %v2367 = vpop.permute.xlu0 %2366
        %2368 = vrot.lane.b32.xlu0 %v2290, 48
        %v2369 = vpop.permute.xlu0 %2368
        %2370 = vrot.lane.b32.xlu0 %v2291, 48
        %v2371 = vpop.permute.xlu0 %2370
        %2372 = vrot.lane.b32.xlu0 %v2292, 48
        %v2373 = vpop.permute.xlu0 %2372
        %2374 = vrot.lane.b32.xlu0 %v2293, 48
        %v2375 = vpop.permute.xlu0 %2374
        %2376 = vrot.lane.b32.xlu0 %v2294, 48
        %v2377 = vpop.permute.xlu0 %2376
        %2378 = vrot.lane.b32.xlu0 %v2295, 48
        %v2379 = vpop.permute.xlu0 %2378
        %2380 = vrot.lane.b32.xlu0 %v2296, 48
        %v2381 = vpop.permute.xlu0 %2380
        %2382 = vrot.lane.b32.xlu0 %v2297, 48
        %v2383 = vpop.permute.xlu0 %2382
        %2384 = vrot.lane.b32.xlu0 %v2298, 48
        %v2385 = vpop.permute.xlu0 %2384
        %2386 = vrot.lane.b32.xlu0 %v2299, 48
        %v2387 = vpop.permute.xlu0 %2386
        %2388 = vrot.lane.b32.xlu0 %v2300, 48
        %v2389 = vpop.permute.xlu0 %2388
        %2390 = vrot.lane.b32.xlu0 %v2301, 48
        %v2391 = vpop.permute.xlu0 %2390
        %2392 = vrot.lane.b32.xlu0 %v2302, 48
        %v2393 = vpop.permute.xlu0 %2392
        %2394 = vrot.lane.b32.xlu0 %v2303, 48
        %v2395 = vpop.permute.xlu0 %2394
        %2396 = vrot.lane.b32.xlu0 %v2304, 48
        %v2397 = vpop.permute.xlu0 %2396
        %2398 = vrot.lane.b32.xlu0 %v2305, 48
        %v2399 = vpop.permute.xlu0 %2398
        %2400 = vrot.lane.b32.xlu0 %v2306, 48
        %v2401 = vpop.permute.xlu0 %2400
        %2402 = vrot.lane.b32.xlu0 %v2307, 48
        %v2403 = vpop.permute.xlu0 %2402
        %v2436 = vmul.f32 %v2241, %v2341
        %v2437 = vmul.f32 %v2242, %v2343
        %v2438 = vmul.f32 %v2243, %v2345
        %v2439 = vmul.f32 %v2244, %v2347
        %v2440 = vmul.f32 %v2245, %v2349
        %v2441 = vmul.f32 %v2246, %v2351
        %v2442 = vmul.f32 %v2247, %v2353
        %v2443 = vmul.f32 %v2248, %v2355
        %v2444 = vmul.f32 %v2249, %v2357
        %v2445 = vmul.f32 %v2250, %v2359
        %v2446 = vmul.f32 %v2251, %v2361
        %v2447 = vmul.f32 %v2252, %v2363
        %v2448 = vmul.f32 %v2253, %v2365
        %v2449 = vmul.f32 %v2254, %v2367
        %v2450 = vmul.f32 %v2255, %v2369
        %v2451 = vmul.f32 %v2256, %v2371
        %v2452 = vmul.f32 %v2257, %v2373
        %v2453 = vmul.f32 %v2258, %v2375
        %v2454 = vmul.f32 %v2259, %v2377
        %v2455 = vmul.f32 %v2260, %v2379
        %v2456 = vmul.f32 %v2261, %v2381
        %v2457 = vmul.f32 %v2262, %v2383
        %v2458 = vmul.f32 %v2263, %v2385
        %v2459 = vmul.f32 %v2264, %v2387
        %v2460 = vmul.f32 %v2265, %v2389
        %v2461 = vmul.f32 %v2266, %v2391
        %v2462 = vmul.f32 %v2267, %v2393
        %v2463 = vmul.f32 %v2268, %v2395
        %v2464 = vmul.f32 %v2269, %v2397
        %v2465 = vmul.f32 %v2270, %v2399
        %v2466 = vmul.f32 %v2271, %v2401
        %v2467 = vmul.f32 %v2272, %v2403
        %v2468 = vld [vmem:[%s266] sm:$0xff]
        %v2469 = vld [vmem:[%s266 + $0x8] sm:$0xff]
        %v2470 = vld [vmem:[%s266 + $0x10] sm:$0xff]
        %v2471 = vld [vmem:[%s266 + $0x18] sm:$0xff]
        %v2472 = vld [vmem:[%s266 + $0x20] sm:$0xff]
        %v2473 = vld [vmem:[%s266 + $0x28] sm:$0xff]
        %v2474 = vld [vmem:[%s266 + $0x30] sm:$0xff]
        %v2475 = vld [vmem:[%s266 + $0x38] sm:$0xff]
        %v2476 = vld [vmem:[%s266 + $0x40] sm:$0xff]
        %v2477 = vld [vmem:[%s266 + $0x48] sm:$0xff]
        %v2478 = vld [vmem:[%s266 + $0x50] sm:$0xff]
        %v2479 = vld [vmem:[%s266 + $0x58] sm:$0xff]
        %v2480 = vld [vmem:[%s266 + $0x60] sm:$0xff]
        %v2481 = vld [vmem:[%s266 + $0x68] sm:$0xff]
        %v2482 = vld [vmem:[%s266 + $0x70] sm:$0xff]
        %v2483 = vld [vmem:[%s266 + $0x78] sm:$0xff]
        %v2484 = vld [vmem:[%s266 + $0x80] sm:$0xff]
        %v2485 = vld [vmem:[%s266 + $0x88] sm:$0xff]
        %v2486 = vld [vmem:[%s266 + $0x90] sm:$0xff]
        %v2487 = vld [vmem:[%s266 + $0x98] sm:$0xff]
        %v2488 = vld [vmem:[%s266 + $0xa0] sm:$0xff]
        %v2489 = vld [vmem:[%s266 + $0xa8] sm:$0xff]
        %v2490 = vld [vmem:[%s266 + $0xb0] sm:$0xff]
        %v2491 = vld [vmem:[%s266 + $0xb8] sm:$0xff]
        %v2492 = vld [vmem:[%s266 + $0xc0] sm:$0xff]
        %v2493 = vld [vmem:[%s266 + $0xc8] sm:$0xff]
        %v2494 = vld [vmem:[%s266 + $0xd0] sm:$0xff]
        %v2495 = vld [vmem:[%s266 + $0xd8] sm:$0xff]
        %v2496 = vld [vmem:[%s266 + $0xe0] sm:$0xff]
        %v2497 = vld [vmem:[%s266 + $0xe8] sm:$0xff]
        %v2498 = vld [vmem:[%s266 + $0xf0] sm:$0xff]
        %v2499 = vld [vmem:[%s266 + $0xf8] sm:$0xff]
        %2532 = vrot.lane.b32.xlu0 %v2436, 80
        %v2533 = vpop.permute.xlu0 %2532
        %2534 = vrot.lane.b32.xlu0 %v2437, 80
        %v2535 = vpop.permute.xlu0 %2534
        %2536 = vrot.lane.b32.xlu0 %v2438, 80
        %v2537 = vpop.permute.xlu0 %2536
        %2538 = vrot.lane.b32.xlu0 %v2439, 80
        %v2539 = vpop.permute.xlu0 %2538
        %2540 = vrot.lane.b32.xlu0 %v2440, 80
        %v2541 = vpop.permute.xlu0 %2540
        %2542 = vrot.lane.b32.xlu0 %v2441, 80
        %v2543 = vpop.permute.xlu0 %2542
        %2544 = vrot.lane.b32.xlu0 %v2442, 80
        %v2545 = vpop.permute.xlu0 %2544
        %2546 = vrot.lane.b32.xlu0 %v2443, 80
        %v2547 = vpop.permute.xlu0 %2546
        %2548 = vrot.lane.b32.xlu0 %v2444, 80
        %v2549 = vpop.permute.xlu0 %2548
        %2550 = vrot.lane.b32.xlu0 %v2445, 80
        %v2551 = vpop.permute.xlu0 %2550
        %2552 = vrot.lane.b32.xlu0 %v2446, 80
        %v2553 = vpop.permute.xlu0 %2552
        %2554 = vrot.lane.b32.xlu0 %v2447, 80
        %v2555 = vpop.permute.xlu0 %2554
        %2556 = vrot.lane.b32.xlu0 %v2448, 80
        %v2557 = vpop.permute.xlu0 %2556
        %2558 = vrot.lane.b32.xlu0 %v2449, 80
        %v2559 = vpop.permute.xlu0 %2558
        %2560 = vrot.lane.b32.xlu0 %v2450, 80
        %v2561 = vpop.permute.xlu0 %2560
        %2562 = vrot.lane.b32.xlu0 %v2451, 80
        %v2563 = vpop.permute.xlu0 %2562
        %2564 = vrot.lane.b32.xlu0 %v2452, 80
        %v2565 = vpop.permute.xlu0 %2564
        %2566 = vrot.lane.b32.xlu0 %v2453, 80
        %v2567 = vpop.permute.xlu0 %2566
        %2568 = vrot.lane.b32.xlu0 %v2454, 80
        %v2569 = vpop.permute.xlu0 %2568
        %2570 = vrot.lane.b32.xlu0 %v2455, 80
        %v2571 = vpop.permute.xlu0 %2570
        %2572 = vrot.lane.b32.xlu0 %v2456, 80
        %v2573 = vpop.permute.xlu0 %2572
        %2574 = vrot.lane.b32.xlu0 %v2457, 80
        %v2575 = vpop.permute.xlu0 %2574
        %2576 = vrot.lane.b32.xlu0 %v2458, 80
        %v2577 = vpop.permute.xlu0 %2576
        %2578 = vrot.lane.b32.xlu0 %v2459, 80
        %v2579 = vpop.permute.xlu0 %2578
        %2580 = vrot.lane.b32.xlu0 %v2460, 80
        %v2581 = vpop.permute.xlu0 %2580
        %2582 = vrot.lane.b32.xlu0 %v2461, 80
        %v2583 = vpop.permute.xlu0 %2582
        %2584 = vrot.lane.b32.xlu0 %v2462, 80
        %v2585 = vpop.permute.xlu0 %2584
        %2586 = vrot.lane.b32.xlu0 %v2463, 80
        %v2587 = vpop.permute.xlu0 %2586
        %2588 = vrot.lane.b32.xlu0 %v2464, 80
        %v2589 = vpop.permute.xlu0 %2588
        %2590 = vrot.lane.b32.xlu0 %v2465, 80
        %v2591 = vpop.permute.xlu0 %2590
        %2592 = vrot.lane.b32.xlu0 %v2466, 80
        %v2593 = vpop.permute.xlu0 %2592
        %2594 = vrot.lane.b32.xlu0 %v2467, 80
        %v2595 = vpop.permute.xlu0 %2594
        %v2628 = vadd.f32 %v2468, %v2533
        %v2629 = vadd.f32 %v2469, %v2535
        %v2630 = vadd.f32 %v2470, %v2537
        %v2631 = vadd.f32 %v2471, %v2539
        %v2632 = vadd.f32 %v2472, %v2541
        %v2633 = vadd.f32 %v2473, %v2543
        %v2634 = vadd.f32 %v2474, %v2545
        %v2635 = vadd.f32 %v2475, %v2547
        %v2636 = vadd.f32 %v2476, %v2549
        %v2637 = vadd.f32 %v2477, %v2551
        %v2638 = vadd.f32 %v2478, %v2553
        %v2639 = vadd.f32 %v2479, %v2555
        %v2640 = vadd.f32 %v2480, %v2557
        %v2641 = vadd.f32 %v2481, %v2559
        %v2642 = vadd.f32 %v2482, %v2561
        %v2643 = vadd.f32 %v2483, %v2563
        %v2644 = vadd.f32 %v2484, %v2565
        %v2645 = vadd.f32 %v2485, %v2567
        %v2646 = vadd.f32 %v2486, %v2569
        %v2647 = vadd.f32 %v2487, %v2571
        %v2648 = vadd.f32 %v2488, %v2573
        %v2649 = vadd.f32 %v2489, %v2575
        %v2650 = vadd.f32 %v2490, %v2577
        %v2651 = vadd.f32 %v2491, %v2579
        %v2652 = vadd.f32 %v2492, %v2581
        %v2653 = vadd.f32 %v2493, %v2583
        %v2654 = vadd.f32 %v2494, %v2585
        %v2655 = vadd.f32 %v2495, %v2587
        %v2656 = vadd.f32 %v2496, %v2589
        %v2657 = vadd.f32 %v2497, %v2591
        %v2658 = vadd.f32 %v2498, %v2593
        %v2659 = vadd.f32 %v2499, %v2595
        %2660 = vst.msk [vmem:[%s266] sm:$0xff] %vm423, %v2628
        %2661 = vst.msk [vmem:[%s266 + $0x8] sm:$0xff] %vm423, %v2629
        %2662 = vst.msk [vmem:[%s266 + $0x10] sm:$0xff] %vm423, %v2630
        %2663 = vst.msk [vmem:[%s266 + $0x18] sm:$0xff] %vm423, %v2631
        %2664 = vst.msk [vmem:[%s266 + $0x20] sm:$0xff] %vm423, %v2632
        %2665 = vst.msk [vmem:[%s266 + $0x28] sm:$0xff] %vm423, %v2633
        %2666 = vst.msk [vmem:[%s266 + $0x30] sm:$0xff] %vm423, %v2634
        %2667 = vst.msk [vmem:[%s266 + $0x38] sm:$0xff] %vm423, %v2635
        %2668 = vst.msk [vmem:[%s266 + $0x40] sm:$0xff] %vm423, %v2636
        %2669 = vst.msk [vmem:[%s266 + $0x48] sm:$0xff] %vm423, %v2637
        %2670 = vst.msk [vmem:[%s266 + $0x50] sm:$0xff] %vm423, %v2638
        %2671 = vst.msk [vmem:[%s266 + $0x58] sm:$0xff] %vm423, %v2639
        %2672 = vst.msk [vmem:[%s266 + $0x60] sm:$0xff] %vm423, %v2640
        %2673 = vst.msk [vmem:[%s266 + $0x68] sm:$0xff] %vm423, %v2641
        %2674 = vst.msk [vmem:[%s266 + $0x70] sm:$0xff] %vm423, %v2642
        %2675 = vst.msk [vmem:[%s266 + $0x78] sm:$0xff] %vm423, %v2643
        %2676 = vst.msk [vmem:[%s266 + $0x80] sm:$0xff] %vm423, %v2644
        %2677 = vst.msk [vmem:[%s266 + $0x88] sm:$0xff] %vm423, %v2645
        %2678 = vst.msk [vmem:[%s266 + $0x90] sm:$0xff] %vm423, %v2646
        %2679 = vst.msk [vmem:[%s266 + $0x98] sm:$0xff] %vm423, %v2647
        %2680 = vst.msk [vmem:[%s266 + $0xa0] sm:$0xff] %vm423, %v2648
        %2681 = vst.msk [vmem:[%s266 + $0xa8] sm:$0xff] %vm423, %v2649
        %2682 = vst.msk [vmem:[%s266 + $0xb0] sm:$0xff] %vm423, %v2650
        %2683 = vst.msk [vmem:[%s266 + $0xb8] sm:$0xff] %vm423, %v2651
        %2684 = vst.msk [vmem:[%s266 + $0xc0] sm:$0xff] %vm423, %v2652
        %2685 = vst.msk [vmem:[%s266 + $0xc8] sm:$0xff] %vm423, %v2653
        %2686 = vst.msk [vmem:[%s266 + $0xd0] sm:$0xff] %vm423, %v2654
        %2687 = vst.msk [vmem:[%s266 + $0xd8] sm:$0xff] %vm423, %v2655
        %2688 = vst.msk [vmem:[%s266 + $0xe0] sm:$0xff] %vm423, %v2656
        %2689 = vst.msk [vmem:[%s266 + $0xe8] sm:$0xff] %vm423, %v2657
        %2690 = vst.msk [vmem:[%s266 + $0xf0] sm:$0xff] %vm423, %v2658
        %2691 = vst.msk [vmem:[%s266 + $0xf8] sm:$0xff] %vm423, %v2659
        %v2692 = vld [vmem:[#allocation3] sm:$0xff]
        %v2693 = vld [vmem:[#allocation3 + $0x10] sm:$0xff]
        %v2694 = vld [vmem:[#allocation3 + $0x20] sm:$0xff]
        %v2695 = vld [vmem:[#allocation3 + $0x30] sm:$0xff]
        %v2696 = vld [vmem:[#allocation3 + $0x40] sm:$0xff]
        %v2697 = vld [vmem:[#allocation3 + $0x50] sm:$0xff]
        %v2698 = vld [vmem:[#allocation3 + $0x60] sm:$0xff]
        %v2699 = vld [vmem:[#allocation3 + $0x70] sm:$0xff]
        %v2700 = vld [vmem:[#allocation3 + $0x80] sm:$0xff]
        %v2701 = vld [vmem:[#allocation3 + $0x90] sm:$0xff]
        %v2702 = vld [vmem:[#allocation3 + $0xa0] sm:$0xff]
        %v2703 = vld [vmem:[#allocation3 + $0xb0] sm:$0xff]
        %v2704 = vld [vmem:[#allocation3 + $0xc0] sm:$0xff]
        %v2705 = vld [vmem:[#allocation3 + $0xd0] sm:$0xff]
        %v2706 = vld [vmem:[#allocation3 + $0xe0] sm:$0xff]
        %v2707 = vld [vmem:[#allocation3 + $0xf0] sm:$0xff]
        %v2708 = vld [vmem:[#allocation3 + $0x100] sm:$0xff]
        %v2709 = vld [vmem:[#allocation3 + $0x110] sm:$0xff]
        %v2710 = vld [vmem:[#allocation3 + $0x120] sm:$0xff]
        %v2711 = vld [vmem:[#allocation3 + $0x130] sm:$0xff]
        %v2712 = vld [vmem:[#allocation3 + $0x140] sm:$0xff]
        %v2713 = vld [vmem:[#allocation3 + $0x150] sm:$0xff]
        %v2714 = vld [vmem:[#allocation3 + $0x160] sm:$0xff]
        %v2715 = vld [vmem:[#allocation3 + $0x170] sm:$0xff]
        %v2716 = vld [vmem:[#allocation3 + $0x180] sm:$0xff]
        %v2717 = vld [vmem:[#allocation3 + $0x190] sm:$0xff]
        %v2718 = vld [vmem:[#allocation3 + $0x1a0] sm:$0xff]
        %v2719 = vld [vmem:[#allocation3 + $0x1b0] sm:$0xff]
        %v2720 = vld [vmem:[#allocation3 + $0x1c0] sm:$0xff]
        %v2721 = vld [vmem:[#allocation3 + $0x1d0] sm:$0xff]
        %v2722 = vld [vmem:[#allocation3 + $0x1e0] sm:$0xff]
        %v2723 = vld [vmem:[#allocation3 + $0x1f0] sm:$0xff]
        %v2724 = vld [vmem:[%s2275 + $0x1] sm:$0xff]
        %v2725 = vld [vmem:[%s2275 + $0x9] sm:$0xff]
        %v2726 = vld [vmem:[%s2275 + $0x19] sm:$0xff]
        %v2727 = vld [vmem:[%s2275 + $0x21] sm:$0xff]
        %v2728 = vld [vmem:[%s2275 + $0x31] sm:$0xff]
        %v2729 = vld [vmem:[%s2275 + $0x39] sm:$0xff]
        %v2730 = vld [vmem:[%s2275 + $0x49] sm:$0xff]
        %v2731 = vld [vmem:[%s2275 + $0x51] sm:$0xff]
        %v2732 = vld [vmem:[%s2275 + $0x61] sm:$0xff]
        %v2733 = vld [vmem:[%s2275 + $0x69] sm:$0xff]
        %v2734 = vld [vmem:[%s2275 + $0x79] sm:$0xff]
        %v2735 = vld [vmem:[%s2275 + $0x81] sm:$0xff]
        %v2736 = vld [vmem:[%s2275 + $0x91] sm:$0xff]
        %v2737 = vld [vmem:[%s2275 + $0x99] sm:$0xff]
        %v2738 = vld [vmem:[%s2275 + $0xa9] sm:$0xff]
        %v2739 = vld [vmem:[%s2275 + $0xb1] sm:$0xff]
        %v2740 = vld [vmem:[%s2275 + $0xc1] sm:$0xff]
        %v2741 = vld [vmem:[%s2275 + $0xc9] sm:$0xff]
        %v2742 = vld [vmem:[%s2275 + $0xd9] sm:$0xff]
        %v2743 = vld [vmem:[%s2275 + $0xe1] sm:$0xff]
        %v2744 = vld [vmem:[%s2275 + $0xf1] sm:$0xff]
        %v2745 = vld [vmem:[%s2275 + $0xf9] sm:$0xff]
        %v2746 = vld [vmem:[%s2275 + $0x109] sm:$0xff]
        %v2747 = vld [vmem:[%s2275 + $0x111] sm:$0xff]
        %v2748 = vld [vmem:[%s2275 + $0x121] sm:$0xff]
        %v2749 = vld [vmem:[%s2275 + $0x129] sm:$0xff]
        %v2750 = vld [vmem:[%s2275 + $0x139] sm:$0xff]
        %v2751 = vld [vmem:[%s2275 + $0x141] sm:$0xff]
        %v2752 = vld [vmem:[%s2275 + $0x151] sm:$0xff]
        %v2753 = vld [vmem:[%s2275 + $0x159] sm:$0xff]
        %v2754 = vld [vmem:[%s2275 + $0x169] sm:$0xff]
        %v2755 = vld [vmem:[%s2275 + $0x171] sm:$0xff]
        %2788 = vrot.lane.b32.xlu0 %v2724, 64
        %v2789 = vpop.permute.xlu0 %2788
        %2790 = vrot.lane.b32.xlu0 %v2725, 64
        %v2791 = vpop.permute.xlu0 %2790
        %2792 = vrot.lane.b32.xlu0 %v2726, 64
        %v2793 = vpop.permute.xlu0 %2792
        %2794 = vrot.lane.b32.xlu0 %v2727, 64
        %v2795 = vpop.permute.xlu0 %2794
        %2796 = vrot.lane.b32.xlu0 %v2728, 64
        %v2797 = vpop.permute.xlu0 %2796
        %2798 = vrot.lane.b32.xlu0 %v2729, 64
        %v2799 = vpop.permute.xlu0 %2798
        %2800 = vrot.lane.b32.xlu0 %v2730, 64
        %v2801 = vpop.permute.xlu0 %2800
        %2802 = vrot.lane.b32.xlu0 %v2731, 64
        %v2803 = vpop.permute.xlu0 %2802
        %2804 = vrot.lane.b32.xlu0 %v2732, 64
        %v2805 = vpop.permute.xlu0 %2804
        %2806 = vrot.lane.b32.xlu0 %v2733, 64
        %v2807 = vpop.permute.xlu0 %2806
        %2808 = vrot.lane.b32.xlu0 %v2734, 64
        %v2809 = vpop.permute.xlu0 %2808
        %2810 = vrot.lane.b32.xlu0 %v2735, 64
        %v2811 = vpop.permute.xlu0 %2810
        %2812 = vrot.lane.b32.xlu0 %v2736, 64
        %v2813 = vpop.permute.xlu0 %2812
        %2814 = vrot.lane.b32.xlu0 %v2737, 64
        %v2815 = vpop.permute.xlu0 %2814
        %2816 = vrot.lane.b32.xlu0 %v2738, 64
        %v2817 = vpop.permute.xlu0 %2816
        %2818 = vrot.lane.b32.xlu0 %v2739, 64
        %v2819 = vpop.permute.xlu0 %2818
        %2820 = vrot.lane.b32.xlu0 %v2740, 64
        %v2821 = vpop.permute.xlu0 %2820
        %2822 = vrot.lane.b32.xlu0 %v2741, 64
        %v2823 = vpop.permute.xlu0 %2822
        %2824 = vrot.lane.b32.xlu0 %v2742, 64
        %v2825 = vpop.permute.xlu0 %2824
        %2826 = vrot.lane.b32.xlu0 %v2743, 64
        %v2827 = vpop.permute.xlu0 %2826
        %2828 = vrot.lane.b32.xlu0 %v2744, 64
        %v2829 = vpop.permute.xlu0 %2828
        %2830 = vrot.lane.b32.xlu0 %v2745, 64
        %v2831 = vpop.permute.xlu0 %2830
        %2832 = vrot.lane.b32.xlu0 %v2746, 64
        %v2833 = vpop.permute.xlu0 %2832
        %2834 = vrot.lane.b32.xlu0 %v2747, 64
        %v2835 = vpop.permute.xlu0 %2834
        %2836 = vrot.lane.b32.xlu0 %v2748, 64
        %v2837 = vpop.permute.xlu0 %2836
        %2838 = vrot.lane.b32.xlu0 %v2749, 64
        %v2839 = vpop.permute.xlu0 %2838
        %2840 = vrot.lane.b32.xlu0 %v2750, 64
        %v2841 = vpop.permute.xlu0 %2840
        %2842 = vrot.lane.b32.xlu0 %v2751, 64
        %v2843 = vpop.permute.xlu0 %2842
        %2844 = vrot.lane.b32.xlu0 %v2752, 64
        %v2845 = vpop.permute.xlu0 %2844
        %2846 = vrot.lane.b32.xlu0 %v2753, 64
        %v2847 = vpop.permute.xlu0 %2846
        %2848 = vrot.lane.b32.xlu0 %v2754, 64
        %v2849 = vpop.permute.xlu0 %2848
        %2850 = vrot.lane.b32.xlu0 %v2755, 64
        %v2851 = vpop.permute.xlu0 %2850
        %v2884 = vmul.f32 %v2692, %v2789
        %v2885 = vmul.f32 %v2693, %v2791
        %v2886 = vmul.f32 %v2694, %v2793
        %v2887 = vmul.f32 %v2695, %v2795
        %v2888 = vmul.f32 %v2696, %v2797
        %v2889 = vmul.f32 %v2697, %v2799
        %v2890 = vmul.f32 %v2698, %v2801
        %v2891 = vmul.f32 %v2699, %v2803
        %v2892 = vmul.f32 %v2700, %v2805
        %v2893 = vmul.f32 %v2701, %v2807
        %v2894 = vmul.f32 %v2702, %v2809
        %v2895 = vmul.f32 %v2703, %v2811
        %v2896 = vmul.f32 %v2704, %v2813
        %v2897 = vmul.f32 %v2705, %v2815
        %v2898 = vmul.f32 %v2706, %v2817
        %v2899 = vmul.f32 %v2707, %v2819
        %v2900 = vmul.f32 %v2708, %v2821
        %v2901 = vmul.f32 %v2709, %v2823
        %v2902 = vmul.f32 %v2710, %v2825
        %v2903 = vmul.f32 %v2711, %v2827
        %v2904 = vmul.f32 %v2712, %v2829
        %v2905 = vmul.f32 %v2713, %v2831
        %v2906 = vmul.f32 %v2714, %v2833
        %v2907 = vmul.f32 %v2715, %v2835
        %v2908 = vmul.f32 %v2716, %v2837
        %v2909 = vmul.f32 %v2717, %v2839
        %v2910 = vmul.f32 %v2718, %v2841
        %v2911 = vmul.f32 %v2719, %v2843
        %v2912 = vmul.f32 %v2720, %v2845
        %v2913 = vmul.f32 %v2721, %v2847
        %v2914 = vmul.f32 %v2722, %v2849
        %v2915 = vmul.f32 %v2723, %v2851
        %v2916 = vld [vmem:[%s266] sm:$0xff]
        %v2917 = vld [vmem:[%s266 + $0x8] sm:$0xff]
        %v2918 = vld [vmem:[%s266 + $0x10] sm:$0xff]
        %v2919 = vld [vmem:[%s266 + $0x18] sm:$0xff]
        %v2920 = vld [vmem:[%s266 + $0x20] sm:$0xff]
        %v2921 = vld [vmem:[%s266 + $0x28] sm:$0xff]
        %v2922 = vld [vmem:[%s266 + $0x30] sm:$0xff]
        %v2923 = vld [vmem:[%s266 + $0x38] sm:$0xff]
        %v2924 = vld [vmem:[%s266 + $0x40] sm:$0xff]
        %v2925 = vld [vmem:[%s266 + $0x48] sm:$0xff]
        %v2926 = vld [vmem:[%s266 + $0x50] sm:$0xff]
        %v2927 = vld [vmem:[%s266 + $0x58] sm:$0xff]
        %v2928 = vld [vmem:[%s266 + $0x60] sm:$0xff]
        %v2929 = vld [vmem:[%s266 + $0x68] sm:$0xff]
        %v2930 = vld [vmem:[%s266 + $0x70] sm:$0xff]
        %v2931 = vld [vmem:[%s266 + $0x78] sm:$0xff]
        %v2932 = vld [vmem:[%s266 + $0x80] sm:$0xff]
        %v2933 = vld [vmem:[%s266 + $0x88] sm:$0xff]
        %v2934 = vld [vmem:[%s266 + $0x90] sm:$0xff]
        %v2935 = vld [vmem:[%s266 + $0x98] sm:$0xff]
        %v2936 = vld [vmem:[%s266 + $0xa0] sm:$0xff]
        %v2937 = vld [vmem:[%s266 + $0xa8] sm:$0xff]
        %v2938 = vld [vmem:[%s266 + $0xb0] sm:$0xff]
        %v2939 = vld [vmem:[%s266 + $0xb8] sm:$0xff]
        %v2940 = vld [vmem:[%s266 + $0xc0] sm:$0xff]
        %v2941 = vld [vmem:[%s266 + $0xc8] sm:$0xff]
        %v2942 = vld [vmem:[%s266 + $0xd0] sm:$0xff]
        %v2943 = vld [vmem:[%s266 + $0xd8] sm:$0xff]
        %v2944 = vld [vmem:[%s266 + $0xe0] sm:$0xff]
        %v2945 = vld [vmem:[%s266 + $0xe8] sm:$0xff]
        %v2946 = vld [vmem:[%s266 + $0xf0] sm:$0xff]
        %v2947 = vld [vmem:[%s266 + $0xf8] sm:$0xff]
        %2980 = vrot.lane.b32.xlu0 %v2884, 64
        %v2981 = vpop.permute.xlu0 %2980
        %2982 = vrot.lane.b32.xlu0 %v2885, 64
        %v2983 = vpop.permute.xlu0 %2982
        %2984 = vrot.lane.b32.xlu0 %v2886, 64
        %v2985 = vpop.permute.xlu0 %2984
        %2986 = vrot.lane.b32.xlu0 %v2887, 64
        %v2987 = vpop.permute.xlu0 %2986
        %2988 = vrot.lane.b32.xlu0 %v2888, 64
        %v2989 = vpop.permute.xlu0 %2988
        %2990 = vrot.lane.b32.xlu0 %v2889, 64
        %v2991 = vpop.permute.xlu0 %2990
        %2992 = vrot.lane.b32.xlu0 %v2890, 64
        %v2993 = vpop.permute.xlu0 %2992
        %2994 = vrot.lane.b32.xlu0 %v2891, 64
        %v2995 = vpop.permute.xlu0 %2994
        %2996 = vrot.lane.b32.xlu0 %v2892, 64
        %v2997 = vpop.permute.xlu0 %2996
        %2998 = vrot.lane.b32.xlu0 %v2893, 64
        %v2999 = vpop.permute.xlu0 %2998
        %3000 = vrot.lane.b32.xlu0 %v2894, 64
        %v3001 = vpop.permute.xlu0 %3000
        %3002 = vrot.lane.b32.xlu0 %v2895, 64
        %v3003 = vpop.permute.xlu0 %3002
        %3004 = vrot.lane.b32.xlu0 %v2896, 64
        %v3005 = vpop.permute.xlu0 %3004
        %3006 = vrot.lane.b32.xlu0 %v2897, 64
        %v3007 = vpop.permute.xlu0 %3006
        %3008 = vrot.lane.b32.xlu0 %v2898, 64
        %v3009 = vpop.permute.xlu0 %3008
        %3010 = vrot.lane.b32.xlu0 %v2899, 64
        %v3011 = vpop.permute.xlu0 %3010
        %3012 = vrot.lane.b32.xlu0 %v2900, 64
        %v3013 = vpop.permute.xlu0 %3012
        %3014 = vrot.lane.b32.xlu0 %v2901, 64
        %v3015 = vpop.permute.xlu0 %3014
        %3016 = vrot.lane.b32.xlu0 %v2902, 64
        %v3017 = vpop.permute.xlu0 %3016
        %3018 = vrot.lane.b32.xlu0 %v2903, 64
        %v3019 = vpop.permute.xlu0 %3018
        %3020 = vrot.lane.b32.xlu0 %v2904, 64
        %v3021 = vpop.permute.xlu0 %3020
        %3022 = vrot.lane.b32.xlu0 %v2905, 64
        %v3023 = vpop.permute.xlu0 %3022
        %3024 = vrot.lane.b32.xlu0 %v2906, 64
        %v3025 = vpop.permute.xlu0 %3024
        %3026 = vrot.lane.b32.xlu0 %v2907, 64
        %v3027 = vpop.permute.xlu0 %3026
        %3028 = vrot.lane.b32.xlu0 %v2908, 64
        %v3029 = vpop.permute.xlu0 %3028
        %3030 = vrot.lane.b32.xlu0 %v2909, 64
        %v3031 = vpop.permute.xlu0 %3030
        %3032 = vrot.lane.b32.xlu0 %v2910, 64
        %v3033 = vpop.permute.xlu0 %3032
        %3034 = vrot.lane.b32.xlu0 %v2911, 64
        %v3035 = vpop.permute.xlu0 %3034
        %3036 = vrot.lane.b32.xlu0 %v2912, 64
        %v3037 = vpop.permute.xlu0 %3036
        %3038 = vrot.lane.b32.xlu0 %v2913, 64
        %v3039 = vpop.permute.xlu0 %3038
        %3040 = vrot.lane.b32.xlu0 %v2914, 64
        %v3041 = vpop.permute.xlu0 %3040
        %3042 = vrot.lane.b32.xlu0 %v2915, 64
        %v3043 = vpop.permute.xlu0 %3042
        %v3076 = vadd.f32 %v2916, %v2981
        %v3077 = vadd.f32 %v2917, %v2983
        %v3078 = vadd.f32 %v2918, %v2985
        %v3079 = vadd.f32 %v2919, %v2987
        %v3080 = vadd.f32 %v2920, %v2989
        %v3081 = vadd.f32 %v2921, %v2991
        %v3082 = vadd.f32 %v2922, %v2993
        %v3083 = vadd.f32 %v2923, %v2995
        %v3084 = vadd.f32 %v2924, %v2997
        %v3085 = vadd.f32 %v2925, %v2999
        %v3086 = vadd.f32 %v2926, %v3001
        %v3087 = vadd.f32 %v2927, %v3003
        %v3088 = vadd.f32 %v2928, %v3005
        %v3089 = vadd.f32 %v2929, %v3007
        %v3090 = vadd.f32 %v2930, %v3009
        %v3091 = vadd.f32 %v2931, %v3011
        %v3092 = vadd.f32 %v2932, %v3013
        %v3093 = vadd.f32 %v2933, %v3015
        %v3094 = vadd.f32 %v2934, %v3017
        %v3095 = vadd.f32 %v2935, %v3019
        %v3096 = vadd.f32 %v2936, %v3021
        %v3097 = vadd.f32 %v2937, %v3023
        %v3098 = vadd.f32 %v2938, %v3025
        %v3099 = vadd.f32 %v2939, %v3027
        %v3100 = vadd.f32 %v2940, %v3029
        %v3101 = vadd.f32 %v2941, %v3031
        %v3102 = vadd.f32 %v2942, %v3033
        %v3103 = vadd.f32 %v2943, %v3035
        %v3104 = vadd.f32 %v2944, %v3037
        %v3105 = vadd.f32 %v2945, %v3039
        %v3106 = vadd.f32 %v2946, %v3041
        %v3107 = vadd.f32 %v2947, %v3043
        %3108 = vst.msk [vmem:[%s266] sm:$0xff] %vm423, %v3076
        %3109 = vst.msk [vmem:[%s266 + $0x8] sm:$0xff] %vm423, %v3077
        %3110 = vst.msk [vmem:[%s266 + $0x10] sm:$0xff] %vm423, %v3078
        %3111 = vst.msk [vmem:[%s266 + $0x18] sm:$0xff] %vm423, %v3079
        %3112 = vst.msk [vmem:[%s266 + $0x20] sm:$0xff] %vm423, %v3080
        %3113 = vst.msk [vmem:[%s266 + $0x28] sm:$0xff] %vm423, %v3081
        %3114 = vst.msk [vmem:[%s266 + $0x30] sm:$0xff] %vm423, %v3082
        %3115 = vst.msk [vmem:[%s266 + $0x38] sm:$0xff] %vm423, %v3083
        %3116 = vst.msk [vmem:[%s266 + $0x40] sm:$0xff] %vm423, %v3084
        %3117 = vst.msk [vmem:[%s266 + $0x48] sm:$0xff] %vm423, %v3085
        %3118 = vst.msk [vmem:[%s266 + $0x50] sm:$0xff] %vm423, %v3086
        %3119 = vst.msk [vmem:[%s266 + $0x58] sm:$0xff] %vm423, %v3087
        %3120 = vst.msk [vmem:[%s266 + $0x60] sm:$0xff] %vm423, %v3088
        %3121 = vst.msk [vmem:[%s266 + $0x68] sm:$0xff] %vm423, %v3089
        %3122 = vst.msk [vmem:[%s266 + $0x70] sm:$0xff] %vm423, %v3090
        %3123 = vst.msk [vmem:[%s266 + $0x78] sm:$0xff] %vm423, %v3091
        %3124 = vst.msk [vmem:[%s266 + $0x80] sm:$0xff] %vm423, %v3092
        %3125 = vst.msk [vmem:[%s266 + $0x88] sm:$0xff] %vm423, %v3093
        %3126 = vst.msk [vmem:[%s266 + $0x90] sm:$0xff] %vm423, %v3094
        %3127 = vst.msk [vmem:[%s266 + $0x98] sm:$0xff] %vm423, %v3095
        %3128 = vst.msk [vmem:[%s266 + $0xa0] sm:$0xff] %vm423, %v3096
        %3129 = vst.msk [vmem:[%s266 + $0xa8] sm:$0xff] %vm423, %v3097
        %3130 = vst.msk [vmem:[%s266 + $0xb0] sm:$0xff] %vm423, %v3098
        %3131 = vst.msk [vmem:[%s266 + $0xb8] sm:$0xff] %vm423, %v3099
        %3132 = vst.msk [vmem:[%s266 + $0xc0] sm:$0xff] %vm423, %v3100
        %3133 = vst.msk [vmem:[%s266 + $0xc8] sm:$0xff] %vm423, %v3101
        %3134 = vst.msk [vmem:[%s266 + $0xd0] sm:$0xff] %vm423, %v3102
        %3135 = vst.msk [vmem:[%s266 + $0xd8] sm:$0xff] %vm423, %v3103
        %3136 = vst.msk [vmem:[%s266 + $0xe0] sm:$0xff] %vm423, %v3104
        %3137 = vst.msk [vmem:[%s266 + $0xe8] sm:$0xff] %vm423, %v3105
        %3138 = vst.msk [vmem:[%s266 + $0xf0] sm:$0xff] %vm423, %v3106
        %3139 = vst.msk [vmem:[%s266 + $0xf8] sm:$0xff] %vm423, %v3107
        %v3140 = vld [vmem:[#allocation3] sm:$0xff]
        %v3141 = vld [vmem:[#allocation3 + $0x10] sm:$0xff]
        %v3142 = vld [vmem:[#allocation3 + $0x20] sm:$0xff]
        %v3143 = vld [vmem:[#allocation3 + $0x30] sm:$0xff]
        %v3144 = vld [vmem:[#allocation3 + $0x40] sm:$0xff]
        %v3145 = vld [vmem:[#allocation3 + $0x50] sm:$0xff]
        %v3146 = vld [vmem:[#allocation3 + $0x60] sm:$0xff]
        %v3147 = vld [vmem:[#allocation3 + $0x70] sm:$0xff]
        %v3148 = vld [vmem:[#allocation3 + $0x80] sm:$0xff]
        %v3149 = vld [vmem:[#allocation3 + $0x90] sm:$0xff]
        %v3150 = vld [vmem:[#allocation3 + $0xa0] sm:$0xff]
        %v3151 = vld [vmem:[#allocation3 + $0xb0] sm:$0xff]
        %v3152 = vld [vmem:[#allocation3 + $0xc0] sm:$0xff]
        %v3153 = vld [vmem:[#allocation3 + $0xd0] sm:$0xff]
        %v3154 = vld [vmem:[#allocation3 + $0xe0] sm:$0xff]
        %v3155 = vld [vmem:[#allocation3 + $0xf0] sm:$0xff]
        %v3156 = vld [vmem:[#allocation3 + $0x100] sm:$0xff]
        %v3157 = vld [vmem:[#allocation3 + $0x110] sm:$0xff]
        %v3158 = vld [vmem:[#allocation3 + $0x120] sm:$0xff]
        %v3159 = vld [vmem:[#allocation3 + $0x130] sm:$0xff]
        %v3160 = vld [vmem:[#allocation3 + $0x140] sm:$0xff]
        %v3161 = vld [vmem:[#allocation3 + $0x150] sm:$0xff]
        %v3162 = vld [vmem:[#allocation3 + $0x160] sm:$0xff]
        %v3163 = vld [vmem:[#allocation3 + $0x170] sm:$0xff]
        %v3164 = vld [vmem:[#allocation3 + $0x180] sm:$0xff]
        %v3165 = vld [vmem:[#allocation3 + $0x190] sm:$0xff]
        %v3166 = vld [vmem:[#allocation3 + $0x1a0] sm:$0xff]
        %v3167 = vld [vmem:[#allocation3 + $0x1b0] sm:$0xff]
        %v3168 = vld [vmem:[#allocation3 + $0x1c0] sm:$0xff]
        %v3169 = vld [vmem:[#allocation3 + $0x1d0] sm:$0xff]
        %v3170 = vld [vmem:[#allocation3 + $0x1e0] sm:$0xff]
        %v3171 = vld [vmem:[#allocation3 + $0x1f0] sm:$0xff]
        %v3172 = vld [vmem:[%s2275 + $0x2] sm:$0xff]
        %v3173 = vld [vmem:[%s2275 + $0xa] sm:$0xff]
        %v3174 = vld [vmem:[%s2275 + $0x1a] sm:$0xff]
        %v3175 = vld [vmem:[%s2275 + $0x22] sm:$0xff]
        %v3176 = vld [vmem:[%s2275 + $0x32] sm:$0xff]
        %v3177 = vld [vmem:[%s2275 + $0x3a] sm:$0xff]
        %v3178 = vld [vmem:[%s2275 + $0x4a] sm:$0xff]
        %v3179 = vld [vmem:[%s2275 + $0x52] sm:$0xff]
        %v3180 = vld [vmem:[%s2275 + $0x62] sm:$0xff]
        %v3181 = vld [vmem:[%s2275 + $0x6a] sm:$0xff]
        %v3182 = vld [vmem:[%s2275 + $0x7a] sm:$0xff]
        %v3183 = vld [vmem:[%s2275 + $0x82] sm:$0xff]
        %v3184 = vld [vmem:[%s2275 + $0x92] sm:$0xff]
        %v3185 = vld [vmem:[%s2275 + $0x9a] sm:$0xff]
        %v3186 = vld [vmem:[%s2275 + $0xaa] sm:$0xff]
        %v3187 = vld [vmem:[%s2275 + $0xb2] sm:$0xff]
        %v3188 = vld [vmem:[%s2275 + $0xc2] sm:$0xff]
        %v3189 = vld [vmem:[%s2275 + $0xca] sm:$0xff]
        %v3190 = vld [vmem:[%s2275 + $0xda] sm:$0xff]
        %v3191 = vld [vmem:[%s2275 + $0xe2] sm:$0xff]
        %v3192 = vld [vmem:[%s2275 + $0xf2] sm:$0xff]
        %v3193 = vld [vmem:[%s2275 + $0xfa] sm:$0xff]
        %v3194 = vld [vmem:[%s2275 + $0x10a] sm:$0xff]
        %v3195 = vld [vmem:[%s2275 + $0x112] sm:$0xff]
        %v3196 = vld [vmem:[%s2275 + $0x122] sm:$0xff]
        %v3197 = vld [vmem:[%s2275 + $0x12a] sm:$0xff]
        %v3198 = vld [vmem:[%s2275 + $0x13a] sm:$0xff]
        %v3199 = vld [vmem:[%s2275 + $0x142] sm:$0xff]
        %v3200 = vld [vmem:[%s2275 + $0x152] sm:$0xff]
        %v3201 = vld [vmem:[%s2275 + $0x15a] sm:$0xff]
        %v3202 = vld [vmem:[%s2275 + $0x16a] sm:$0xff]
        %v3203 = vld [vmem:[%s2275 + $0x172] sm:$0xff]
        %3236 = vrot.lane.b32.xlu0 %v3172, 80
        %v3237 = vpop.permute.xlu0 %3236
        %3238 = vrot.lane.b32.xlu0 %v3173, 80
        %v3239 = vpop.permute.xlu0 %3238
        %3240 = vrot.lane.b32.xlu0 %v3174, 80
        %v3241 = vpop.permute.xlu0 %3240
        %3242 = vrot.lane.b32.xlu0 %v3175, 80
        %v3243 = vpop.permute.xlu0 %3242
        %3244 = vrot.lane.b32.xlu0 %v3176, 80
        %v3245 = vpop.permute.xlu0 %3244
        %3246 = vrot.lane.b32.xlu0 %v3177, 80
        %v3247 = vpop.permute.xlu0 %3246
        %3248 = vrot.lane.b32.xlu0 %v3178, 80
        %v3249 = vpop.permute.xlu0 %3248
        %3250 = vrot.lane.b32.xlu0 %v3179, 80
        %v3251 = vpop.permute.xlu0 %3250
        %3252 = vrot.lane.b32.xlu0 %v3180, 80
        %v3253 = vpop.permute.xlu0 %3252
        %3254 = vrot.lane.b32.xlu0 %v3181, 80
        %v3255 = vpop.permute.xlu0 %3254
        %3256 = vrot.lane.b32.xlu0 %v3182, 80
        %v3257 = vpop.permute.xlu0 %3256
        %3258 = vrot.lane.b32.xlu0 %v3183, 80
        %v3259 = vpop.permute.xlu0 %3258
        %3260 = vrot.lane.b32.xlu0 %v3184, 80
        %v3261 = vpop.permute.xlu0 %3260
        %3262 = vrot.lane.b32.xlu0 %v3185, 80
        %v3263 = vpop.permute.xlu0 %3262
        %3264 = vrot.lane.b32.xlu0 %v3186, 80
        %v3265 = vpop.permute.xlu0 %3264
        %3266 = vrot.lane.b32.xlu0 %v3187, 80
        %v3267 = vpop.permute.xlu0 %3266
        %3268 = vrot.lane.b32.xlu0 %v3188, 80
        %v3269 = vpop.permute.xlu0 %3268
        %3270 = vrot.lane.b32.xlu0 %v3189, 80
        %v3271 = vpop.permute.xlu0 %3270
        %3272 = vrot.lane.b32.xlu0 %v3190, 80
        %v3273 = vpop.permute.xlu0 %3272
        %3274 = vrot.lane.b32.xlu0 %v3191, 80
        %v3275 = vpop.permute.xlu0 %3274
        %3276 = vrot.lane.b32.xlu0 %v3192, 80
        %v3277 = vpop.permute.xlu0 %3276
        %3278 = vrot.lane.b32.xlu0 %v3193, 80
        %v3279 = vpop.permute.xlu0 %3278
        %3280 = vrot.lane.b32.xlu0 %v3194, 80
        %v3281 = vpop.permute.xlu0 %3280
        %3282 = vrot.lane.b32.xlu0 %v3195, 80
        %v3283 = vpop.permute.xlu0 %3282
        %3284 = vrot.lane.b32.xlu0 %v3196, 80
        %v3285 = vpop.permute.xlu0 %3284
        %3286 = vrot.lane.b32.xlu0 %v3197, 80
        %v3287 = vpop.permute.xlu0 %3286
        %3288 = vrot.lane.b32.xlu0 %v3198, 80
        %v3289 = vpop.permute.xlu0 %3288
        %3290 = vrot.lane.b32.xlu0 %v3199, 80
        %v3291 = vpop.permute.xlu0 %3290
        %3292 = vrot.lane.b32.xlu0 %v3200, 80
        %v3293 = vpop.permute.xlu0 %3292
        %3294 = vrot.lane.b32.xlu0 %v3201, 80
        %v3295 = vpop.permute.xlu0 %3294
        %3296 = vrot.lane.b32.xlu0 %v3202, 80
        %v3297 = vpop.permute.xlu0 %3296
        %3298 = vrot.lane.b32.xlu0 %v3203, 80
        %v3299 = vpop.permute.xlu0 %3298
        %v3332 = vmul.f32 %v3140, %v3237
        %v3333 = vmul.f32 %v3141, %v3239
        %v3334 = vmul.f32 %v3142, %v3241
        %v3335 = vmul.f32 %v3143, %v3243
        %v3336 = vmul.f32 %v3144, %v3245
        %v3337 = vmul.f32 %v3145, %v3247
        %v3338 = vmul.f32 %v3146, %v3249
        %v3339 = vmul.f32 %v3147, %v3251
        %v3340 = vmul.f32 %v3148, %v3253
        %v3341 = vmul.f32 %v3149, %v3255
        %v3342 = vmul.f32 %v3150, %v3257
        %v3343 = vmul.f32 %v3151, %v3259
        %v3344 = vmul.f32 %v3152, %v3261
        %v3345 = vmul.f32 %v3153, %v3263
        %v3346 = vmul.f32 %v3154, %v3265
        %v3347 = vmul.f32 %v3155, %v3267
        %v3348 = vmul.f32 %v3156, %v3269
        %v3349 = vmul.f32 %v3157, %v3271
        %v3350 = vmul.f32 %v3158, %v3273
        %v3351 = vmul.f32 %v3159, %v3275
        %v3352 = vmul.f32 %v3160, %v3277
        %v3353 = vmul.f32 %v3161, %v3279
        %v3354 = vmul.f32 %v3162, %v3281
        %v3355 = vmul.f32 %v3163, %v3283
        %v3356 = vmul.f32 %v3164, %v3285
        %v3357 = vmul.f32 %v3165, %v3287
        %v3358 = vmul.f32 %v3166, %v3289
        %v3359 = vmul.f32 %v3167, %v3291
        %v3360 = vmul.f32 %v3168, %v3293
        %v3361 = vmul.f32 %v3169, %v3295
        %v3362 = vmul.f32 %v3170, %v3297
        %v3363 = vmul.f32 %v3171, %v3299
        %v3364 = vld [vmem:[%s266] sm:$0xff]
        %v3365 = vld [vmem:[%s266 + $0x8] sm:$0xff]
        %v3366 = vld [vmem:[%s266 + $0x10] sm:$0xff]
        %v3367 = vld [vmem:[%s266 + $0x18] sm:$0xff]
        %v3368 = vld [vmem:[%s266 + $0x20] sm:$0xff]
        %v3369 = vld [vmem:[%s266 + $0x28] sm:$0xff]
        %v3370 = vld [vmem:[%s266 + $0x30] sm:$0xff]
        %v3371 = vld [vmem:[%s266 + $0x38] sm:$0xff]
        %v3372 = vld [vmem:[%s266 + $0x40] sm:$0xff]
        %v3373 = vld [vmem:[%s266 + $0x48] sm:$0xff]
        %v3374 = vld [vmem:[%s266 + $0x50] sm:$0xff]
        %v3375 = vld [vmem:[%s266 + $0x58] sm:$0xff]
        %v3376 = vld [vmem:[%s266 + $0x60] sm:$0xff]
        %v3377 = vld [vmem:[%s266 + $0x68] sm:$0xff]
        %v3378 = vld [vmem:[%s266 + $0x70] sm:$0xff]
        %v3379 = vld [vmem:[%s266 + $0x78] sm:$0xff]
        %v3380 = vld [vmem:[%s266 + $0x80] sm:$0xff]
        %v3381 = vld [vmem:[%s266 + $0x88] sm:$0xff]
        %v3382 = vld [vmem:[%s266 + $0x90] sm:$0xff]
        %v3383 = vld [vmem:[%s266 + $0x98] sm:$0xff]
        %v3384 = vld [vmem:[%s266 + $0xa0] sm:$0xff]
        %v3385 = vld [vmem:[%s266 + $0xa8] sm:$0xff]
        %v3386 = vld [vmem:[%s266 + $0xb0] sm:$0xff]
        %v3387 = vld [vmem:[%s266 + $0xb8] sm:$0xff]
        %v3388 = vld [vmem:[%s266 + $0xc0] sm:$0xff]
        %v3389 = vld [vmem:[%s266 + $0xc8] sm:$0xff]
        %v3390 = vld [vmem:[%s266 + $0xd0] sm:$0xff]
        %v3391 = vld [vmem:[%s266 + $0xd8] sm:$0xff]
        %v3392 = vld [vmem:[%s266 + $0xe0] sm:$0xff]
        %v3393 = vld [vmem:[%s266 + $0xe8] sm:$0xff]
        %v3394 = vld [vmem:[%s266 + $0xf0] sm:$0xff]
        %v3395 = vld [vmem:[%s266 + $0xf8] sm:$0xff]
        %3428 = vrot.lane.b32.xlu0 %v3332, 48
        %v3429 = vpop.permute.xlu0 %3428
        %3430 = vrot.lane.b32.xlu0 %v3333, 48
        %v3431 = vpop.permute.xlu0 %3430
        %3432 = vrot.lane.b32.xlu0 %v3334, 48
        %v3433 = vpop.permute.xlu0 %3432
        %3434 = vrot.lane.b32.xlu0 %v3335, 48
        %v3435 = vpop.permute.xlu0 %3434
        %3436 = vrot.lane.b32.xlu0 %v3336, 48
        %v3437 = vpop.permute.xlu0 %3436
        %3438 = vrot.lane.b32.xlu0 %v3337, 48
        %v3439 = vpop.permute.xlu0 %3438
        %3440 = vrot.lane.b32.xlu0 %v3338, 48
        %v3441 = vpop.permute.xlu0 %3440
        %3442 = vrot.lane.b32.xlu0 %v3339, 48
        %v3443 = vpop.permute.xlu0 %3442
        %3444 = vrot.lane.b32.xlu0 %v3340, 48
        %v3445 = vpop.permute.xlu0 %3444
        %3446 = vrot.lane.b32.xlu0 %v3341, 48
        %v3447 = vpop.permute.xlu0 %3446
        %3448 = vrot.lane.b32.xlu0 %v3342, 48
        %v3449 = vpop.permute.xlu0 %3448
        %3450 = vrot.lane.b32.xlu0 %v3343, 48
        %v3451 = vpop.permute.xlu0 %3450
        %3452 = vrot.lane.b32.xlu0 %v3344, 48
        %v3453 = vpop.permute.xlu0 %3452
        %3454 = vrot.lane.b32.xlu0 %v3345, 48
        %v3455 = vpop.permute.xlu0 %3454
        %3456 = vrot.lane.b32.xlu0 %v3346, 48
        %v3457 = vpop.permute.xlu0 %3456
        %3458 = vrot.lane.b32.xlu0 %v3347, 48
        %v3459 = vpop.permute.xlu0 %3458
        %3460 = vrot.lane.b32.xlu0 %v3348, 48
        %v3461 = vpop.permute.xlu0 %3460
        %3462 = vrot.lane.b32.xlu0 %v3349, 48
        %v3463 = vpop.permute.xlu0 %3462
        %3464 = vrot.lane.b32.xlu0 %v3350, 48
        %v3465 = vpop.permute.xlu0 %3464
        %3466 = vrot.lane.b32.xlu0 %v3351, 48
        %v3467 = vpop.permute.xlu0 %3466
        %3468 = vrot.lane.b32.xlu0 %v3352, 48
        %v3469 = vpop.permute.xlu0 %3468
        %3470 = vrot.lane.b32.xlu0 %v3353, 48
        %v3471 = vpop.permute.xlu0 %3470
        %3472 = vrot.lane.b32.xlu0 %v3354, 48
        %v3473 = vpop.permute.xlu0 %3472
        %3474 = vrot.lane.b32.xlu0 %v3355, 48
        %v3475 = vpop.permute.xlu0 %3474
        %3476 = vrot.lane.b32.xlu0 %v3356, 48
        %v3477 = vpop.permute.xlu0 %3476
        %3478 = vrot.lane.b32.xlu0 %v3357, 48
        %v3479 = vpop.permute.xlu0 %3478
        %3480 = vrot.lane.b32.xlu0 %v3358, 48
        %v3481 = vpop.permute.xlu0 %3480
        %3482 = vrot.lane.b32.xlu0 %v3359, 48
        %v3483 = vpop.permute.xlu0 %3482
        %3484 = vrot.lane.b32.xlu0 %v3360, 48
        %v3485 = vpop.permute.xlu0 %3484
        %3486 = vrot.lane.b32.xlu0 %v3361, 48
        %v3487 = vpop.permute.xlu0 %3486
        %3488 = vrot.lane.b32.xlu0 %v3362, 48
        %v3489 = vpop.permute.xlu0 %3488
        %3490 = vrot.lane.b32.xlu0 %v3363, 48
        %v3491 = vpop.permute.xlu0 %3490
        %v3524 = vadd.f32 %v3364, %v3429
        %v3525 = vadd.f32 %v3365, %v3431
        %v3526 = vadd.f32 %v3366, %v3433
        %v3527 = vadd.f32 %v3367, %v3435
        %v3528 = vadd.f32 %v3368, %v3437
        %v3529 = vadd.f32 %v3369, %v3439
        %v3530 = vadd.f32 %v3370, %v3441
        %v3531 = vadd.f32 %v3371, %v3443
        %v3532 = vadd.f32 %v3372, %v3445
        %v3533 = vadd.f32 %v3373, %v3447
        %v3534 = vadd.f32 %v3374, %v3449
        %v3535 = vadd.f32 %v3375, %v3451
        %v3536 = vadd.f32 %v3376, %v3453
        %v3537 = vadd.f32 %v3377, %v3455
        %v3538 = vadd.f32 %v3378, %v3457
        %v3539 = vadd.f32 %v3379, %v3459
        %v3540 = vadd.f32 %v3380, %v3461
        %v3541 = vadd.f32 %v3381, %v3463
        %v3542 = vadd.f32 %v3382, %v3465
        %v3543 = vadd.f32 %v3383, %v3467
        %v3544 = vadd.f32 %v3384, %v3469
        %v3545 = vadd.f32 %v3385, %v3471
        %v3546 = vadd.f32 %v3386, %v3473
        %v3547 = vadd.f32 %v3387, %v3475
        %v3548 = vadd.f32 %v3388, %v3477
        %v3549 = vadd.f32 %v3389, %v3479
        %v3550 = vadd.f32 %v3390, %v3481
        %v3551 = vadd.f32 %v3391, %v3483
        %v3552 = vadd.f32 %v3392, %v3485
        %v3553 = vadd.f32 %v3393, %v3487
        %v3554 = vadd.f32 %v3394, %v3489
        %v3555 = vadd.f32 %v3395, %v3491
        %3556 = vst.msk [vmem:[%s266] sm:$0xff] %vm423, %v3524
        %3557 = vst.msk [vmem:[%s266 + $0x8] sm:$0xff] %vm423, %v3525
        %3558 = vst.msk [vmem:[%s266 + $0x10] sm:$0xff] %vm423, %v3526
        %3559 = vst.msk [vmem:[%s266 + $0x18] sm:$0xff] %vm423, %v3527
        %3560 = vst.msk [vmem:[%s266 + $0x20] sm:$0xff] %vm423, %v3528
        %3561 = vst.msk [vmem:[%s266 + $0x28] sm:$0xff] %vm423, %v3529
        %3562 = vst.msk [vmem:[%s266 + $0x30] sm:$0xff] %vm423, %v3530
        %3563 = vst.msk [vmem:[%s266 + $0x38] sm:$0xff] %vm423, %v3531
        %3564 = vst.msk [vmem:[%s266 + $0x40] sm:$0xff] %vm423, %v3532
        %3565 = vst.msk [vmem:[%s266 + $0x48] sm:$0xff] %vm423, %v3533
        %3566 = vst.msk [vmem:[%s266 + $0x50] sm:$0xff] %vm423, %v3534
        %3567 = vst.msk [vmem:[%s266 + $0x58] sm:$0xff] %vm423, %v3535
        %3568 = vst.msk [vmem:[%s266 + $0x60] sm:$0xff] %vm423, %v3536
        %3569 = vst.msk [vmem:[%s266 + $0x68] sm:$0xff] %vm423, %v3537
        %3570 = vst.msk [vmem:[%s266 + $0x70] sm:$0xff] %vm423, %v3538
        %3571 = vst.msk [vmem:[%s266 + $0x78] sm:$0xff] %vm423, %v3539
        %3572 = vst.msk [vmem:[%s266 + $0x80] sm:$0xff] %vm423, %v3540
        %3573 = vst.msk [vmem:[%s266 + $0x88] sm:$0xff] %vm423, %v3541
        %3574 = vst.msk [vmem:[%s266 + $0x90] sm:$0xff] %vm423, %v3542
        %3575 = vst.msk [vmem:[%s266 + $0x98] sm:$0xff] %vm423, %v3543
        %3576 = vst.msk [vmem:[%s266 + $0xa0] sm:$0xff] %vm423, %v3544
        %3577 = vst.msk [vmem:[%s266 + $0xa8] sm:$0xff] %vm423, %v3545
        %3578 = vst.msk [vmem:[%s266 + $0xb0] sm:$0xff] %vm423, %v3546
        %3579 = vst.msk [vmem:[%s266 + $0xb8] sm:$0xff] %vm423, %v3547
        %3580 = vst.msk [vmem:[%s266 + $0xc0] sm:$0xff] %vm423, %v3548
        %3581 = vst.msk [vmem:[%s266 + $0xc8] sm:$0xff] %vm423, %v3549
        %3582 = vst.msk [vmem:[%s266 + $0xd0] sm:$0xff] %vm423, %v3550
        %3583 = vst.msk [vmem:[%s266 + $0xd8] sm:$0xff] %vm423, %v3551
        %3584 = vst.msk [vmem:[%s266 + $0xe0] sm:$0xff] %vm423, %v3552
        %3585 = vst.msk [vmem:[%s266 + $0xe8] sm:$0xff] %vm423, %v3553
        %3586 = vst.msk [vmem:[%s266 + $0xf0] sm:$0xff] %vm423, %v3554
        %3587 = vst.msk [vmem:[%s266 + $0xf8] sm:$0xff] %vm423, %v3555
        %v3588 = vld [vmem:[#allocation3] sm:$0xff]
        %v3589 = vld [vmem:[#allocation3 + $0x10] sm:$0xff]
        %v3590 = vld [vmem:[#allocation3 + $0x20] sm:$0xff]
        %v3591 = vld [vmem:[#allocation3 + $0x30] sm:$0xff]
        %v3592 = vld [vmem:[#allocation3 + $0x40] sm:$0xff]
        %v3593 = vld [vmem:[#allocation3 + $0x50] sm:$0xff]
        %v3594 = vld [vmem:[#allocation3 + $0x60] sm:$0xff]
        %v3595 = vld [vmem:[#allocation3 + $0x70] sm:$0xff]
        %v3596 = vld [vmem:[#allocation3 + $0x80] sm:$0xff]
        %v3597 = vld [vmem:[#allocation3 + $0x90] sm:$0xff]
        %v3598 = vld [vmem:[#allocation3 + $0xa0] sm:$0xff]
        %v3599 = vld [vmem:[#allocation3 + $0xb0] sm:$0xff]
        %v3600 = vld [vmem:[#allocation3 + $0xc0] sm:$0xff]
        %v3601 = vld [vmem:[#allocation3 + $0xd0] sm:$0xff]
        %v3602 = vld [vmem:[#allocation3 + $0xe0] sm:$0xff]
        %v3603 = vld [vmem:[#allocation3 + $0xf0] sm:$0xff]
        %v3604 = vld [vmem:[#allocation3 + $0x100] sm:$0xff]
        %v3605 = vld [vmem:[#allocation3 + $0x110] sm:$0xff]
        %v3606 = vld [vmem:[#allocation3 + $0x120] sm:$0xff]
        %v3607 = vld [vmem:[#allocation3 + $0x130] sm:$0xff]
        %v3608 = vld [vmem:[#allocation3 + $0x140] sm:$0xff]
        %v3609 = vld [vmem:[#allocation3 + $0x150] sm:$0xff]
        %v3610 = vld [vmem:[#allocation3 + $0x160] sm:$0xff]
        %v3611 = vld [vmem:[#allocation3 + $0x170] sm:$0xff]
        %v3612 = vld [vmem:[#allocation3 + $0x180] sm:$0xff]
        %v3613 = vld [vmem:[#allocation3 + $0x190] sm:$0xff]
        %v3614 = vld [vmem:[#allocation3 + $0x1a0] sm:$0xff]
        %v3615 = vld [vmem:[#allocation3 + $0x1b0] sm:$0xff]
        %v3616 = vld [vmem:[#allocation3 + $0x1c0] sm:$0xff]
        %v3617 = vld [vmem:[#allocation3 + $0x1d0] sm:$0xff]
        %v3618 = vld [vmem:[#allocation3 + $0x1e0] sm:$0xff]
        %v3619 = vld [vmem:[#allocation3 + $0x1f0] sm:$0xff]
        %s3620 = sadd.s32 %s268, 2
        %s3621 = smul.u32 %s3620, 24
        %s3622 = scalar_lea.vmem [#allocation2], %s3621
        %v3623 = vld [vmem:[%s3622] sm:$0xff]
        %v3624 = vld [vmem:[%s3622 + $0x8] sm:$0xff]
        %v3625 = vld [vmem:[%s3622 + $0x18] sm:$0xff]
        %v3626 = vld [vmem:[%s3622 + $0x20] sm:$0xff]
        %v3627 = vld [vmem:[%s3622 + $0x30] sm:$0xff]
        %v3628 = vld [vmem:[%s3622 + $0x38] sm:$0xff]
        %v3629 = vld [vmem:[%s3622 + $0x48] sm:$0xff]
        %v3630 = vld [vmem:[%s3622 + $0x50] sm:$0xff]
        %v3631 = vld [vmem:[%s3622 + $0x60] sm:$0xff]
        %v3632 = vld [vmem:[%s3622 + $0x68] sm:$0xff]
        %v3633 = vld [vmem:[%s3622 + $0x78] sm:$0xff]
        %v3634 = vld [vmem:[%s3622 + $0x80] sm:$0xff]
        %v3635 = vld [vmem:[%s3622 + $0x90] sm:$0xff]
        %v3636 = vld [vmem:[%s3622 + $0x98] sm:$0xff]
        %v3637 = vld [vmem:[%s3622 + $0xa8] sm:$0xff]
        %v3638 = vld [vmem:[%s3622 + $0xb0] sm:$0xff]
        %v3639 = vld [vmem:[%s3622 + $0xc0] sm:$0xff]
        %v3640 = vld [vmem:[%s3622 + $0xc8] sm:$0xff]
        %v3641 = vld [vmem:[%s3622 + $0xd8] sm:$0xff]
        %v3642 = vld [vmem:[%s3622 + $0xe0] sm:$0xff]
        %v3643 = vld [vmem:[%s3622 + $0xf0] sm:$0xff]
        %v3644 = vld [vmem:[%s3622 + $0xf8] sm:$0xff]
        %v3645 = vld [vmem:[%s3622 + $0x108] sm:$0xff]
        %v3646 = vld [vmem:[%s3622 + $0x110] sm:$0xff]
        %v3647 = vld [vmem:[%s3622 + $0x120] sm:$0xff]
        %v3648 = vld [vmem:[%s3622 + $0x128] sm:$0xff]
        %v3649 = vld [vmem:[%s3622 + $0x138] sm:$0xff]
        %v3650 = vld [vmem:[%s3622 + $0x140] sm:$0xff]
        %v3651 = vld [vmem:[%s3622 + $0x150] sm:$0xff]
        %v3652 = vld [vmem:[%s3622 + $0x158] sm:$0xff]
        %v3653 = vld [vmem:[%s3622 + $0x168] sm:$0xff]
        %v3654 = vld [vmem:[%s3622 + $0x170] sm:$0xff]
        %3687 = vrot.lane.b32.xlu0 %v3623, 96
        %v3688 = vpop.permute.xlu0 %3687
        %3689 = vrot.lane.b32.xlu0 %v3624, 96
        %v3690 = vpop.permute.xlu0 %3689
        %3691 = vrot.lane.b32.xlu0 %v3625, 96
        %v3692 = vpop.permute.xlu0 %3691
        %3693 = vrot.lane.b32.xlu0 %v3626, 96
        %v3694 = vpop.permute.xlu0 %3693
        %3695 = vrot.lane.b32.xlu0 %v3627, 96
        %v3696 = vpop.permute.xlu0 %3695
        %3697 = vrot.lane.b32.xlu0 %v3628, 96
        %v3698 = vpop.permute.xlu0 %3697
        %3699 = vrot.lane.b32.xlu0 %v3629, 96
        %v3700 = vpop.permute.xlu0 %3699
        %3701 = vrot.lane.b32.xlu0 %v3630, 96
        %v3702 = vpop.permute.xlu0 %3701
        %3703 = vrot.lane.b32.xlu0 %v3631, 96
        %v3704 = vpop.permute.xlu0 %3703
        %3705 = vrot.lane.b32.xlu0 %v3632, 96
        %v3706 = vpop.permute.xlu0 %3705
        %3707 = vrot.lane.b32.xlu0 %v3633, 96
        %v3708 = vpop.permute.xlu0 %3707
        %3709 = vrot.lane.b32.xlu0 %v3634, 96
        %v3710 = vpop.permute.xlu0 %3709
        %3711 = vrot.lane.b32.xlu0 %v3635, 96
        %v3712 = vpop.permute.xlu0 %3711
        %3713 = vrot.lane.b32.xlu0 %v3636, 96
        %v3714 = vpop.permute.xlu0 %3713
        %3715 = vrot.lane.b32.xlu0 %v3637, 96
        %v3716 = vpop.permute.xlu0 %3715
        %3717 = vrot.lane.b32.xlu0 %v3638, 96
        %v3718 = vpop.permute.xlu0 %3717
        %3719 = vrot.lane.b32.xlu0 %v3639, 96
        %v3720 = vpop.permute.xlu0 %3719
        %3721 = vrot.lane.b32.xlu0 %v3640, 96
        %v3722 = vpop.permute.xlu0 %3721
        %3723 = vrot.lane.b32.xlu0 %v3641, 96
        %v3724 = vpop.permute.xlu0 %3723
        %3725 = vrot.lane.b32.xlu0 %v3642, 96
        %v3726 = vpop.permute.xlu0 %3725
        %3727 = vrot.lane.b32.xlu0 %v3643, 96
        %v3728 = vpop.permute.xlu0 %3727
        %3729 = vrot.lane.b32.xlu0 %v3644, 96
        %v3730 = vpop.permute.xlu0 %3729
        %3731 = vrot.lane.b32.xlu0 %v3645, 96
        %v3732 = vpop.permute.xlu0 %3731
        %3733 = vrot.lane.b32.xlu0 %v3646, 96
        %v3734 = vpop.permute.xlu0 %3733
        %3735 = vrot.lane.b32.xlu0 %v3647, 96
        %v3736 = vpop.permute.xlu0 %3735
        %3737 = vrot.lane.b32.xlu0 %v3648, 96
        %v3738 = vpop.permute.xlu0 %3737
        %3739 = vrot.lane.b32.xlu0 %v3649, 96
        %v3740 = vpop.permute.xlu0 %3739
        %3741 = vrot.lane.b32.xlu0 %v3650, 96
        %v3742 = vpop.permute.xlu0 %3741
        %3743 = vrot.lane.b32.xlu0 %v3651, 96
        %v3744 = vpop.permute.xlu0 %3743
        %3745 = vrot.lane.b32.xlu0 %v3652, 96
        %v3746 = vpop.permute.xlu0 %3745
        %3747 = vrot.lane.b32.xlu0 %v3653, 96
        %v3748 = vpop.permute.xlu0 %3747
        %3749 = vrot.lane.b32.xlu0 %v3654, 96
        %v3750 = vpop.permute.xlu0 %3749
        %v3783 = vmul.f32 %v3588, %v3688
        %v3784 = vmul.f32 %v3589, %v3690
        %v3785 = vmul.f32 %v3590, %v3692
        %v3786 = vmul.f32 %v3591, %v3694
        %v3787 = vmul.f32 %v3592, %v3696
        %v3788 = vmul.f32 %v3593, %v3698
        %v3789 = vmul.f32 %v3594, %v3700
        %v3790 = vmul.f32 %v3595, %v3702
        %v3791 = vmul.f32 %v3596, %v3704
        %v3792 = vmul.f32 %v3597, %v3706
        %v3793 = vmul.f32 %v3598, %v3708
        %v3794 = vmul.f32 %v3599, %v3710
        %v3795 = vmul.f32 %v3600, %v3712
        %v3796 = vmul.f32 %v3601, %v3714
        %v3797 = vmul.f32 %v3602, %v3716
        %v3798 = vmul.f32 %v3603, %v3718
        %v3799 = vmul.f32 %v3604, %v3720
        %v3800 = vmul.f32 %v3605, %v3722
        %v3801 = vmul.f32 %v3606, %v3724
        %v3802 = vmul.f32 %v3607, %v3726
        %v3803 = vmul.f32 %v3608, %v3728
        %v3804 = vmul.f32 %v3609, %v3730
        %v3805 = vmul.f32 %v3610, %v3732
        %v3806 = vmul.f32 %v3611, %v3734
        %v3807 = vmul.f32 %v3612, %v3736
        %v3808 = vmul.f32 %v3613, %v3738
        %v3809 = vmul.f32 %v3614, %v3740
        %v3810 = vmul.f32 %v3615, %v3742
        %v3811 = vmul.f32 %v3616, %v3744
        %v3812 = vmul.f32 %v3617, %v3746
        %v3813 = vmul.f32 %v3618, %v3748
        %v3814 = vmul.f32 %v3619, %v3750
        %v3815 = vld [vmem:[%s266] sm:$0xff]
        %v3816 = vld [vmem:[%s266 + $0x8] sm:$0xff]
        %v3817 = vld [vmem:[%s266 + $0x10] sm:$0xff]
        %v3818 = vld [vmem:[%s266 + $0x18] sm:$0xff]
        %v3819 = vld [vmem:[%s266 + $0x20] sm:$0xff]
        %v3820 = vld [vmem:[%s266 + $0x28] sm:$0xff]
        %v3821 = vld [vmem:[%s266 + $0x30] sm:$0xff]
        %v3822 = vld [vmem:[%s266 + $0x38] sm:$0xff]
        %v3823 = vld [vmem:[%s266 + $0x40] sm:$0xff]
        %v3824 = vld [vmem:[%s266 + $0x48] sm:$0xff]
        %v3825 = vld [vmem:[%s266 + $0x50] sm:$0xff]
        %v3826 = vld [vmem:[%s266 + $0x58] sm:$0xff]
        %v3827 = vld [vmem:[%s266 + $0x60] sm:$0xff]
        %v3828 = vld [vmem:[%s266 + $0x68] sm:$0xff]
        %v3829 = vld [vmem:[%s266 + $0x70] sm:$0xff]
        %v3830 = vld [vmem:[%s266 + $0x78] sm:$0xff]
        %v3831 = vld [vmem:[%s266 + $0x80] sm:$0xff]
        %v3832 = vld [vmem:[%s266 + $0x88] sm:$0xff]
        %v3833 = vld [vmem:[%s266 + $0x90] sm:$0xff]
        %v3834 = vld [vmem:[%s266 + $0x98] sm:$0xff]
        %v3835 = vld [vmem:[%s266 + $0xa0] sm:$0xff]
        %v3836 = vld [vmem:[%s266 + $0xa8] sm:$0xff]
        %v3837 = vld [vmem:[%s266 + $0xb0] sm:$0xff]
        %v3838 = vld [vmem:[%s266 + $0xb8] sm:$0xff]
        %v3839 = vld [vmem:[%s266 + $0xc0] sm:$0xff]
        %v3840 = vld [vmem:[%s266 + $0xc8] sm:$0xff]
        %v3841 = vld [vmem:[%s266 + $0xd0] sm:$0xff]
        %v3842 = vld [vmem:[%s266 + $0xd8] sm:$0xff]
        %v3843 = vld [vmem:[%s266 + $0xe0] sm:$0xff]
        %v3844 = vld [vmem:[%s266 + $0xe8] sm:$0xff]
        %v3845 = vld [vmem:[%s266 + $0xf0] sm:$0xff]
        %v3846 = vld [vmem:[%s266 + $0xf8] sm:$0xff]
        %3879 = vrot.lane.b32.xlu0 %v3783, 32
        %v3880 = vpop.permute.xlu0 %3879
        %3881 = vrot.lane.b32.xlu0 %v3784, 32
        %v3882 = vpop.permute.xlu0 %3881
        %3883 = vrot.lane.b32.xlu0 %v3785, 32
        %v3884 = vpop.permute.xlu0 %3883
        %3885 = vrot.lane.b32.xlu0 %v3786, 32
        %v3886 = vpop.permute.xlu0 %3885
        %3887 = vrot.lane.b32.xlu0 %v3787, 32
        %v3888 = vpop.permute.xlu0 %3887
        %3889 = vrot.lane.b32.xlu0 %v3788, 32
        %v3890 = vpop.permute.xlu0 %3889
        %3891 = vrot.lane.b32.xlu0 %v3789, 32
        %v3892 = vpop.permute.xlu0 %3891
        %3893 = vrot.lane.b32.xlu0 %v3790, 32
        %v3894 = vpop.permute.xlu0 %3893
        %3895 = vrot.lane.b32.xlu0 %v3791, 32
        %v3896 = vpop.permute.xlu0 %3895
        %3897 = vrot.lane.b32.xlu0 %v3792, 32
        %v3898 = vpop.permute.xlu0 %3897
        %3899 = vrot.lane.b32.xlu0 %v3793, 32
        %v3900 = vpop.permute.xlu0 %3899
        %3901 = vrot.lane.b32.xlu0 %v3794, 32
        %v3902 = vpop.permute.xlu0 %3901
        %3903 = vrot.lane.b32.xlu0 %v3795, 32
        %v3904 = vpop.permute.xlu0 %3903
        %3905 = vrot.lane.b32.xlu0 %v3796, 32
        %v3906 = vpop.permute.xlu0 %3905
        %3907 = vrot.lane.b32.xlu0 %v3797, 32
        %v3908 = vpop.permute.xlu0 %3907
        %3909 = vrot.lane.b32.xlu0 %v3798, 32
        %v3910 = vpop.permute.xlu0 %3909
        %3911 = vrot.lane.b32.xlu0 %v3799, 32
        %v3912 = vpop.permute.xlu0 %3911
        %3913 = vrot.lane.b32.xlu0 %v3800, 32
        %v3914 = vpop.permute.xlu0 %3913
        %3915 = vrot.lane.b32.xlu0 %v3801, 32
        %v3916 = vpop.permute.xlu0 %3915
        %3917 = vrot.lane.b32.xlu0 %v3802, 32
        %v3918 = vpop.permute.xlu0 %3917
        %3919 = vrot.lane.b32.xlu0 %v3803, 32
        %v3920 = vpop.permute.xlu0 %3919
        %3921 = vrot.lane.b32.xlu0 %v3804, 32
        %v3922 = vpop.permute.xlu0 %3921
        %3923 = vrot.lane.b32.xlu0 %v3805, 32
        %v3924 = vpop.permute.xlu0 %3923
        %3925 = vrot.lane.b32.xlu0 %v3806, 32
        %v3926 = vpop.permute.xlu0 %3925
        %3927 = vrot.lane.b32.xlu0 %v3807, 32
        %v3928 = vpop.permute.xlu0 %3927
        %3929 = vrot.lane.b32.xlu0 %v3808, 32
        %v3930 = vpop.permute.xlu0 %3929
        %3931 = vrot.lane.b32.xlu0 %v3809, 32
        %v3932 = vpop.permute.xlu0 %3931
        %3933 = vrot.lane.b32.xlu0 %v3810, 32
        %v3934 = vpop.permute.xlu0 %3933
        %3935 = vrot.lane.b32.xlu0 %v3811, 32
        %v3936 = vpop.permute.xlu0 %3935
        %3937 = vrot.lane.b32.xlu0 %v3812, 32
        %v3938 = vpop.permute.xlu0 %3937
        %3939 = vrot.lane.b32.xlu0 %v3813, 32
        %v3940 = vpop.permute.xlu0 %3939
        %3941 = vrot.lane.b32.xlu0 %v3814, 32
        %v3942 = vpop.permute.xlu0 %3941
        %v3975 = vadd.f32 %v3815, %v3880
        %v3976 = vadd.f32 %v3816, %v3882
        %v3977 = vadd.f32 %v3817, %v3884
        %v3978 = vadd.f32 %v3818, %v3886
        %v3979 = vadd.f32 %v3819, %v3888
        %v3980 = vadd.f32 %v3820, %v3890
        %v3981 = vadd.f32 %v3821, %v3892
        %v3982 = vadd.f32 %v3822, %v3894
        %v3983 = vadd.f32 %v3823, %v3896
        %v3984 = vadd.f32 %v3824, %v3898
        %v3985 = vadd.f32 %v3825, %v3900
        %v3986 = vadd.f32 %v3826, %v3902
        %v3987 = vadd.f32 %v3827, %v3904
        %v3988 = vadd.f32 %v3828, %v3906
        %v3989 = vadd.f32 %v3829, %v3908
        %v3990 = vadd.f32 %v3830, %v3910
        %v3991 = vadd.f32 %v3831, %v3912
        %v3992 = vadd.f32 %v3832, %v3914
        %v3993 = vadd.f32 %v3833, %v3916
        %v3994 = vadd.f32 %v3834, %v3918
        %v3995 = vadd.f32 %v3835, %v3920
        %v3996 = vadd.f32 %v3836, %v3922
        %v3997 = vadd.f32 %v3837, %v3924
        %v3998 = vadd.f32 %v3838, %v3926
        %v3999 = vadd.f32 %v3839, %v3928
        %v4000 = vadd.f32 %v3840, %v3930
        %v4001 = vadd.f32 %v3841, %v3932
        %v4002 = vadd.f32 %v3842, %v3934
        %v4003 = vadd.f32 %v3843, %v3936
        %v4004 = vadd.f32 %v3844, %v3938
        %v4005 = vadd.f32 %v3845, %v3940
        %v4006 = vadd.f32 %v3846, %v3942
        %4007 = vst.msk [vmem:[%s266] sm:$0xff] %vm423, %v3975
        %4008 = vst.msk [vmem:[%s266 + $0x8] sm:$0xff] %vm423, %v3976
        %4009 = vst.msk [vmem:[%s266 + $0x10] sm:$0xff] %vm423, %v3977
        %4010 = vst.msk [vmem:[%s266 + $0x18] sm:$0xff] %vm423, %v3978
        %4011 = vst.msk [vmem:[%s266 + $0x20] sm:$0xff] %vm423, %v3979
        %4012 = vst.msk [vmem:[%s266 + $0x28] sm:$0xff] %vm423, %v3980
        %4013 = vst.msk [vmem:[%s266 + $0x30] sm:$0xff] %vm423, %v3981
        %4014 = vst.msk [vmem:[%s266 + $0x38] sm:$0xff] %vm423, %v3982
        %4015 = vst.msk [vmem:[%s266 + $0x40] sm:$0xff] %vm423, %v3983
        %4016 = vst.msk [vmem:[%s266 + $0x48] sm:$0xff] %vm423, %v3984
        %4017 = vst.msk [vmem:[%s266 + $0x50] sm:$0xff] %vm423, %v3985
        %4018 = vst.msk [vmem:[%s266 + $0x58] sm:$0xff] %vm423, %v3986
        %4019 = vst.msk [vmem:[%s266 + $0x60] sm:$0xff] %vm423, %v3987
        %4020 = vst.msk [vmem:[%s266 + $0x68] sm:$0xff] %vm423, %v3988
        %4021 = vst.msk [vmem:[%s266 + $0x70] sm:$0xff] %vm423, %v3989
        %4022 = vst.msk [vmem:[%s266 + $0x78] sm:$0xff] %vm423, %v3990
        %4023 = vst.msk [vmem:[%s266 + $0x80] sm:$0xff] %vm423, %v3991
        %4024 = vst.msk [vmem:[%s266 + $0x88] sm:$0xff] %vm423, %v3992
        %4025 = vst.msk [vmem:[%s266 + $0x90] sm:$0xff] %vm423, %v3993
        %4026 = vst.msk [vmem:[%s266 + $0x98] sm:$0xff] %vm423, %v3994
        %4027 = vst.msk [vmem:[%s266 + $0xa0] sm:$0xff] %vm423, %v3995
        %4028 = vst.msk [vmem:[%s266 + $0xa8] sm:$0xff] %vm423, %v3996
        %4029 = vst.msk [vmem:[%s266 + $0xb0] sm:$0xff] %vm423, %v3997
        %4030 = vst.msk [vmem:[%s266 + $0xb8] sm:$0xff] %vm423, %v3998
        %4031 = vst.msk [vmem:[%s266 + $0xc0] sm:$0xff] %vm423, %v3999
        %4032 = vst.msk [vmem:[%s266 + $0xc8] sm:$0xff] %vm423, %v4000
        %4033 = vst.msk [vmem:[%s266 + $0xd0] sm:$0xff] %vm423, %v4001
        %4034 = vst.msk [vmem:[%s266 + $0xd8] sm:$0xff] %vm423, %v4002
        %4035 = vst.msk [vmem:[%s266 + $0xe0] sm:$0xff] %vm423, %v4003
        %4036 = vst.msk [vmem:[%s266 + $0xe8] sm:$0xff] %vm423, %v4004
        %4037 = vst.msk [vmem:[%s266 + $0xf0] sm:$0xff] %vm423, %v4005
        %4038 = vst.msk [vmem:[%s266 + $0xf8] sm:$0xff] %vm423, %v4006
        %v4039 = vld [vmem:[#allocation3] sm:$0xff]
        %v4040 = vld [vmem:[#allocation3 + $0x10] sm:$0xff]
        %v4041 = vld [vmem:[#allocation3 + $0x20] sm:$0xff]
        %v4042 = vld [vmem:[#allocation3 + $0x30] sm:$0xff]
        %v4043 = vld [vmem:[#allocation3 + $0x40] sm:$0xff]
        %v4044 = vld [vmem:[#allocation3 + $0x50] sm:$0xff]
        %v4045 = vld [vmem:[#allocation3 + $0x60] sm:$0xff]
        %v4046 = vld [vmem:[#allocation3 + $0x70] sm:$0xff]
        %v4047 = vld [vmem:[#allocation3 + $0x80] sm:$0xff]
        %v4048 = vld [vmem:[#allocation3 + $0x90] sm:$0xff]
        %v4049 = vld [vmem:[#allocation3 + $0xa0] sm:$0xff]
        %v4050 = vld [vmem:[#allocation3 + $0xb0] sm:$0xff]
        %v4051 = vld [vmem:[#allocation3 + $0xc0] sm:$0xff]
        %v4052 = vld [vmem:[#allocation3 + $0xd0] sm:$0xff]
        %v4053 = vld [vmem:[#allocation3 + $0xe0] sm:$0xff]
        %v4054 = vld [vmem:[#allocation3 + $0xf0] sm:$0xff]
        %v4055 = vld [vmem:[#allocation3 + $0x100] sm:$0xff]
        %v4056 = vld [vmem:[#allocation3 + $0x110] sm:$0xff]
        %v4057 = vld [vmem:[#allocation3 + $0x120] sm:$0xff]
        %v4058 = vld [vmem:[#allocation3 + $0x130] sm:$0xff]
        %v4059 = vld [vmem:[#allocation3 + $0x140] sm:$0xff]
        %v4060 = vld [vmem:[#allocation3 + $0x150] sm:$0xff]
        %v4061 = vld [vmem:[#allocation3 + $0x160] sm:$0xff]
        %v4062 = vld [vmem:[#allocation3 + $0x170] sm:$0xff]
        %v4063 = vld [vmem:[#allocation3 + $0x180] sm:$0xff]
        %v4064 = vld [vmem:[#allocation3 + $0x190] sm:$0xff]
        %v4065 = vld [vmem:[#allocation3 + $0x1a0] sm:$0xff]
        %v4066 = vld [vmem:[#allocation3 + $0x1b0] sm:$0xff]
        %v4067 = vld [vmem:[#allocation3 + $0x1c0] sm:$0xff]
        %v4068 = vld [vmem:[#allocation3 + $0x1d0] sm:$0xff]
        %v4069 = vld [vmem:[#allocation3 + $0x1e0] sm:$0xff]
        %v4070 = vld [vmem:[#allocation3 + $0x1f0] sm:$0xff]
        %v4071 = vld [vmem:[%s3622 + $0x1] sm:$0xff]
        %v4072 = vld [vmem:[%s3622 + $0x9] sm:$0xff]
        %v4073 = vld [vmem:[%s3622 + $0x19] sm:$0xff]
        %v4074 = vld [vmem:[%s3622 + $0x21] sm:$0xff]
        %v4075 = vld [vmem:[%s3622 + $0x31] sm:$0xff]
        %v4076 = vld [vmem:[%s3622 + $0x39] sm:$0xff]
        %v4077 = vld [vmem:[%s3622 + $0x49] sm:$0xff]
        %v4078 = vld [vmem:[%s3622 + $0x51] sm:$0xff]
        %v4079 = vld [vmem:[%s3622 + $0x61] sm:$0xff]
        %v4080 = vld [vmem:[%s3622 + $0x69] sm:$0xff]
        %v4081 = vld [vmem:[%s3622 + $0x79] sm:$0xff]
        %v4082 = vld [vmem:[%s3622 + $0x81] sm:$0xff]
        %v4083 = vld [vmem:[%s3622 + $0x91] sm:$0xff]
        %v4084 = vld [vmem:[%s3622 + $0x99] sm:$0xff]
        %v4085 = vld [vmem:[%s3622 + $0xa9] sm:$0xff]
        %v4086 = vld [vmem:[%s3622 + $0xb1] sm:$0xff]
        %v4087 = vld [vmem:[%s3622 + $0xc1] sm:$0xff]
        %v4088 = vld [vmem:[%s3622 + $0xc9] sm:$0xff]
        %v4089 = vld [vmem:[%s3622 + $0xd9] sm:$0xff]
        %v4090 = vld [vmem:[%s3622 + $0xe1] sm:$0xff]
        %v4091 = vld [vmem:[%s3622 + $0xf1] sm:$0xff]
        %v4092 = vld [vmem:[%s3622 + $0xf9] sm:$0xff]
        %v4093 = vld [vmem:[%s3622 + $0x109] sm:$0xff]
        %v4094 = vld [vmem:[%s3622 + $0x111] sm:$0xff]
        %v4095 = vld [vmem:[%s3622 + $0x121] sm:$0xff]
        %v4096 = vld [vmem:[%s3622 + $0x129] sm:$0xff]
        %v4097 = vld [vmem:[%s3622 + $0x139] sm:$0xff]
        %v4098 = vld [vmem:[%s3622 + $0x141] sm:$0xff]
        %v4099 = vld [vmem:[%s3622 + $0x151] sm:$0xff]
        %v4100 = vld [vmem:[%s3622 + $0x159] sm:$0xff]
        %v4101 = vld [vmem:[%s3622 + $0x169] sm:$0xff]
        %v4102 = vld [vmem:[%s3622 + $0x171] sm:$0xff]
        %4135 = vrot.lane.b32.xlu0 %v4071, 112
        %v4136 = vpop.permute.xlu0 %4135
        %4137 = vrot.lane.b32.xlu0 %v4072, 112
        %v4138 = vpop.permute.xlu0 %4137
        %4139 = vrot.lane.b32.xlu0 %v4073, 112
        %v4140 = vpop.permute.xlu0 %4139
        %4141 = vrot.lane.b32.xlu0 %v4074, 112
        %v4142 = vpop.permute.xlu0 %4141
        %4143 = vrot.lane.b32.xlu0 %v4075, 112
        %v4144 = vpop.permute.xlu0 %4143
        %4145 = vrot.lane.b32.xlu0 %v4076, 112
        %v4146 = vpop.permute.xlu0 %4145
        %4147 = vrot.lane.b32.xlu0 %v4077, 112
        %v4148 = vpop.permute.xlu0 %4147
        %4149 = vrot.lane.b32.xlu0 %v4078, 112
        %v4150 = vpop.permute.xlu0 %4149
        %4151 = vrot.lane.b32.xlu0 %v4079, 112
        %v4152 = vpop.permute.xlu0 %4151
        %4153 = vrot.lane.b32.xlu0 %v4080, 112
        %v4154 = vpop.permute.xlu0 %4153
        %4155 = vrot.lane.b32.xlu0 %v4081, 112
        %v4156 = vpop.permute.xlu0 %4155
        %4157 = vrot.lane.b32.xlu0 %v4082, 112
        %v4158 = vpop.permute.xlu0 %4157
        %4159 = vrot.lane.b32.xlu0 %v4083, 112
        %v4160 = vpop.permute.xlu0 %4159
        %4161 = vrot.lane.b32.xlu0 %v4084, 112
        %v4162 = vpop.permute.xlu0 %4161
        %4163 = vrot.lane.b32.xlu0 %v4085, 112
        %v4164 = vpop.permute.xlu0 %4163
        %4165 = vrot.lane.b32.xlu0 %v4086, 112
        %v4166 = vpop.permute.xlu0 %4165
        %4167 = vrot.lane.b32.xlu0 %v4087, 112
        %v4168 = vpop.permute.xlu0 %4167
        %4169 = vrot.lane.b32.xlu0 %v4088, 112
        %v4170 = vpop.permute.xlu0 %4169
        %4171 = vrot.lane.b32.xlu0 %v4089, 112
        %v4172 = vpop.permute.xlu0 %4171
        %4173 = vrot.lane.b32.xlu0 %v4090, 112
        %v4174 = vpop.permute.xlu0 %4173
        %4175 = vrot.lane.b32.xlu0 %v4091, 112
        %v4176 = vpop.permute.xlu0 %4175
        %4177 = vrot.lane.b32.xlu0 %v4092, 112
        %v4178 = vpop.permute.xlu0 %4177
        %4179 = vrot.lane.b32.xlu0 %v4093, 112
        %v4180 = vpop.permute.xlu0 %4179
        %4181 = vrot.lane.b32.xlu0 %v4094, 112
        %v4182 = vpop.permute.xlu0 %4181
        %4183 = vrot.lane.b32.xlu0 %v4095, 112
        %v4184 = vpop.permute.xlu0 %4183
        %4185 = vrot.lane.b32.xlu0 %v4096, 112
        %v4186 = vpop.permute.xlu0 %4185
        %4187 = vrot.lane.b32.xlu0 %v4097, 112
        %v4188 = vpop.permute.xlu0 %4187
        %4189 = vrot.lane.b32.xlu0 %v4098, 112
        %v4190 = vpop.permute.xlu0 %4189
        %4191 = vrot.lane.b32.xlu0 %v4099, 112
        %v4192 = vpop.permute.xlu0 %4191
        %4193 = vrot.lane.b32.xlu0 %v4100, 112
        %v4194 = vpop.permute.xlu0 %4193
        %4195 = vrot.lane.b32.xlu0 %v4101, 112
        %v4196 = vpop.permute.xlu0 %4195
        %4197 = vrot.lane.b32.xlu0 %v4102, 112
        %v4198 = vpop.permute.xlu0 %4197
        %v4231 = vmul.f32 %v4039, %v4136
        %v4232 = vmul.f32 %v4040, %v4138
        %v4233 = vmul.f32 %v4041, %v4140
        %v4234 = vmul.f32 %v4042, %v4142
        %v4235 = vmul.f32 %v4043, %v4144
        %v4236 = vmul.f32 %v4044, %v4146
        %v4237 = vmul.f32 %v4045, %v4148
        %v4238 = vmul.f32 %v4046, %v4150
        %v4239 = vmul.f32 %v4047, %v4152
        %v4240 = vmul.f32 %v4048, %v4154
        %v4241 = vmul.f32 %v4049, %v4156
        %v4242 = vmul.f32 %v4050, %v4158
        %v4243 = vmul.f32 %v4051, %v4160
        %v4244 = vmul.f32 %v4052, %v4162
        %v4245 = vmul.f32 %v4053, %v4164
        %v4246 = vmul.f32 %v4054, %v4166
        %v4247 = vmul.f32 %v4055, %v4168
        %v4248 = vmul.f32 %v4056, %v4170
        %v4249 = vmul.f32 %v4057, %v4172
        %v4250 = vmul.f32 %v4058, %v4174
        %v4251 = vmul.f32 %v4059, %v4176
        %v4252 = vmul.f32 %v4060, %v4178
        %v4253 = vmul.f32 %v4061, %v4180
        %v4254 = vmul.f32 %v4062, %v4182
        %v4255 = vmul.f32 %v4063, %v4184
        %v4256 = vmul.f32 %v4064, %v4186
        %v4257 = vmul.f32 %v4065, %v4188
        %v4258 = vmul.f32 %v4066, %v4190
        %v4259 = vmul.f32 %v4067, %v4192
        %v4260 = vmul.f32 %v4068, %v4194
        %v4261 = vmul.f32 %v4069, %v4196
        %v4262 = vmul.f32 %v4070, %v4198
        %v4263 = vld [vmem:[%s266] sm:$0xff]
        %v4264 = vld [vmem:[%s266 + $0x8] sm:$0xff]
        %v4265 = vld [vmem:[%s266 + $0x10] sm:$0xff]
        %v4266 = vld [vmem:[%s266 + $0x18] sm:$0xff]
        %v4267 = vld [vmem:[%s266 + $0x20] sm:$0xff]
        %v4268 = vld [vmem:[%s266 + $0x28] sm:$0xff]
        %v4269 = vld [vmem:[%s266 + $0x30] sm:$0xff]
        %v4270 = vld [vmem:[%s266 + $0x38] sm:$0xff]
        %v4271 = vld [vmem:[%s266 + $0x40] sm:$0xff]
        %v4272 = vld [vmem:[%s266 + $0x48] sm:$0xff]
        %v4273 = vld [vmem:[%s266 + $0x50] sm:$0xff]
        %v4274 = vld [vmem:[%s266 + $0x58] sm:$0xff]
        %v4275 = vld [vmem:[%s266 + $0x60] sm:$0xff]
        %v4276 = vld [vmem:[%s266 + $0x68] sm:$0xff]
        %v4277 = vld [vmem:[%s266 + $0x70] sm:$0xff]
        %v4278 = vld [vmem:[%s266 + $0x78] sm:$0xff]
        %v4279 = vld [vmem:[%s266 + $0x80] sm:$0xff]
        %v4280 = vld [vmem:[%s266 + $0x88] sm:$0xff]
        %v4281 = vld [vmem:[%s266 + $0x90] sm:$0xff]
        %v4282 = vld [vmem:[%s266 + $0x98] sm:$0xff]
        %v4283 = vld [vmem:[%s266 + $0xa0] sm:$0xff]
        %v4284 = vld [vmem:[%s266 + $0xa8] sm:$0xff]
        %v4285 = vld [vmem:[%s266 + $0xb0] sm:$0xff]
        %v4286 = vld [vmem:[%s266 + $0xb8] sm:$0xff]
        %v4287 = vld [vmem:[%s266 + $0xc0] sm:$0xff]
        %v4288 = vld [vmem:[%s266 + $0xc8] sm:$0xff]
        %v4289 = vld [vmem:[%s266 + $0xd0] sm:$0xff]
        %v4290 = vld [vmem:[%s266 + $0xd8] sm:$0xff]
        %v4291 = vld [vmem:[%s266 + $0xe0] sm:$0xff]
        %v4292 = vld [vmem:[%s266 + $0xe8] sm:$0xff]
        %v4293 = vld [vmem:[%s266 + $0xf0] sm:$0xff]
        %v4294 = vld [vmem:[%s266 + $0xf8] sm:$0xff]
        %4327 = vrot.lane.b32.xlu0 %v4231, 16
        %v4328 = vpop.permute.xlu0 %4327
        %4329 = vrot.lane.b32.xlu0 %v4232, 16
        %v4330 = vpop.permute.xlu0 %4329
        %4331 = vrot.lane.b32.xlu0 %v4233, 16
        %v4332 = vpop.permute.xlu0 %4331
        %4333 = vrot.lane.b32.xlu0 %v4234, 16
        %v4334 = vpop.permute.xlu0 %4333
        %4335 = vrot.lane.b32.xlu0 %v4235, 16
        %v4336 = vpop.permute.xlu0 %4335
        %4337 = vrot.lane.b32.xlu0 %v4236, 16
        %v4338 = vpop.permute.xlu0 %4337
        %4339 = vrot.lane.b32.xlu0 %v4237, 16
        %v4340 = vpop.permute.xlu0 %4339
        %4341 = vrot.lane.b32.xlu0 %v4238, 16
        %v4342 = vpop.permute.xlu0 %4341
        %4343 = vrot.lane.b32.xlu0 %v4239, 16
        %v4344 = vpop.permute.xlu0 %4343
        %4345 = vrot.lane.b32.xlu0 %v4240, 16
        %v4346 = vpop.permute.xlu0 %4345
        %4347 = vrot.lane.b32.xlu0 %v4241, 16
        %v4348 = vpop.permute.xlu0 %4347
        %4349 = vrot.lane.b32.xlu0 %v4242, 16
        %v4350 = vpop.permute.xlu0 %4349
        %4351 = vrot.lane.b32.xlu0 %v4243, 16
        %v4352 = vpop.permute.xlu0 %4351
        %4353 = vrot.lane.b32.xlu0 %v4244, 16
        %v4354 = vpop.permute.xlu0 %4353
        %4355 = vrot.lane.b32.xlu0 %v4245, 16
        %v4356 = vpop.permute.xlu0 %4355
        %4357 = vrot.lane.b32.xlu0 %v4246, 16
        %v4358 = vpop.permute.xlu0 %4357
        %4359 = vrot.lane.b32.xlu0 %v4247, 16
        %v4360 = vpop.permute.xlu0 %4359
        %4361 = vrot.lane.b32.xlu0 %v4248, 16
        %v4362 = vpop.permute.xlu0 %4361
        %4363 = vrot.lane.b32.xlu0 %v4249, 16
        %v4364 = vpop.permute.xlu0 %4363
        %4365 = vrot.lane.b32.xlu0 %v4250, 16
        %v4366 = vpop.permute.xlu0 %4365
        %4367 = vrot.lane.b32.xlu0 %v4251, 16
        %v4368 = vpop.permute.xlu0 %4367
        %4369 = vrot.lane.b32.xlu0 %v4252, 16
        %v4370 = vpop.permute.xlu0 %4369
        %4371 = vrot.lane.b32.xlu0 %v4253, 16
        %v4372 = vpop.permute.xlu0 %4371
        %4373 = vrot.lane.b32.xlu0 %v4254, 16
        %v4374 = vpop.permute.xlu0 %4373
        %4375 = vrot.lane.b32.xlu0 %v4255, 16
        %v4376 = vpop.permute.xlu0 %4375
        %4377 = vrot.lane.b32.xlu0 %v4256, 16
        %v4378 = vpop.permute.xlu0 %4377
        %4379 = vrot.lane.b32.xlu0 %v4257, 16
        %v4380 = vpop.permute.xlu0 %4379
        %4381 = vrot.lane.b32.xlu0 %v4258, 16
        %v4382 = vpop.permute.xlu0 %4381
        %4383 = vrot.lane.b32.xlu0 %v4259, 16
        %v4384 = vpop.permute.xlu0 %4383
        %4385 = vrot.lane.b32.xlu0 %v4260, 16
        %v4386 = vpop.permute.xlu0 %4385
        %4387 = vrot.lane.b32.xlu0 %v4261, 16
        %v4388 = vpop.permute.xlu0 %4387
        %4389 = vrot.lane.b32.xlu0 %v4262, 16
        %v4390 = vpop.permute.xlu0 %4389
        %v4423 = vadd.f32 %v4263, %v4328
        %v4424 = vadd.f32 %v4264, %v4330
        %v4425 = vadd.f32 %v4265, %v4332
        %v4426 = vadd.f32 %v4266, %v4334
        %v4427 = vadd.f32 %v4267, %v4336
        %v4428 = vadd.f32 %v4268, %v4338
        %v4429 = vadd.f32 %v4269, %v4340
        %v4430 = vadd.f32 %v4270, %v4342
        %v4431 = vadd.f32 %v4271, %v4344
        %v4432 = vadd.f32 %v4272, %v4346
        %v4433 = vadd.f32 %v4273, %v4348
        %v4434 = vadd.f32 %v4274, %v4350
        %v4435 = vadd.f32 %v4275, %v4352
        %v4436 = vadd.f32 %v4276, %v4354
        %v4437 = vadd.f32 %v4277, %v4356
        %v4438 = vadd.f32 %v4278, %v4358
        %v4439 = vadd.f32 %v4279, %v4360
        %v4440 = vadd.f32 %v4280, %v4362
        %v4441 = vadd.f32 %v4281, %v4364
        %v4442 = vadd.f32 %v4282, %v4366
        %v4443 = vadd.f32 %v4283, %v4368
        %v4444 = vadd.f32 %v4284, %v4370
        %v4445 = vadd.f32 %v4285, %v4372
        %v4446 = vadd.f32 %v4286, %v4374
        %v4447 = vadd.f32 %v4287, %v4376
        %v4448 = vadd.f32 %v4288, %v4378
        %v4449 = vadd.f32 %v4289, %v4380
        %v4450 = vadd.f32 %v4290, %v4382
        %v4451 = vadd.f32 %v4291, %v4384
        %v4452 = vadd.f32 %v4292, %v4386
        %v4453 = vadd.f32 %v4293, %v4388
        %v4454 = vadd.f32 %v4294, %v4390
        %4455 = vst.msk [vmem:[%s266] sm:$0xff] %vm423, %v4423
        %4456 = vst.msk [vmem:[%s266 + $0x8] sm:$0xff] %vm423, %v4424
        %4457 = vst.msk [vmem:[%s266 + $0x10] sm:$0xff] %vm423, %v4425
        %4458 = vst.msk [vmem:[%s266 + $0x18] sm:$0xff] %vm423, %v4426
        %4459 = vst.msk [vmem:[%s266 + $0x20] sm:$0xff] %vm423, %v4427
        %4460 = vst.msk [vmem:[%s266 + $0x28] sm:$0xff] %vm423, %v4428
        %4461 = vst.msk [vmem:[%s266 + $0x30] sm:$0xff] %vm423, %v4429
        %4462 = vst.msk [vmem:[%s266 + $0x38] sm:$0xff] %vm423, %v4430
        %4463 = vst.msk [vmem:[%s266 + $0x40] sm:$0xff] %vm423, %v4431
        %4464 = vst.msk [vmem:[%s266 + $0x48] sm:$0xff] %vm423, %v4432
        %4465 = vst.msk [vmem:[%s266 + $0x50] sm:$0xff] %vm423, %v4433
        %4466 = vst.msk [vmem:[%s266 + $0x58] sm:$0xff] %vm423, %v4434
        %4467 = vst.msk [vmem:[%s266 + $0x60] sm:$0xff] %vm423, %v4435
        %4468 = vst.msk [vmem:[%s266 + $0x68] sm:$0xff] %vm423, %v4436
        %4469 = vst.msk [vmem:[%s266 + $0x70] sm:$0xff] %vm423, %v4437
        %4470 = vst.msk [vmem:[%s266 + $0x78] sm:$0xff] %vm423, %v4438
        %4471 = vst.msk [vmem:[%s266 + $0x80] sm:$0xff] %vm423, %v4439
        %4472 = vst.msk [vmem:[%s266 + $0x88] sm:$0xff] %vm423, %v4440
        %4473 = vst.msk [vmem:[%s266 + $0x90] sm:$0xff] %vm423, %v4441
        %4474 = vst.msk [vmem:[%s266 + $0x98] sm:$0xff] %vm423, %v4442
        %4475 = vst.msk [vmem:[%s266 + $0xa0] sm:$0xff] %vm423, %v4443
        %4476 = vst.msk [vmem:[%s266 + $0xa8] sm:$0xff] %vm423, %v4444
        %4477 = vst.msk [vmem:[%s266 + $0xb0] sm:$0xff] %vm423, %v4445
        %4478 = vst.msk [vmem:[%s266 + $0xb8] sm:$0xff] %vm423, %v4446
        %4479 = vst.msk [vmem:[%s266 + $0xc0] sm:$0xff] %vm423, %v4447
        %4480 = vst.msk [vmem:[%s266 + $0xc8] sm:$0xff] %vm423, %v4448
        %4481 = vst.msk [vmem:[%s266 + $0xd0] sm:$0xff] %vm423, %v4449
        %4482 = vst.msk [vmem:[%s266 + $0xd8] sm:$0xff] %vm423, %v4450
        %4483 = vst.msk [vmem:[%s266 + $0xe0] sm:$0xff] %vm423, %v4451
        %4484 = vst.msk [vmem:[%s266 + $0xe8] sm:$0xff] %vm423, %v4452
        %4485 = vst.msk [vmem:[%s266 + $0xf0] sm:$0xff] %vm423, %v4453
        %4486 = vst.msk [vmem:[%s266 + $0xf8] sm:$0xff] %vm423, %v4454
        %v4487 = vld [vmem:[#allocation3 + $0x8] sm:$0xff]
        %v4488 = vld [vmem:[#allocation3 + $0x18] sm:$0xff]
        %v4489 = vld [vmem:[#allocation3 + $0x28] sm:$0xff]
        %v4490 = vld [vmem:[#allocation3 + $0x38] sm:$0xff]
        %v4491 = vld [vmem:[#allocation3 + $0x48] sm:$0xff]
        %v4492 = vld [vmem:[#allocation3 + $0x58] sm:$0xff]
        %v4493 = vld [vmem:[#allocation3 + $0x68] sm:$0xff]
        %v4494 = vld [vmem:[#allocation3 + $0x78] sm:$0xff]
        %v4495 = vld [vmem:[#allocation3 + $0x88] sm:$0xff]
        %v4496 = vld [vmem:[#allocation3 + $0x98] sm:$0xff]
        %v4497 = vld [vmem:[#allocation3 + $0xa8] sm:$0xff]
        %v4498 = vld [vmem:[#allocation3 + $0xb8] sm:$0xff]
        %v4499 = vld [vmem:[#allocation3 + $0xc8] sm:$0xff]
        %v4500 = vld [vmem:[#allocation3 + $0xd8] sm:$0xff]
        %v4501 = vld [vmem:[#allocation3 + $0xe8] sm:$0xff]
        %v4502 = vld [vmem:[#allocation3 + $0xf8] sm:$0xff]
        %v4503 = vld [vmem:[#allocation3 + $0x108] sm:$0xff]
        %v4504 = vld [vmem:[#allocation3 + $0x118] sm:$0xff]
        %v4505 = vld [vmem:[#allocation3 + $0x128] sm:$0xff]
        %v4506 = vld [vmem:[#allocation3 + $0x138] sm:$0xff]
        %v4507 = vld [vmem:[#allocation3 + $0x148] sm:$0xff]
        %v4508 = vld [vmem:[#allocation3 + $0x158] sm:$0xff]
        %v4509 = vld [vmem:[#allocation3 + $0x168] sm:$0xff]
        %v4510 = vld [vmem:[#allocation3 + $0x178] sm:$0xff]
        %v4511 = vld [vmem:[#allocation3 + $0x188] sm:$0xff]
        %v4512 = vld [vmem:[#allocation3 + $0x198] sm:$0xff]
        %v4513 = vld [vmem:[#allocation3 + $0x1a8] sm:$0xff]
        %v4514 = vld [vmem:[#allocation3 + $0x1b8] sm:$0xff]
        %v4515 = vld [vmem:[#allocation3 + $0x1c8] sm:$0xff]
        %v4516 = vld [vmem:[#allocation3 + $0x1d8] sm:$0xff]
        %v4517 = vld [vmem:[#allocation3 + $0x1e8] sm:$0xff]
        %v4518 = vld [vmem:[#allocation3 + $0x1f8] sm:$0xff]
        %v4519 = vld [vmem:[%s3622 + $0x2] sm:$0xff]
        %v4520 = vld [vmem:[%s3622 + $0xa] sm:$0xff]
        %v4521 = vld [vmem:[%s3622 + $0x1a] sm:$0xff]
        %v4522 = vld [vmem:[%s3622 + $0x22] sm:$0xff]
        %v4523 = vld [vmem:[%s3622 + $0x32] sm:$0xff]
        %v4524 = vld [vmem:[%s3622 + $0x3a] sm:$0xff]
        %v4525 = vld [vmem:[%s3622 + $0x4a] sm:$0xff]
        %v4526 = vld [vmem:[%s3622 + $0x52] sm:$0xff]
        %v4527 = vld [vmem:[%s3622 + $0x62] sm:$0xff]
        %v4528 = vld [vmem:[%s3622 + $0x6a] sm:$0xff]
        %v4529 = vld [vmem:[%s3622 + $0x7a] sm:$0xff]
        %v4530 = vld [vmem:[%s3622 + $0x82] sm:$0xff]
        %v4531 = vld [vmem:[%s3622 + $0x92] sm:$0xff]
        %v4532 = vld [vmem:[%s3622 + $0x9a] sm:$0xff]
        %v4533 = vld [vmem:[%s3622 + $0xaa] sm:$0xff]
        %v4534 = vld [vmem:[%s3622 + $0xb2] sm:$0xff]
        %v4535 = vld [vmem:[%s3622 + $0xc2] sm:$0xff]
        %v4536 = vld [vmem:[%s3622 + $0xca] sm:$0xff]
        %v4537 = vld [vmem:[%s3622 + $0xda] sm:$0xff]
        %v4538 = vld [vmem:[%s3622 + $0xe2] sm:$0xff]
        %v4539 = vld [vmem:[%s3622 + $0xf2] sm:$0xff]
        %v4540 = vld [vmem:[%s3622 + $0xfa] sm:$0xff]
        %v4541 = vld [vmem:[%s3622 + $0x10a] sm:$0xff]
        %v4542 = vld [vmem:[%s3622 + $0x112] sm:$0xff]
        %v4543 = vld [vmem:[%s3622 + $0x122] sm:$0xff]
        %v4544 = vld [vmem:[%s3622 + $0x12a] sm:$0xff]
        %v4545 = vld [vmem:[%s3622 + $0x13a] sm:$0xff]
        %v4546 = vld [vmem:[%s3622 + $0x142] sm:$0xff]
        %v4547 = vld [vmem:[%s3622 + $0x152] sm:$0xff]
        %v4548 = vld [vmem:[%s3622 + $0x15a] sm:$0xff]
        %v4549 = vld [vmem:[%s3622 + $0x16a] sm:$0xff]
        %v4550 = vld [vmem:[%s3622 + $0x172] sm:$0xff]
        %v4551 = vmul.f32 %v4487, %v4519
        %v4552 = vmul.f32 %v4488, %v4520
        %v4553 = vmul.f32 %v4489, %v4521
        %v4554 = vmul.f32 %v4490, %v4522
        %v4555 = vmul.f32 %v4491, %v4523
        %v4556 = vmul.f32 %v4492, %v4524
        %v4557 = vmul.f32 %v4493, %v4525
        %v4558 = vmul.f32 %v4494, %v4526
        %v4559 = vmul.f32 %v4495, %v4527
        %v4560 = vmul.f32 %v4496, %v4528
        %v4561 = vmul.f32 %v4497, %v4529
        %v4562 = vmul.f32 %v4498, %v4530
        %v4563 = vmul.f32 %v4499, %v4531
        %v4564 = vmul.f32 %v4500, %v4532
        %v4565 = vmul.f32 %v4501, %v4533
        %v4566 = vmul.f32 %v4502, %v4534
        %v4567 = vmul.f32 %v4503, %v4535
        %v4568 = vmul.f32 %v4504, %v4536
        %v4569 = vmul.f32 %v4505, %v4537
        %v4570 = vmul.f32 %v4506, %v4538
        %v4571 = vmul.f32 %v4507, %v4539
        %v4572 = vmul.f32 %v4508, %v4540
        %v4573 = vmul.f32 %v4509, %v4541
        %v4574 = vmul.f32 %v4510, %v4542
        %v4575 = vmul.f32 %v4511, %v4543
        %v4576 = vmul.f32 %v4512, %v4544
        %v4577 = vmul.f32 %v4513, %v4545
        %v4578 = vmul.f32 %v4514, %v4546
        %v4579 = vmul.f32 %v4515, %v4547
        %v4580 = vmul.f32 %v4516, %v4548
        %v4581 = vmul.f32 %v4517, %v4549
        %v4582 = vmul.f32 %v4518, %v4550
        %v4583 = vld [vmem:[%s266] sm:$0xff]
        %v4584 = vld [vmem:[%s266 + $0x8] sm:$0xff]
        %v4585 = vld [vmem:[%s266 + $0x10] sm:$0xff]
        %v4586 = vld [vmem:[%s266 + $0x18] sm:$0xff]
        %v4587 = vld [vmem:[%s266 + $0x20] sm:$0xff]
        %v4588 = vld [vmem:[%s266 + $0x28] sm:$0xff]
        %v4589 = vld [vmem:[%s266 + $0x30] sm:$0xff]
        %v4590 = vld [vmem:[%s266 + $0x38] sm:$0xff]
        %v4591 = vld [vmem:[%s266 + $0x40] sm:$0xff]
        %v4592 = vld [vmem:[%s266 + $0x48] sm:$0xff]
        %v4593 = vld [vmem:[%s266 + $0x50] sm:$0xff]
        %v4594 = vld [vmem:[%s266 + $0x58] sm:$0xff]
        %v4595 = vld [vmem:[%s266 + $0x60] sm:$0xff]
        %v4596 = vld [vmem:[%s266 + $0x68] sm:$0xff]
        %v4597 = vld [vmem:[%s266 + $0x70] sm:$0xff]
        %v4598 = vld [vmem:[%s266 + $0x78] sm:$0xff]
        %v4599 = vld [vmem:[%s266 + $0x80] sm:$0xff]
        %v4600 = vld [vmem:[%s266 + $0x88] sm:$0xff]
        %v4601 = vld [vmem:[%s266 + $0x90] sm:$0xff]
        %v4602 = vld [vmem:[%s266 + $0x98] sm:$0xff]
        %v4603 = vld [vmem:[%s266 + $0xa0] sm:$0xff]
        %v4604 = vld [vmem:[%s266 + $0xa8] sm:$0xff]
        %v4605 = vld [vmem:[%s266 + $0xb0] sm:$0xff]
        %v4606 = vld [vmem:[%s266 + $0xb8] sm:$0xff]
        %v4607 = vld [vmem:[%s266 + $0xc0] sm:$0xff]
        %v4608 = vld [vmem:[%s266 + $0xc8] sm:$0xff]
        %v4609 = vld [vmem:[%s266 + $0xd0] sm:$0xff]
        %v4610 = vld [vmem:[%s266 + $0xd8] sm:$0xff]
        %v4611 = vld [vmem:[%s266 + $0xe0] sm:$0xff]
        %v4612 = vld [vmem:[%s266 + $0xe8] sm:$0xff]
        %v4613 = vld [vmem:[%s266 + $0xf0] sm:$0xff]
        %v4614 = vld [vmem:[%s266 + $0xf8] sm:$0xff]
        %v4615 = vadd.f32 %v4583, %v4551
        %v4616 = vadd.f32 %v4584, %v4552
        %v4617 = vadd.f32 %v4585, %v4553
        %v4618 = vadd.f32 %v4586, %v4554
        %v4619 = vadd.f32 %v4587, %v4555
        %v4620 = vadd.f32 %v4588, %v4556
        %v4621 = vadd.f32 %v4589, %v4557
        %v4622 = vadd.f32 %v4590, %v4558
        %v4623 = vadd.f32 %v4591, %v4559
        %v4624 = vadd.f32 %v4592, %v4560
        %v4625 = vadd.f32 %v4593, %v4561
        %v4626 = vadd.f32 %v4594, %v4562
        %v4627 = vadd.f32 %v4595, %v4563
        %v4628 = vadd.f32 %v4596, %v4564
        %v4629 = vadd.f32 %v4597, %v4565
        %v4630 = vadd.f32 %v4598, %v4566
        %v4631 = vadd.f32 %v4599, %v4567
        %v4632 = vadd.f32 %v4600, %v4568
        %v4633 = vadd.f32 %v4601, %v4569
        %v4634 = vadd.f32 %v4602, %v4570
        %v4635 = vadd.f32 %v4603, %v4571
        %v4636 = vadd.f32 %v4604, %v4572
        %v4637 = vadd.f32 %v4605, %v4573
        %v4638 = vadd.f32 %v4606, %v4574
        %v4639 = vadd.f32 %v4607, %v4575
        %v4640 = vadd.f32 %v4608, %v4576
        %v4641 = vadd.f32 %v4609, %v4577
        %v4642 = vadd.f32 %v4610, %v4578
        %v4643 = vadd.f32 %v4611, %v4579
        %v4644 = vadd.f32 %v4612, %v4580
        %v4645 = vadd.f32 %v4613, %v4581
        %v4646 = vadd.f32 %v4614, %v4582
        %4647 = vst.msk [vmem:[%s266] sm:$0xff] %vm423, %v4615
        %4648 = vst.msk [vmem:[%s266 + $0x8] sm:$0xff] %vm423, %v4616
        %4649 = vst.msk [vmem:[%s266 + $0x10] sm:$0xff] %vm423, %v4617
        %4650 = vst.msk [vmem:[%s266 + $0x18] sm:$0xff] %vm423, %v4618
        %4651 = vst.msk [vmem:[%s266 + $0x20] sm:$0xff] %vm423, %v4619
        %4652 = vst.msk [vmem:[%s266 + $0x28] sm:$0xff] %vm423, %v4620
        %4653 = vst.msk [vmem:[%s266 + $0x30] sm:$0xff] %vm423, %v4621
        %4654 = vst.msk [vmem:[%s266 + $0x38] sm:$0xff] %vm423, %v4622
        %4655 = vst.msk [vmem:[%s266 + $0x40] sm:$0xff] %vm423, %v4623
        %4656 = vst.msk [vmem:[%s266 + $0x48] sm:$0xff] %vm423, %v4624
        %4657 = vst.msk [vmem:[%s266 + $0x50] sm:$0xff] %vm423, %v4625
        %4658 = vst.msk [vmem:[%s266 + $0x58] sm:$0xff] %vm423, %v4626
        %4659 = vst.msk [vmem:[%s266 + $0x60] sm:$0xff] %vm423, %v4627
        %4660 = vst.msk [vmem:[%s266 + $0x68] sm:$0xff] %vm423, %v4628
        %4661 = vst.msk [vmem:[%s266 + $0x70] sm:$0xff] %vm423, %v4629
        %4662 = vst.msk [vmem:[%s266 + $0x78] sm:$0xff] %vm423, %v4630
        %4663 = vst.msk [vmem:[%s266 + $0x80] sm:$0xff] %vm423, %v4631
        %4664 = vst.msk [vmem:[%s266 + $0x88] sm:$0xff] %vm423, %v4632
        %4665 = vst.msk [vmem:[%s266 + $0x90] sm:$0xff] %vm423, %v4633
        %4666 = vst.msk [vmem:[%s266 + $0x98] sm:$0xff] %vm423, %v4634
        %4667 = vst.msk [vmem:[%s266 + $0xa0] sm:$0xff] %vm423, %v4635
        %4668 = vst.msk [vmem:[%s266 + $0xa8] sm:$0xff] %vm423, %v4636
        %4669 = vst.msk [vmem:[%s266 + $0xb0] sm:$0xff] %vm423, %v4637
        %4670 = vst.msk [vmem:[%s266 + $0xb8] sm:$0xff] %vm423, %v4638
        %4671 = vst.msk [vmem:[%s266 + $0xc0] sm:$0xff] %vm423, %v4639
        %4672 = vst.msk [vmem:[%s266 + $0xc8] sm:$0xff] %vm423, %v4640
        %4673 = vst.msk [vmem:[%s266 + $0xd0] sm:$0xff] %vm423, %v4641
        %4674 = vst.msk [vmem:[%s266 + $0xd8] sm:$0xff] %vm423, %v4642
        %4675 = vst.msk [vmem:[%s266 + $0xe0] sm:$0xff] %vm423, %v4643
        %4676 = vst.msk [vmem:[%s266 + $0xe8] sm:$0xff] %vm423, %v4644
        %4677 = vst.msk [vmem:[%s266 + $0xf0] sm:$0xff] %vm423, %v4645
        %4678 = vst.msk [vmem:[%s266 + $0xf8] sm:$0xff] %vm423, %v4646
        %s4679 = smul.u32 32, %s24
        %p4680 = scmp.lt.s32.totalorder %s23, 1
        %s4681 = scalar_select %p4680, %s23, 1
        %p4682 = scmp.lt.s32.totalorder %s4679, 31
        %s4683 = scalar_select %p4682, %s4679, 31
        %s4684 = smul.addr %s4681, 32
        %s4685 = sadd.s32 %s4683, %s4684
        %s4686 = smul.addr %s4685, 8
        %s4687 = scalar_lea.vmem %s5, %s4686
        // Predicated region
        $region49: #{tpu_custom_call.1} parent=39 // pred_check
          %p4688 = pneg %p161
        $region50: #{tpu_custom_call.1} parent=39 // pred_check_branch
          %4690 = sbr.rel (%p4688) target = $region52
        $region51: #{tpu_custom_call.1} parent=39 // pred_region
          %s4691 = smul.u32 32, %s24
        $region52: #{tpu_custom_call.1} parent=39 // pred_fallthru
          _
      $region40: #{tpu_custom_call.1} parent=5 // pred_fallthru
        _
      %p4692 = scmp.le.s32.totalorder 2, %s14
      // Predicated region
      $region53: #{tpu_custom_call.1} parent=5 // pred_check
        %p4693 = pneg %p4692
      $region54: #{tpu_custom_call.1} parent=5 // pred_check_branch
        %4695 = sbr.rel (%p4693) target = $region56
      $region55: #{tpu_custom_call.1} parent=5 // pred_region
        %s4696 = ssub.s32 %s14, 2
        // Predicated region
        $region57: #{tpu_custom_call.1} parent=55 // pred_check
          %p4697 = pneg %p167
        $region58: #{tpu_custom_call.1} parent=55 // pred_check_branch
          %4699 = sbr.rel (%p4697) target = $region60
        $region59: #{tpu_custom_call.1} parent=55 // pred_region
          %s4700 = smul.u32 32, %s26
          %p4701 = scmp.lt.s32.totalorder %s25, 1
          %s4702 = scalar_select %p4701, %s25, 1
          %p4703 = scmp.lt.s32.totalorder %s4700, 31
          %s4704 = scalar_select %p4703, %s4700, 31
          %s4705 = smul.addr %s4702, 32
          %s4706 = sadd.s32 %s4704, %s4705
          %s4707 = smul.addr %s4706, 8
          %s4708 = scalar_lea.vmem %s5, %s4707
        $region60: #{tpu_custom_call.1} parent=55 // pred_fallthru
          _
      $region56: #{tpu_custom_call.1} parent=5 // pred_fallthru
        _
    $region6: #{tpu_custom_call.1} parent=1 // loop_footer
      %s18 = sadd.s32 1, %s14
    $region7: #{tpu_custom_call.1} parent=1 // loop_footer_branch
      %13 = sbr.rel target = $region3
    $region8: #{tpu_custom_call.1} parent=1 // loop_exit
      _
    %4709 = vsyncpa [#allocation5], 1
    %s4710 = scalar_lea.sflag [#allocation5], 1
    %4711 = vsyncpa %s4710, 1

</llo_original>
